<compile_context>
chip_gen: v6e
topology: v6e:2x2x1
jax: 0.10.0
libtpu: 0.0.40
codegen_flags: <defaults>
</compile_context>

<pallas_src>
import jax
import jax.numpy as jnp
from jax.experimental import pallas as pl
from jax.experimental.pallas import tpu as pltpu

# ---------------- true (PyTorch) feature sizes ----------------
D0, D1, D2, D3, D4 = 14, 196, 784, 64, 1
# ---------------- lane-padded hidden sizes (multiples of 128) --
# NOTE: the layer-1 contraction dim (14) is intentionally NOT padded on HBM.
P1, P2, P3 = 256, 896, 128


def _ceil_div(a, b):
    return -(-a // b)


def _pad2d(a, rows, cols):
    return jnp.pad(a, ((0, rows - a.shape[0]), (0, cols - a.shape[1])))


def _probably_two_tensorcores():
    """True on 2-TensorCore chips (v7x); only used for grid-step rounding."""
    try:
        kind = jax.devices()[0].device_kind.lower()
    except Exception:
        return False
    return any(tag in kind for tag in ("v7", "7x", "tpu7"))


# ----------------------------------------------------------------------------
# Pallas kernel: fused 4-layer MLP forward for one (batch_tile, 14) tile of x.
# ----------------------------------------------------------------------------
def mlp_kernel(x_ref, w1_ref, b1_ref, w2_ref, b2_ref, w3_ref, b3_ref,
               w4_ref, b4_ref, o_ref):
    cdt = w1_ref.dtype                               # compute dtype (bf16/f32)
    x = x_ref[...].astype(cdt)                       # (bt, 14) — K unpadded
    h = jnp.dot(x, w1_ref[...], preferred_element_type=jnp.float32) + b1_ref[...]
    h = jnp.maximum(h, 0.0)                          # ReLU in f32 (v5e-safe)
    h = jnp.dot(h.astype(cdt), w2_ref[...],
                preferred_element_type=jnp.float32) + b2_ref[...]
    h = jnp.maximum(h, 0.0)
    h = jnp.dot(h.astype(cdt), w3_ref[...],
                preferred_element_type=jnp.float32) + b3_ref[...]
    h = jnp.maximum(h, 0.0)                          # (bt, P3) f32
    # Lane-dense final layer: contract the feature dim of h against the padded
    # (8, P3) weight (row 0 is the real output unit, rows 1..7 are zero).
    out = jax.lax.dot_general(
        w4_ref[...], h.astype(cdt),
        dimension_numbers=(((1,), (1,)), ((), ())),
        preferred_element_type=jnp.float32)          # (8, bt)
    o_ref[...] = (out[0:1, :] + b4_ref[0, 0]).astype(o_ref.dtype)  # (1, bt)


# ----------------------------------------------------------------------------
# One-time parameter prep (hoisted out of the per-call path).
# PyTorch stores Linear weight as (out, in); the kernel consumes (in, out).
# The bf16 fast path intentionally rounds weights/activations to bf16 (with
# f32 accumulation); pass compute_dtype=jnp.float32 for exact f32 semantics.
# ----------------------------------------------------------------------------
def prepare_params(params, compute_dtype=jnp.bfloat16):
    (w1, b1), (w2, b2), (w3, b3), (w4, b4) = params
    w1p = _pad2d(w1.T, D0, P1).astype(compute_dtype)    # (14, 256) — K unpadded
    w2p = _pad2d(w2.T, P1, P2).astype(compute_dtype)    # (256, 896)
    w3p = _pad2d(w3.T, P2, P3).astype(compute_dtype)    # (896, 128)
    w4p = _pad2d(w4, 8, P3).astype(compute_dtype)       # (8, 128), row 0 real
    b1p = _pad2d(b1[None, :].astype(jnp.float32), 1, P1)
    b2p = _pad2d(b2[None, :].astype(jnp.float32), 1, P2)
    b3p = _pad2d(b3[None, :].astype(jnp.float32), 1, P3)
    b4p = b4.reshape(1, 1).astype(jnp.float32)          # SMEM scalar
    return (w1p, b1p, w2p, b2p, w3p, b3p, w4p, b4p)


def _resident_spec(a, single_buffer):
    idx = lambda i: (0, 0)
    if single_buffer:
        try:
            # Constant index_map -> never re-fetched; one buffer is enough.
            return pl.BlockSpec(a.shape, idx, pipeline_mode=pl.Buffered(1))
        except TypeError:
            pass
    return pl.BlockSpec(a.shape, idx)


def _run_mlp(xp, prepared, batch_tile, n_steps, single_buffer):
    w1p, b1p, w2p, b2p, w3p, b3p, w4p, b4p = prepared
    Bp = n_steps * batch_tile
    rep = lambda a: _resident_spec(a, single_buffer)

    cp_kwargs = dict(dimension_semantics=("parallel",))
    if batch_tile >= 512:
        # Intermediates at bt>=512 approach v5e's 16 MiB scoped default;
        # 32 MiB is enough and stays within v7x's 32 MiB scoped default.
        cp_kwargs["vmem_limit_bytes"] = 32 << 20

    return pl.pallas_call(
        mlp_kernel,
        out_shape=jax.ShapeDtypeStruct((1, Bp), jnp.float32),   # lane-dense
        grid_spec=pltpu.PrefetchScalarGridSpec(
            num_scalar_prefetch=0,
            grid=(n_steps,),
            in_specs=[
                pl.BlockSpec((batch_tile, D0), lambda i: (i, 0)),   # x tile
                rep(w1p), rep(b1p),                                 # layer 1
                rep(w2p), rep(b2p),                                 # layer 2
                rep(w3p), rep(b3p),                                 # layer 3
                rep(w4p),                                           # out weight
                pl.BlockSpec(memory_space=pltpu.MemorySpace.SMEM),  # out bias
            ],
            out_specs=pl.BlockSpec((1, batch_tile), lambda i: (0, i)),
        ),
        compiler_params=pltpu.CompilerParams(**cp_kwargs),
    )(xp, w1p, b1p, w2p, b2p, w3p, b3p, w4p, b4p)


def mlp_forward(x, prepared, *, batch_tile=None):
    """x: (B, 14), any float dtype (feed bf16 for the fast path). -> (B, 1) f32."""
    B = x.shape[0]
    if batch_tile is None:
        if B <= 512:
            batch_tile = 128 * _ceil_div(B, 128)     # single grid step
        elif B % 1024 == 0:
            batch_tile = 1024                        # fat tiles amortize step cost
        elif B % 512 == 0:
            batch_tile = 512
        else:
            batch_tile = 512                         # pad tail; pad << step overhead

    n_steps = _ceil_div(B, batch_tile)
    # v7x only: keep the 'parallel' batch axis balanced across its 2 TensorCores.
    if n_steps > 1 and (n_steps % 2 == 1) and _probably_two_tensorcores():
        n_steps += 1
    Bp = n_steps * batch_tile

    # Only pad batch rows when needed (feature dim stays 14 on HBM; no dtype cast).
    xp = x if Bp == B else jnp.pad(x, ((0, Bp - B), (0, 0)))

    try:
        out_row = _run_mlp(xp, prepared, batch_tile, n_steps, single_buffer=True)
    except Exception:
        # Fallback if this jax version rejects pl.Buffered(1) on pallas_call specs.
        out_row = _run_mlp(xp, prepared, batch_tile, n_steps, single_buffer=False)

    return out_row[:, :B].T                          # (B, 1)


# ----------------------------------------------------------------------------
# Deterministic parameter init (mimics nn.Linear default: U[-1/sqrt(in), +])
# ----------------------------------------------------------------------------
def init_params(key):
    dims = [(D0, D1), (D1, D2), (D2, D3), (D3, D4)]
    params = []
    for fan_in, fan_out in dims:
        key, kw, kb = jax.random.split(key, 3)
        bound = 1.0 / jnp.sqrt(fan_in)
        w = jax.random.uniform(kw, (fan_out, fan_in), jnp.float32, -bound, bound)
        b = jax.random.uniform(kb, (fan_out,), jnp.float32, -bound, bound)
        params.append((w, b))
    return params


def reference_forward(x, params):
    h = x.astype(jnp.float32)
    for i, (w, b) in enumerate(params):
        h = h @ w.T + b
        if i < len(params) - 1:
            h = jnp.maximum(h, 0.0)
    return h


if __name__ == "__main__":
    key = jax.random.PRNGKey(0)
    kx, kp = jax.random.split(key)
    B = 8
    x = jax.random.normal(kx, (B, D0), jnp.float32)
    params = init_params(kp)
    ref = reference_forward(x, params)

    # Exactness check: f32 compute path matches the PyTorch (f32) semantics.
    out_f32 = jax.block_until_ready(
        mlp_forward(x, prepare_params(params, jnp.float32)))
    assert out_f32.shape == (B, 1), out_f32.shape
    assert jnp.allclose(out_f32, ref, atol=1e-3, rtol=1e-3), (
        f"f32 max abs err {jnp.max(jnp.abs(out_f32 - ref))}")

    # Fast path: bf16 x / weights / activations with f32 accumulation
    # (intentional precision trade-off; covered by a loose tolerance).
    out_bf16 = jax.block_until_ready(
        mlp_forward(x.astype(jnp.bfloat16), prepare_params(params)))
    assert out_bf16.shape == (B, 1), out_bf16.shape
    scale = jnp.max(jnp.abs(ref))
    err = jnp.max(jnp.abs(out_bf16 - ref))
    assert err <= 0.08 * scale + 5e-3, f"bf16 err {err} (scale {scale})"

    print("KERNEL_OK")
</pallas_src>

<mosaic_0001>
module attributes {stable_mosaic.version = 11 : i64} {
  func.func @mlp_kernel(%arg0: i32, %arg1: memref<128x14xf32, #tpu.memory_space<vmem>>, %arg2: memref<14x256xf32, #tpu.memory_space<vmem>>, %arg3: memref<1x256xf32, #tpu.memory_space<vmem>>, %arg4: memref<256x896xf32, #tpu.memory_space<vmem>>, %arg5: memref<1x896xf32, #tpu.memory_space<vmem>>, %arg6: memref<896x128xf32, #tpu.memory_space<vmem>>, %arg7: memref<1x128xf32, #tpu.memory_space<vmem>>, %arg8: memref<8x128xf32, #tpu.memory_space<vmem>>, %arg9: memref<1x1xf32, #tpu.memory_space<smem>>, %arg10: memref<1x128xf32, #tpu.memory_space<vmem>>) attributes {dimension_semantics = [#tpu.dimension_semantics<parallel>], iteration_bounds = array<i64: 1>, scalar_prefetch = 0 : i64, scratch_operands = 0 : i64, tpu.core_type = #tpu.core_type<tc>, window_params = [{transform_indices = @transform_0, window_bounds = array<i64: 128, 14>}, {pipeline_mode = #tpu.pipeline_mode<synchronous>, transform_indices = @transform_1, window_bounds = array<i64: 14, 256>}, {pipeline_mode = #tpu.pipeline_mode<synchronous>, transform_indices = @transform_2, window_bounds = array<i64: 1, 256>}, {pipeline_mode = #tpu.pipeline_mode<synchronous>, transform_indices = @transform_3, window_bounds = array<i64: 256, 896>}, {pipeline_mode = #tpu.pipeline_mode<synchronous>, transform_indices = @transform_4, window_bounds = array<i64: 1, 896>}, {pipeline_mode = #tpu.pipeline_mode<synchronous>, transform_indices = @transform_5, window_bounds = array<i64: 896, 128>}, {pipeline_mode = #tpu.pipeline_mode<synchronous>, transform_indices = @transform_6, window_bounds = array<i64: 1, 128>}, {pipeline_mode = #tpu.pipeline_mode<synchronous>, transform_indices = @transform_7, window_bounds = array<i64: 8, 128>}, {transform_indices = @transform_8, window_bounds = array<i64: 1, 1>}, {transform_indices = @transform_9, window_bounds = array<i64: 1, 128>}]} {
    %c0 = arith.constant 0 : index
    %c0_0 = arith.constant 0 : index
    %0 = vector.load %arg1[%c0, %c0_0] : memref<128x14xf32, #tpu.memory_space<vmem>>, vector<128x14xf32>
    %c0_1 = arith.constant 0 : index
    %c0_2 = arith.constant 0 : index
    %1 = vector.load %arg2[%c0_1, %c0_2] : memref<14x256xf32, #tpu.memory_space<vmem>>, vector<14x256xf32>
    %cst = arith.constant dense<0.000000e+00> : vector<128x256xf32>
    %2 = tpu.matmul %0, %1, %cst {dimension_numbers = #tpu.dot_dimension_numbers<[1], [0], [0], [1], [0, 0, 1, 1], [], []>} : vector<128x14xf32>, vector<14x256xf32>, vector<128x256xf32> -> vector<128x256xf32>
    %c0_3 = arith.constant 0 : index
    %c0_4 = arith.constant 0 : index
    %3 = vector.load %arg3[%c0_3, %c0_4] : memref<1x256xf32, #tpu.memory_space<vmem>>, vector<1x256xf32>
    %4 = vector.broadcast %3 : vector<1x256xf32> to vector<128x256xf32>
    %5 = arith.addf %2, %4 : vector<128x256xf32>
    %cst_5 = arith.constant 0.000000e+00 : f32
    %6 = vector.broadcast %cst_5 : f32 to vector<128x256xf32>
    %7 = arith.maximumf %5, %6 : vector<128x256xf32>
    %c0_6 = arith.constant 0 : index
    %c0_7 = arith.constant 0 : index
    %8 = vector.load %arg4[%c0_6, %c0_7] : memref<256x896xf32, #tpu.memory_space<vmem>>, vector<256x896xf32>
    %cst_8 = arith.constant dense<0.000000e+00> : vector<128x896xf32>
    %9 = tpu.matmul %7, %8, %cst_8 {dimension_numbers = #tpu.dot_dimension_numbers<[1], [0], [0], [1], [0, 0, 1, 1], [], []>} : vector<128x256xf32>, vector<256x896xf32>, vector<128x896xf32> -> vector<128x896xf32>
    %c0_9 = arith.constant 0 : index
    %c0_10 = arith.constant 0 : index
    %10 = vector.load %arg5[%c0_9, %c0_10] : memref<1x896xf32, #tpu.memory_space<vmem>>, vector<1x896xf32>
    %11 = vector.broadcast %10 : vector<1x896xf32> to vector<128x896xf32>
    %12 = arith.addf %9, %11 : vector<128x896xf32>
    %cst_11 = arith.constant 0.000000e+00 : f32
    %13 = vector.broadcast %cst_11 : f32 to vector<128x896xf32>
    %14 = arith.maximumf %12, %13 : vector<128x896xf32>
    %c0_12 = arith.constant 0 : index
    %c0_13 = arith.constant 0 : index
    %15 = vector.load %arg6[%c0_12, %c0_13] : memref<896x128xf32, #tpu.memory_space<vmem>>, vector<896x128xf32>
    %cst_14 = arith.constant dense<0.000000e+00> : vector<128x128xf32>
    %16 = tpu.matmul %14, %15, %cst_14 {dimension_numbers = #tpu.dot_dimension_numbers<[1], [0], [0], [1], [0, 0, 1, 1], [], []>} : vector<128x896xf32>, vector<896x128xf32>, vector<128x128xf32> -> vector<128x128xf32>
    %c0_15 = arith.constant 0 : index
    %c0_16 = arith.constant 0 : index
    %17 = vector.load %arg7[%c0_15, %c0_16] : memref<1x128xf32, #tpu.memory_space<vmem>>, vector<1x128xf32>
    %18 = vector.broadcast %17 : vector<1x128xf32> to vector<128x128xf32>
    %19 = arith.addf %16, %18 : vector<128x128xf32>
    %cst_17 = arith.constant 0.000000e+00 : f32
    %20 = vector.broadcast %cst_17 : f32 to vector<128x128xf32>
    %21 = arith.maximumf %19, %20 : vector<128x128xf32>
    %c0_18 = arith.constant 0 : index
    %c0_19 = arith.constant 0 : index
    %22 = vector.load %arg8[%c0_18, %c0_19] : memref<8x128xf32, #tpu.memory_space<vmem>>, vector<8x128xf32>
    %cst_20 = arith.constant dense<0.000000e+00> : vector<8x128xf32>
    %23 = tpu.matmul %22, %21, %cst_20 {dimension_numbers = #tpu.dot_dimension_numbers<[1], [1], [0], [0], [0, 0, 1, 0], [], []>} : vector<8x128xf32>, vector<128x128xf32>, vector<8x128xf32> -> vector<8x128xf32>
    %24 = vector.extract_strided_slice %23 {offsets = [0, 0], sizes = [1, 128], strides = [1, 1]} : vector<8x128xf32> to vector<1x128xf32>
    %c0_21 = arith.constant 0 : index
    %c0_22 = arith.constant 0 : index
    %25 = memref.load %arg9[%c0_21, %c0_22] : memref<1x1xf32, #tpu.memory_space<smem>>
    %26 = vector.broadcast %25 : f32 to vector<1x128xf32>
    %27 = arith.addf %24, %26 : vector<1x128xf32>
    %c0_23 = arith.constant 0 : index
    %c0_24 = arith.constant 0 : index
    %28 = vector.load %arg10[%c0_23, %c0_24] : memref<1x128xf32, #tpu.memory_space<vmem>>, vector<1x128xf32>
    tpu.vector_store %arg10[%c0_23, %c0_24], %27 {strides = array<i32>} : memref<1x128xf32, #tpu.memory_space<vmem>>, vector<1x128xf32>,
    return
  }
  func.func @transform_0(%arg0: i32) -> (i32, i32) {
    %c0_i32 = arith.constant 0 : i32
    %c0_i32_0 = arith.constant 0 : i32
    return %arg0, %c0_i32 : i32, i32
  }
  func.func @transform_1(%arg0: i32) -> (i32, i32) {
    %c0_i32 = arith.constant 0 : i32
    %c0_i32_0 = arith.constant 0 : i32
    %c0_i32_1 = arith.constant 0 : i32
    return %c0_i32, %c0_i32_0 : i32, i32
  }
  func.func @transform_2(%arg0: i32) -> (i32, i32) {
    %c0_i32 = arith.constant 0 : i32
    %c0_i32_0 = arith.constant 0 : i32
    %c0_i32_1 = arith.constant 0 : i32
    return %c0_i32, %c0_i32_0 : i32, i32
  }
  func.func @transform_3(%arg0: i32) -> (i32, i32) {
    %c0_i32 = arith.constant 0 : i32
    %c0_i32_0 = arith.constant 0 : i32
    %c0_i32_1 = arith.constant 0 : i32
    return %c0_i32, %c0_i32_0 : i32, i32
  }
  func.func @transform_4(%arg0: i32) -> (i32, i32) {
    %c0_i32 = arith.constant 0 : i32
    %c0_i32_0 = arith.constant 0 : i32
    %c0_i32_1 = arith.constant 0 : i32
    return %c0_i32, %c0_i32_0 : i32, i32
  }
  func.func @transform_5(%arg0: i32) -> (i32, i32) {
    %c0_i32 = arith.constant 0 : i32
    %c0_i32_0 = arith.constant 0 : i32
    %c0_i32_1 = arith.constant 0 : i32
    return %c0_i32, %c0_i32_0 : i32, i32
  }
  func.func @transform_6(%arg0: i32) -> (i32, i32) {
    %c0_i32 = arith.constant 0 : i32
    %c0_i32_0 = arith.constant 0 : i32
    %c0_i32_1 = arith.constant 0 : i32
    return %c0_i32, %c0_i32_0 : i32, i32
  }
  func.func @transform_7(%arg0: i32) -> (i32, i32) {
    %c0_i32 = arith.constant 0 : i32
    %c0_i32_0 = arith.constant 0 : i32
    %c0_i32_1 = arith.constant 0 : i32
    return %c0_i32, %c0_i32_0 : i32, i32
  }
  func.func @transform_8(%arg0: i32) -> (i32, i32) {
    %c0_i32 = arith.constant 0 : i32
    %c0_i32_0 = arith.constant 0 : i32
    %c0_i32_1 = arith.constant 0 : i32
    return %c0_i32, %c0_i32_0 : i32, i32
  }
  func.func @transform_9(%arg0: i32) -> (i32, i32) {
    %c0_i32 = arith.constant 0 : i32
    %c0_i32_0 = arith.constant 0 : i32
    return %c0_i32, %arg0 : i32, i32
  }
}

module attributes {stable_mosaic.version = 11 : i64} {
  func.func @mlp_kernel(%arg0: i32, %arg1: memref<128x14xf32, #tpu.memory_space<vmem>>, %arg2: memref<14x256xf32, #tpu.memory_space<vmem>>, %arg3: memref<1x256xf32, #tpu.memory_space<vmem>>, %arg4: memref<256x896xf32, #tpu.memory_space<vmem>>, %arg5: memref<1x896xf32, #tpu.memory_space<vmem>>, %arg6: memref<896x128xf32, #tpu.memory_space<vmem>>, %arg7: memref<1x128xf32, #tpu.memory_space<vmem>>, %arg8: memref<8x128xf32, #tpu.memory_space<vmem>>, %arg9: memref<1x1xf32, #tpu.memory_space<smem>>, %arg10: memref<1x128xf32, #tpu.memory_space<vmem>>) attributes {dimension_semantics = [#tpu.dimension_semantics<parallel>], iteration_bounds = array<i64: 1>, scalar_prefetch = 0 : i64, scratch_operands = 0 : i64, tpu.core_type = #tpu.core_type<tc>, window_params = [{transform_indices = @transform_0, window_bounds = array<i64: 128, 14>}, {pipeline_mode = #tpu.pipeline_mode<synchronous>, transform_indices = @transform_1, window_bounds = array<i64: 14, 256>}, {pipeline_mode = #tpu.pipeline_mode<synchronous>, transform_indices = @transform_2, window_bounds = array<i64: 1, 256>}, {pipeline_mode = #tpu.pipeline_mode<synchronous>, transform_indices = @transform_3, window_bounds = array<i64: 256, 896>}, {pipeline_mode = #tpu.pipeline_mode<synchronous>, transform_indices = @transform_4, window_bounds = array<i64: 1, 896>}, {pipeline_mode = #tpu.pipeline_mode<synchronous>, transform_indices = @transform_5, window_bounds = array<i64: 896, 128>}, {pipeline_mode = #tpu.pipeline_mode<synchronous>, transform_indices = @transform_6, window_bounds = array<i64: 1, 128>}, {pipeline_mode = #tpu.pipeline_mode<synchronous>, transform_indices = @transform_7, window_bounds = array<i64: 8, 128>}, {transform_indices = @transform_8, window_bounds = array<i64: 1, 1>}, {transform_indices = @transform_9, window_bounds = array<i64: 1, 128>}]} {
    %c0 = arith.constant 0 : index
    %c0_0 = arith.constant 0 : index
    %0 = vector.load %arg1[%c0, %c0_0] : memref<128x14xf32, #tpu.memory_space<vmem>>, vector<128x14xf32>
    %c0_1 = arith.constant 0 : index
    %c0_2 = arith.constant 0 : index
    %1 = vector.load %arg2[%c0_1, %c0_2] : memref<14x256xf32, #tpu.memory_space<vmem>>, vector<14x256xf32>
    %cst = arith.constant dense<0.000000e+00> : vector<128x256xf32>
    %2 = tpu.matmul %0, %1, %cst {dimension_numbers = #tpu.dot_dimension_numbers<[1], [0], [0], [1], [0, 0, 1, 1], [], []>} : vector<128x14xf32>, vector<14x256xf32>, vector<128x256xf32> -> vector<128x256xf32>
    %c0_3 = arith.constant 0 : index
    %c0_4 = arith.constant 0 : index
    %3 = vector.load %arg3[%c0_3, %c0_4] : memref<1x256xf32, #tpu.memory_space<vmem>>, vector<1x256xf32>
    %4 = vector.broadcast %3 : vector<1x256xf32> to vector<128x256xf32>
    %5 = arith.addf %2, %4 : vector<128x256xf32>
    %cst_5 = arith.constant 0.000000e+00 : f32
    %6 = vector.broadcast %cst_5 : f32 to vector<128x256xf32>
    %7 = arith.maximumf %5, %6 : vector<128x256xf32>
    %c0_6 = arith.constant 0 : index
    %c0_7 = arith.constant 0 : index
    %8 = vector.load %arg4[%c0_6, %c0_7] : memref<256x896xf32, #tpu.memory_space<vmem>>, vector<256x896xf32>
    %cst_8 = arith.constant dense<0.000000e+00> : vector<128x896xf32>
    %9 = tpu.matmul %7, %8, %cst_8 {dimension_numbers = #tpu.dot_dimension_numbers<[1], [0], [0], [1], [0, 0, 1, 1], [], []>} : vector<128x256xf32>, vector<256x896xf32>, vector<128x896xf32> -> vector<128x896xf32>
    %c0_9 = arith.constant 0 : index
    %c0_10 = arith.constant 0 : index
    %10 = vector.load %arg5[%c0_9, %c0_10] : memref<1x896xf32, #tpu.memory_space<vmem>>, vector<1x896xf32>
    %11 = vector.broadcast %10 : vector<1x896xf32> to vector<128x896xf32>
    %12 = arith.addf %9, %11 : vector<128x896xf32>
    %cst_11 = arith.constant 0.000000e+00 : f32
    %13 = vector.broadcast %cst_11 : f32 to vector<128x896xf32>
    %14 = arith.maximumf %12, %13 : vector<128x896xf32>
    %c0_12 = arith.constant 0 : index
    %c0_13 = arith.constant 0 : index
    %15 = vector.load %arg6[%c0_12, %c0_13] : memref<896x128xf32, #tpu.memory_space<vmem>>, vector<896x128xf32>
    %cst_14 = arith.constant dense<0.000000e+00> : vector<128x128xf32>
    %16 = tpu.matmul %14, %15, %cst_14 {dimension_numbers = #tpu.dot_dimension_numbers<[1], [0], [0], [1], [0, 0, 1, 1], [], []>} : vector<128x896xf32>, vector<896x128xf32>, vector<128x128xf32> -> vector<128x128xf32>
    %c0_15 = arith.constant 0 : index
    %c0_16 = arith.constant 0 : index
    %17 = vector.load %arg7[%c0_15, %c0_16] : memref<1x128xf32, #tpu.memory_space<vmem>>, vector<1x128xf32>
    %18 = vector.broadcast %17 : vector<1x128xf32> to vector<128x128xf32>
    %19 = arith.addf %16, %18 : vector<128x128xf32>
    %cst_17 = arith.constant 0.000000e+00 : f32
    %20 = vector.broadcast %cst_17 : f32 to vector<128x128xf32>
    %21 = arith.maximumf %19, %20 : vector<128x128xf32>
    %c0_18 = arith.constant 0 : index
    %c0_19 = arith.constant 0 : index
    %22 = vector.load %arg8[%c0_18, %c0_19] : memref<8x128xf32, #tpu.memory_space<vmem>>, vector<8x128xf32>
    %cst_20 = arith.constant dense<0.000000e+00> : vector<8x128xf32>
    %23 = tpu.matmul %22, %21, %cst_20 {dimension_numbers = #tpu.dot_dimension_numbers<[1], [1], [0], [0], [0, 0, 1, 0], [], []>} : vector<8x128xf32>, vector<128x128xf32>, vector<8x128xf32> -> vector<8x128xf32>
    %24 = vector.extract_strided_slice %23 {offsets = [0, 0], sizes = [1, 128], strides = [1, 1]} : vector<8x128xf32> to vector<1x128xf32>
    %c0_21 = arith.constant 0 : index
    %c0_22 = arith.constant 0 : index
    %25 = memref.load %arg9[%c0_21, %c0_22] : memref<1x1xf32, #tpu.memory_space<smem>>
    %26 = vector.broadcast %25 : f32 to vector<1x128xf32>
    %27 = arith.addf %24, %26 : vector<1x128xf32>
    %c0_23 = arith.constant 0 : index
    %c0_24 = arith.constant 0 : index
    %28 = vector.load %arg10[%c0_23, %c0_24] : memref<1x128xf32, #tpu.memory_space<vmem>>, vector<1x128xf32>
    tpu.vector_store %arg10[%c0_23, %c0_24], %27 {strides = array<i32>} : memref<1x128xf32, #tpu.memory_space<vmem>>, vector<1x128xf32>,
    return
  }
  func.func @transform_0(%arg0: i32) -> (i32, i32) {
    %c0_i32 = arith.constant 0 : i32
    %c0_i32_0 = arith.constant 0 : i32
    return %arg0, %c0_i32 : i32, i32
  }
  func.func @transform_1(%arg0: i32) -> (i32, i32) {
    %c0_i32 = arith.constant 0 : i32
    %c0_i32_0 = arith.constant 0 : i32
    %c0_i32_1 = arith.constant 0 : i32
    return %c0_i32, %c0_i32_0 : i32, i32
  }
  func.func @transform_2(%arg0: i32) -> (i32, i32) {
    %c0_i32 = arith.constant 0 : i32
    %c0_i32_0 = arith.constant 0 : i32
    %c0_i32_1 = arith.constant 0 : i32
    return %c0_i32, %c0_i32_0 : i32, i32
  }
  func.func @transform_3(%arg0: i32) -> (i32, i32) {
    %c0_i32 = arith.constant 0 : i32
    %c0_i32_0 = arith.constant 0 : i32
    %c0_i32_1 = arith.constant 0 : i32
    return %c0_i32, %c0_i32_0 : i32, i32
  }
  func.func @transform_4(%arg0: i32) -> (i32, i32) {
    %c0_i32 = arith.constant 0 : i32
    %c0_i32_0 = arith.constant 0 : i32
    %c0_i32_1 = arith.constant 0 : i32
    return %c0_i32, %c0_i32_0 : i32, i32
  }
  func.func @transform_5(%arg0: i32) -> (i32, i32) {
    %c0_i32 = arith.constant 0 : i32
    %c0_i32_0 = arith.constant 0 : i32
    %c0_i32_1 = arith.constant 0 : i32
    return %c0_i32, %c0_i32_0 : i32, i32
  }
  func.func @transform_6(%arg0: i32) -> (i32, i32) {
    %c0_i32 = arith.constant 0 : i32
    %c0_i32_0 = arith.constant 0 : i32
    %c0_i32_1 = arith.constant 0 : i32
    return %c0_i32, %c0_i32_0 : i32, i32
  }
  func.func @transform_7(%arg0: i32) -> (i32, i32) {
    %c0_i32 = arith.constant 0 : i32
    %c0_i32_0 = arith.constant 0 : i32
    %c0_i32_1 = arith.constant 0 : i32
    return %c0_i32, %c0_i32_0 : i32, i32
  }
  func.func @transform_8(%arg0: i32) -> (i32, i32) {
    %c0_i32 = arith.constant 0 : i32
    %c0_i32_0 = arith.constant 0 : i32
    %c0_i32_1 = arith.constant 0 : i32
    return %c0_i32, %c0_i32_0 : i32, i32
  }
  func.func @transform_9(%arg0: i32) -> (i32, i32) {
    %c0_i32 = arith.constant 0 : i32
    %c0_i32_0 = arith.constant 0 : i32
    return %c0_i32, %arg0 : i32, i32
  }
}

</mosaic_0001>

<llo_original>
// kernel: tpu_custom_call.1
$region0: #{tpu_custom_call.1}
  #allocation0 [shape = 'u32[]', space=smem, size = 0x4, offset = 0x4, fixed_abs, tag = 'smem constant byte address 0x4 - core index']
  #allocation1 [shape = 'u32[144,128]{1,0:T(1,128)}', space=vmem, size = 0x12000, scoped, tag = 'internal scratch']
  #allocation2 [shape = 'f32[1,1]{1,0:T(1,128)S(6)}', space=smem, size = 0x200, scoped, tag = 'scoped memory for tpu_custom_call.1']
  %s0 = inlined_call_operand.vmem [shape: f32[128,14], index: 0, kind: input, shape index: {}]
  %s1 = inlined_call_operand.vmem [shape: f32[14,256], index: 1, kind: input, shape index: {}]
  %s2 = inlined_call_operand.vmem [shape: f32[1,256], index: 2, kind: input, shape index: {}]
  %s3 = inlined_call_operand.hbm [shape: f32[256,896], index: 3, kind: input, shape index: {}]
  %s4 = inlined_call_operand.vmem [shape: f32[1,896], index: 4, kind: input, shape index: {}]
  %s5 = inlined_call_operand.hbm [shape: f32[896,128], index: 5, kind: input, shape index: {}]
  %s6 = inlined_call_operand.vmem [shape: f32[1,128], index: 6, kind: input, shape index: {}]
  %s7 = inlined_call_operand.vmem [shape: f32[8,128], index: 7, kind: input, shape index: {}]
  %s8 = inlined_call_operand.<no memory space> [shape: f32[1,1], index: 8, kind: input, shape index: {}]
  %s9 = inlined_call_operand.hbm [shape: f32[1,128], index: 9, kind: output, shape index: {}]
  %s10 = sld [smem:[#allocation0]]
  $region54: #{tpu_custom_call.1} parent=0
    _
  %s12 = ssub.s32 1, %s10
  %s13 = scalar_select 0, %s12, %s10
  %14 = sst [smem:[#allocation2]] %s8
  $region1: #{tpu_custom_call.1} parent=0
    #allocation3 [shape = 'u8[917504]{0}', space=vmem, size = 0xe0000, scoped, tag = 'input window, operand 3, single buffered']
    #allocation4 [shape = 's32[1]{0}', space=sflag, size = 0x4, scoped, tag = 'scoped memory for tpu_custom_call.1']
    #allocation5 [shape = 's32[1]{0}', space=sflag, size = 0x4, scoped, tag = 'scoped memory for tpu_custom_call.1']
    #allocation6 [shape = 'u8[458752]{0}', space=vmem, size = 0x70000, scoped, tag = 'input window, operand 5, single buffered']
    #allocation7 [shape = 's32[1]{0}', space=sflag, size = 0x4, scoped, tag = 'scoped memory for tpu_custom_call.1']
    #allocation8 [shape = 'u8[512]{0}', space=vmem, size = 0x400, scoped, tag = 'output window, operand 0, single buffered']
    %15 = vsyncpa [#allocation4], 0
    %16 = vsyncpa [#allocation7], 0
    %17 = vsyncpa [#allocation5], 0
    // Predicated region
    $region2: #{tpu_custom_call.1} parent=1 // pred_check
      _
    $region3: #{tpu_custom_call.1} parent=1 // pred_check_branch
      %19 = sbr.rel (0) target = $region5
    $region4: #{tpu_custom_call.1} parent=1 // pred_region
      _
    $region5: #{tpu_custom_call.1} parent=1 // pred_fallthru
      _
    // Predicated region
    $region6: #{tpu_custom_call.1} parent=1 // pred_check
      _
    $region7: #{tpu_custom_call.1} parent=1 // pred_check_branch
      %21 = sbr.rel (0) target = $region9
    $region8: #{tpu_custom_call.1} parent=1 // pred_region
      _
    $region9: #{tpu_custom_call.1} parent=1 // pred_fallthru
      _
    // Predicated region
    $region10: #{tpu_custom_call.1} parent=1 // pred_check
      _
    $region11: #{tpu_custom_call.1} parent=1 // pred_check_branch
      %23 = sbr.rel (0) target = $region13
    $region12: #{tpu_custom_call.1} parent=1 // pred_region
      _
    $region13: #{tpu_custom_call.1} parent=1 // pred_fallthru
      _
    // Predicated region
    $region14: #{tpu_custom_call.1} parent=1 // pred_check
      _
    $region15: #{tpu_custom_call.1} parent=1 // pred_check_branch
      %25 = sbr.rel (0) target = $region17
    $region16: #{tpu_custom_call.1} parent=1 // pred_region
      %s27 = ssub.s32 28672, 28672
      %28 = vsyncadd [#allocation4], %s27
      %s29 = sshll.u32 [#allocation3], 4
      %s30 = int_to_ptr.vmem [resolvable:$true] %s29
      %35 = dma.hbm_to_vmem [thread:$0]  %s3, 28672, %s30, [#allocation4], 896, 896, 56
    $region17: #{tpu_custom_call.1} parent=1 // pred_fallthru
      _
    // Predicated region
    $region18: #{tpu_custom_call.1} parent=1 // pred_check
      _
    $region19: #{tpu_custom_call.1} parent=1 // pred_check_branch
      %37 = sbr.rel (0) target = $region21
    $region20: #{tpu_custom_call.1} parent=1 // pred_region
      _
    $region21: #{tpu_custom_call.1} parent=1 // pred_fallthru
      _
    // Predicated region
    $region22: #{tpu_custom_call.1} parent=1 // pred_check
      _
    $region23: #{tpu_custom_call.1} parent=1 // pred_check_branch
      %39 = sbr.rel (0) target = $region25
    $region24: #{tpu_custom_call.1} parent=1 // pred_region
      %s41 = ssub.s32 14336, 14336
      %42 = vsyncadd [#allocation7], %s41
      %s43 = sshll.u32 [#allocation6], 4
      %s44 = int_to_ptr.vmem [resolvable:$true] %s43
      %49 = dma.hbm_to_vmem [thread:$0]  %s5, 14336, %s44, [#allocation7], 128, 128, 8
    $region25: #{tpu_custom_call.1} parent=1 // pred_fallthru
      _
    // Predicated region
    $region26: #{tpu_custom_call.1} parent=1 // pred_check
      _
    $region27: #{tpu_custom_call.1} parent=1 // pred_check_branch
      %51 = sbr.rel (0) target = $region29
    $region28: #{tpu_custom_call.1} parent=1 // pred_region
      _
    $region29: #{tpu_custom_call.1} parent=1 // pred_fallthru
      _
    // Predicated region
    $region30: #{tpu_custom_call.1} parent=1 // pred_check
      _
    $region31: #{tpu_custom_call.1} parent=1 // pred_check_branch
      %53 = sbr.rel (0) target = $region33
    $region32: #{tpu_custom_call.1} parent=1 // pred_region
      _
    $region33: #{tpu_custom_call.1} parent=1 // pred_fallthru
      _
    // Predicated region
    $region34: #{tpu_custom_call.1} parent=1 // pred_check
      _
    $region35: #{tpu_custom_call.1} parent=1 // pred_check_branch
      %55 = sbr.rel (0) target = $region37
    $region36: #{tpu_custom_call.1} parent=1 // pred_region
      _
    $region37: #{tpu_custom_call.1} parent=1 // pred_fallthru
      _
    // Predicated region
    $region38: #{tpu_custom_call.1} parent=1 // pred_check
      _
    $region39: #{tpu_custom_call.1} parent=1 // pred_check_branch
      %57 = sbr.rel (0) target = $region41
    $region40: #{tpu_custom_call.1} parent=1 // pred_region
      %58 = dma.done [#allocation4], 28672
    $region41: #{tpu_custom_call.1} parent=1 // pred_fallthru
      _
    // Predicated region
    $region42: #{tpu_custom_call.1} parent=1 // pred_check
      _
    $region43: #{tpu_custom_call.1} parent=1 // pred_check_branch
      %60 = sbr.rel (0) target = $region45
    $region44: #{tpu_custom_call.1} parent=1 // pred_region
      %61 = dma.done [#allocation7], 14336
    $region45: #{tpu_custom_call.1} parent=1 // pred_fallthru
      _
    %v62 = vld [vmem:[%s0] sm:$0xff]
    %v63 = vld [vmem:[%s0 + $0x8] sm:$0xff]
    %v64 = vld [vmem:[%s0 + $0x10] sm:$0xff]
    %v65 = vld [vmem:[%s0 + $0x18] sm:$0xff]
    %v66 = vld [vmem:[%s0 + $0x20] sm:$0xff]
    %v67 = vld [vmem:[%s0 + $0x28] sm:$0xff]
    %v68 = vld [vmem:[%s0 + $0x30] sm:$0xff]
    %v69 = vld [vmem:[%s0 + $0x38] sm:$0xff]
    %v70 = vld [vmem:[%s0 + $0x40] sm:$0xff]
    %v71 = vld [vmem:[%s0 + $0x48] sm:$0xff]
    %v72 = vld [vmem:[%s0 + $0x50] sm:$0xff]
    %v73 = vld [vmem:[%s0 + $0x58] sm:$0xff]
    %v74 = vld [vmem:[%s0 + $0x60] sm:$0xff]
    %v75 = vld [vmem:[%s0 + $0x68] sm:$0xff]
    %v76 = vld [vmem:[%s0 + $0x70] sm:$0xff]
    %v77 = vld [vmem:[%s0 + $0x78] sm:$0xff]
    %v78 = vld [vmem:[%s1] sm:$0xff]
    %v79 = vld [vmem:[%s1 + $0x8] sm:$0xff]
    %v80 = vld [vmem:[%s1 + $0x10] sm:$0x3f]
    %v81 = vld [vmem:[%s1 + $0x18] sm:$0x3f]
    %v82 = vld [vmem:[%s2] sm:$0x3]
    %v84 = vlaneseq
    %v85 = vshrl.u32 %v84, 7
    %v86 = vsub.s32 0, %v85
    %v87 = vrot.slane %v82, %v86
    %v88 = vlaneseq
    %v89 = vshrl.u32 %v88, 7
    %v90 = vsub.s32 1, %v89
    %v91 = vrot.slane %v82, %v90
    %vm94 = vcmask 113664
    %v96 = vsel %vm94, %v62, 0
    %v99 = vsel %vm94, %v63, 0
    %v102 = vsel %vm94, %v64, 0
    %v105 = vsel %vm94, %v65, 0
    %v108 = vsel %vm94, %v66, 0
    %v111 = vsel %vm94, %v67, 0
    %v114 = vsel %vm94, %v68, 0
    %v117 = vsel %vm94, %v69, 0
    %v120 = vsel %vm94, %v70, 0
    %v123 = vsel %vm94, %v71, 0
    %v126 = vsel %vm94, %v72, 0
    %v129 = vsel %vm94, %v73, 0
    %v132 = vsel %vm94, %v74, 0
    %v135 = vsel %vm94, %v75, 0
    %v138 = vsel %vm94, %v76, 0
    %v141 = vsel %vm94, %v77, 0
    %vm143 = vcmask 1045504
    %v145 = vsel %vm143, %v80, 0
    %v148 = vsel %vm143, %v81, 0
    %150 = vmatprep.subr.mxu0 0.0
    %151 = vmatpush1.msra.mxu0 0.0
    %152 = vmatprep.subr.mxu0 0.0
    %153 = vmatpush1.msra.mxu0 0.0
    %154 = vmatprep.subr.mxu0 0.0
    %155 = vmatpush1.msra.mxu0 0.0
    %156 = vmatprep.subr.mxu0 0.0
    %157 = vmatpush1.msra.mxu0 0.0
    %158 = vmatprep.subr.mxu0 0.0
    %159 = vmatpush1.msra.mxu0 0.0
    %160 = vmatprep.subr.mxu0 0.0
    %161 = vmatpush1.msra.mxu0 0.0
    %162 = vmatprep.subr.mxu0 0.0
    %163 = vmatpush1.msra.mxu0 0.0
    %164 = vmatprep.subr.mxu0 0.0
    %165 = vmatpush1.msra.mxu0 0.0
    %166 = vmatprep.subr.mxu0 0.0
    %167 = vmatpush1.msra.mxu0 0.0
    %168 = vmatprep.subr.mxu0 0.0
    %169 = vmatpush1.msra.mxu0 0.0
    %170 = vmatprep.subr.mxu0 0.0
    %171 = vmatpush1.msra.mxu0 0.0
    %172 = vmatprep.subr.mxu0 0.0
    %173 = vmatpush1.msra.mxu0 0.0
    %174 = vmatprep.subr.mxu0 0.0
    %175 = vmatpush1.msra.mxu0 0.0
    %176 = vmatprep.subr.mxu0 0.0
    %177 = vmatpush1.msra.mxu0 0.0
    %178 = vmatprep.subr.mxu0 %v148
    %179 = vmatpush1.msra.mxu0 %v145
    %180 = vmatprep.subr.mxu0 %v79
    %181 = vmatpush1.msra.mxu0 %v78
    %182 = vmatprep.subr.mxu0 0.0
    %183 = vmatpush2.msra.mxu0 0.0
    %184 = vmatprep.subr.mxu0 0.0
    %185 = vmatpush2.msra.mxu0 0.0
    %186 = vmatprep.subr.mxu0 0.0
    %187 = vmatpush2.msra.mxu0 0.0
    %188 = vmatprep.subr.mxu0 0.0
    %189 = vmatpush2.msra.mxu0 0.0
    %190 = vmatprep.subr.mxu0 0.0
    %191 = vmatpush2.msra.mxu0 0.0
    %192 = vmatprep.subr.mxu0 0.0
    %193 = vmatpush2.msra.mxu0 0.0
    %194 = vmatprep.subr.mxu0 0.0
    %195 = vmatpush2.msra.mxu0 0.0
    %196 = vmatprep.subr.mxu0 0.0
    %197 = vmatpush2.msra.mxu0 0.0
    %198 = vmatprep.subr.mxu0 0.0
    %199 = vmatpush2.msra.mxu0 0.0
    %200 = vmatprep.subr.mxu0 0.0
    %201 = vmatpush2.msra.mxu0 0.0
    %202 = vmatprep.subr.mxu0 0.0
    %203 = vmatpush2.msra.mxu0 0.0
    %204 = vmatprep.subr.mxu0 0.0
    %205 = vmatpush2.msra.mxu0 0.0
    %206 = vmatprep.subr.mxu0 0.0
    %207 = vmatpush2.msra.mxu0 0.0
    %208 = vmatprep.subr.mxu0 0.0
    %209 = vmatpush2.msra.mxu0 0.0
    %210 = vmatprep.subr.mxu0 0.0
    %211 = vmatpush2.msra.mxu0 0.0
    %212 = vmatprep.subr.mxu0 0.0
    %213 = vmatpush2.msra.mxu0 0.0
    %214 = vmatprep.mubr.f32.mxu0 0.0
    %215 = vmatmul.mubr.f32.gmra.mxu0 %v96
    %v216 = vpop.f32.mrf.mxu0
    %v217 = vadd.f32 %v87, %v216
    %v218 = vpop.f32.mrf.mxu0
    %v219 = vadd.f32 %v91, %v218
    %220 = vmatprep.mubr.f32.mxu0 0.0
    %221 = vmatmul.mubr.f32.gmra.mxu0 %v99
    %v222 = vpop.f32.mrf.mxu0
    %v223 = vadd.f32 %v87, %v222
    %v224 = vpop.f32.mrf.mxu0
    %v225 = vadd.f32 %v91, %v224
    %226 = vmatprep.mubr.f32.mxu0 0.0
    %227 = vmatmul.mubr.f32.gmra.mxu0 %v102
    %v228 = vpop.f32.mrf.mxu0
    %v229 = vadd.f32 %v87, %v228
    %v230 = vpop.f32.mrf.mxu0
    %v231 = vadd.f32 %v91, %v230
    %232 = vmatprep.mubr.f32.mxu0 0.0
    %233 = vmatmul.mubr.f32.gmra.mxu0 %v105
    %v234 = vpop.f32.mrf.mxu0
    %v235 = vadd.f32 %v87, %v234
    %v236 = vpop.f32.mrf.mxu0
    %v237 = vadd.f32 %v91, %v236
    %238 = vmatprep.mubr.f32.mxu0 0.0
    %239 = vmatmul.mubr.f32.gmra.mxu0 %v108
    %v240 = vpop.f32.mrf.mxu0
    %v241 = vadd.f32 %v87, %v240
    %v242 = vpop.f32.mrf.mxu0
    %v243 = vadd.f32 %v91, %v242
    %244 = vmatprep.mubr.f32.mxu0 0.0
    %245 = vmatmul.mubr.f32.gmra.mxu0 %v111
    %v246 = vpop.f32.mrf.mxu0
    %v247 = vadd.f32 %v87, %v246
    %v248 = vpop.f32.mrf.mxu0
    %v249 = vadd.f32 %v91, %v248
    %250 = vmatprep.mubr.f32.mxu0 0.0
    %251 = vmatmul.mubr.f32.gmra.mxu0 %v114
    %v252 = vpop.f32.mrf.mxu0
    %v253 = vadd.f32 %v87, %v252
    %v254 = vpop.f32.mrf.mxu0
    %v255 = vadd.f32 %v91, %v254
    %256 = vmatprep.mubr.f32.mxu0 0.0
    %257 = vmatmul.mubr.f32.gmra.mxu0 %v117
    %v258 = vpop.f32.mrf.mxu0
    %v259 = vadd.f32 %v87, %v258
    %v260 = vpop.f32.mrf.mxu0
    %v261 = vadd.f32 %v91, %v260
    %262 = vmatprep.mubr.f32.mxu0 0.0
    %263 = vmatmul.mubr.f32.gmra.mxu0 %v120
    %v264 = vpop.f32.mrf.mxu0
    %v265 = vadd.f32 %v87, %v264
    %v266 = vpop.f32.mrf.mxu0
    %v267 = vadd.f32 %v91, %v266
    %268 = vmatprep.mubr.f32.mxu0 0.0
    %269 = vmatmul.mubr.f32.gmra.mxu0 %v123
    %v270 = vpop.f32.mrf.mxu0
    %v271 = vadd.f32 %v87, %v270
    %v272 = vpop.f32.mrf.mxu0
    %v273 = vadd.f32 %v91, %v272
    %274 = vmatprep.mubr.f32.mxu0 0.0
    %275 = vmatmul.mubr.f32.gmra.mxu0 %v126
    %v276 = vpop.f32.mrf.mxu0
    %v277 = vadd.f32 %v87, %v276
    %v278 = vpop.f32.mrf.mxu0
    %v279 = vadd.f32 %v91, %v278
    %280 = vmatprep.mubr.f32.mxu0 0.0
    %281 = vmatmul.mubr.f32.gmra.mxu0 %v129
    %v282 = vpop.f32.mrf.mxu0
    %v283 = vadd.f32 %v87, %v282
    %v284 = vpop.f32.mrf.mxu0
    %v285 = vadd.f32 %v91, %v284
    %286 = vmatprep.mubr.f32.mxu0 0.0
    %287 = vmatmul.mubr.f32.gmra.mxu0 %v132
    %v288 = vpop.f32.mrf.mxu0
    %v289 = vadd.f32 %v87, %v288
    %v290 = vpop.f32.mrf.mxu0
    %v291 = vadd.f32 %v91, %v290
    %292 = vmatprep.mubr.f32.mxu0 0.0
    %293 = vmatmul.mubr.f32.gmra.mxu0 %v135
    %v294 = vpop.f32.mrf.mxu0
    %v295 = vadd.f32 %v87, %v294
    %v296 = vpop.f32.mrf.mxu0
    %v297 = vadd.f32 %v91, %v296
    %298 = vmatprep.mubr.f32.mxu0 0.0
    %299 = vmatmul.mubr.f32.gmra.mxu0 %v138
    %v300 = vpop.f32.mrf.mxu0
    %v301 = vadd.f32 %v87, %v300
    %v302 = vpop.f32.mrf.mxu0
    %v303 = vadd.f32 %v91, %v302
    %304 = vmatprep.mubr.f32.mxu0 0.0
    %305 = vmatmul.mubr.f32.gmra.mxu0 %v141
    %v306 = vpop.f32.mrf.mxu0
    %v307 = vadd.f32 %v87, %v306
    %v308 = vpop.f32.mrf.mxu0
    %v309 = vadd.f32 %v91, %v308
    %310 = vdwg.mxu0
    %v311 = vmax.f32 %v217, 0.0
    %v312 = vmax.f32 %v219, 0.0
    %v313 = vmax.f32 %v223, 0.0
    %v314 = vmax.f32 %v225, 0.0
    %v315 = vmax.f32 %v229, 0.0
    %v316 = vmax.f32 %v231, 0.0
    %v317 = vmax.f32 %v235, 0.0
    %v318 = vmax.f32 %v237, 0.0
    %v319 = vmax.f32 %v241, 0.0
    %v320 = vmax.f32 %v243, 0.0
    %v321 = vmax.f32 %v247, 0.0
    %v322 = vmax.f32 %v249, 0.0
    %v323 = vmax.f32 %v253, 0.0
    %v324 = vmax.f32 %v255, 0.0
    %v325 = vmax.f32 %v259, 0.0
    %v326 = vmax.f32 %v261, 0.0
    %v327 = vmax.f32 %v265, 0.0
    %v328 = vmax.f32 %v267, 0.0
    %v329 = vmax.f32 %v271, 0.0
    %v330 = vmax.f32 %v273, 0.0
    %v331 = vmax.f32 %v277, 0.0
    %v332 = vmax.f32 %v279, 0.0
    %v333 = vmax.f32 %v283, 0.0
    %v334 = vmax.f32 %v285, 0.0
    %v335 = vmax.f32 %v289, 0.0
    %v336 = vmax.f32 %v291, 0.0
    %v337 = vmax.f32 %v295, 0.0
    %v338 = vmax.f32 %v297, 0.0
    %v339 = vmax.f32 %v301, 0.0
    %v340 = vmax.f32 %v303, 0.0
    %v341 = vmax.f32 %v307, 0.0
    %v342 = vmax.f32 %v309, 0.0
    %v343 = vld [vmem:[#allocation3] sm:$0xff]
    %v344 = vld [vmem:[#allocation3 + $0x8] sm:$0xff]
    %v345 = vld [vmem:[#allocation3 + $0x10] sm:$0xff]
    %v346 = vld [vmem:[#allocation3 + $0x18] sm:$0xff]
    %v347 = vld [vmem:[#allocation3 + $0x20] sm:$0xff]
    %v348 = vld [vmem:[#allocation3 + $0x28] sm:$0xff]
    %v349 = vld [vmem:[#allocation3 + $0x30] sm:$0xff]
    %v350 = vld [vmem:[#allocation3 + $0x38] sm:$0xff]
    %v351 = vld [vmem:[#allocation3 + $0x40] sm:$0xff]
    %v352 = vld [vmem:[#allocation3 + $0x48] sm:$0xff]
    %v353 = vld [vmem:[#allocation3 + $0x50] sm:$0xff]
    %v354 = vld [vmem:[#allocation3 + $0x58] sm:$0xff]
    %v355 = vld [vmem:[#allocation3 + $0x60] sm:$0xff]
    %v356 = vld [vmem:[#allocation3 + $0x68] sm:$0xff]
    %v357 = vld [vmem:[#allocation3 + $0x70] sm:$0xff]
    %v358 = vld [vmem:[#allocation3 + $0x78] sm:$0xff]
    %v359 = vld [vmem:[#allocation3 + $0x80] sm:$0xff]
    %v360 = vld [vmem:[#allocation3 + $0x88] sm:$0xff]
    %v361 = vld [vmem:[#allocation3 + $0x90] sm:$0xff]
    %v362 = vld [vmem:[#allocation3 + $0x98] sm:$0xff]
    %v363 = vld [vmem:[#allocation3 + $0xa0] sm:$0xff]
    %v364 = vld [vmem:[#allocation3 + $0xa8] sm:$0xff]
    %v365 = vld [vmem:[#allocation3 + $0xb0] sm:$0xff]
    %v366 = vld [vmem:[#allocation3 + $0xb8] sm:$0xff]
    %v367 = vld [vmem:[#allocation3 + $0xc0] sm:$0xff]
    %v368 = vld [vmem:[#allocation3 + $0xc8] sm:$0xff]
    %v369 = vld [vmem:[#allocation3 + $0xd0] sm:$0xff]
    %v370 = vld [vmem:[#allocation3 + $0xd8] sm:$0xff]
    %v371 = vld [vmem:[#allocation3 + $0xe0] sm:$0xff]
    %v372 = vld [vmem:[#allocation3 + $0xe8] sm:$0xff]
    %v373 = vld [vmem:[#allocation3 + $0xf0] sm:$0xff]
    %v374 = vld [vmem:[#allocation3 + $0xf8] sm:$0xff]
    %v375 = vld [vmem:[#allocation3 + $0x100] sm:$0xff]
    %v376 = vld [vmem:[#allocation3 + $0x108] sm:$0xff]
    %v377 = vld [vmem:[#allocation3 + $0x110] sm:$0xff]
    %v378 = vld [vmem:[#allocation3 + $0x118] sm:$0xff]
    %v379 = vld [vmem:[#allocation3 + $0x120] sm:$0xff]
    %v380 = vld [vmem:[#allocation3 + $0x128] sm:$0xff]
    %v381 = vld [vmem:[#allocation3 + $0x130] sm:$0xff]
    %v382 = vld [vmem:[#allocation3 + $0x138] sm:$0xff]
    %v383 = vld [vmem:[#allocation3 + $0x140] sm:$0xff]
    %v384 = vld [vmem:[#allocation3 + $0x148] sm:$0xff]
    %v385 = vld [vmem:[#allocation3 + $0x150] sm:$0xff]
    %v386 = vld [vmem:[#allocation3 + $0x158] sm:$0xff]
    %v387 = vld [vmem:[#allocation3 + $0x160] sm:$0xff]
    %v388 = vld [vmem:[#allocation3 + $0x168] sm:$0xff]
    %v389 = vld [vmem:[#allocation3 + $0x170] sm:$0xff]
    %v390 = vld [vmem:[#allocation3 + $0x178] sm:$0xff]
    %v391 = vld [vmem:[#allocation3 + $0x180] sm:$0xff]
    %v392 = vld [vmem:[#allocation3 + $0x188] sm:$0xff]
    %v393 = vld [vmem:[#allocation3 + $0x190] sm:$0xff]
    %v394 = vld [vmem:[#allocation3 + $0x198] sm:$0xff]
    %v395 = vld [vmem:[#allocation3 + $0x1a0] sm:$0xff]
    %v396 = vld [vmem:[#allocation3 + $0x1a8] sm:$0xff]
    %v397 = vld [vmem:[#allocation3 + $0x1b0] sm:$0xff]
    %v398 = vld [vmem:[#allocation3 + $0x1b8] sm:$0xff]
    %v399 = vld [vmem:[#allocation3 + $0x1c0] sm:$0xff]
    %v400 = vld [vmem:[#allocation3 + $0x1c8] sm:$0xff]
    %v401 = vld [vmem:[#allocation3 + $0x1d0] sm:$0xff]
    %v402 = vld [vmem:[#allocation3 + $0x1d8] sm:$0xff]
    %v403 = vld [vmem:[#allocation3 + $0x1e0] sm:$0xff]
    %v404 = vld [vmem:[#allocation3 + $0x1e8] sm:$0xff]
    %v405 = vld [vmem:[#allocation3 + $0x1f0] sm:$0xff]
    %v406 = vld [vmem:[#allocation3 + $0x1f8] sm:$0xff]
    %v407 = vld [vmem:[#allocation3 + $0x200] sm:$0xff]
    %v408 = vld [vmem:[#allocation3 + $0x208] sm:$0xff]
    %v409 = vld [vmem:[#allocation3 + $0x210] sm:$0xff]
    %v410 = vld [vmem:[#allocation3 + $0x218] sm:$0xff]
    %v411 = vld [vmem:[#allocation3 + $0x220] sm:$0xff]
    %v412 = vld [vmem:[#allocation3 + $0x228] sm:$0xff]
    %v413 = vld [vmem:[#allocation3 + $0x230] sm:$0xff]
    %v414 = vld [vmem:[#allocation3 + $0x238] sm:$0xff]
    %v415 = vld [vmem:[#allocation3 + $0x240] sm:$0xff]
    %v416 = vld [vmem:[#allocation3 + $0x248] sm:$0xff]
    %v417 = vld [vmem:[#allocation3 + $0x250] sm:$0xff]
    %v418 = vld [vmem:[#allocation3 + $0x258] sm:$0xff]
    %v419 = vld [vmem:[#allocation3 + $0x260] sm:$0xff]
    %v420 = vld [vmem:[#allocation3 + $0x268] sm:$0xff]
    %v421 = vld [vmem:[#allocation3 + $0x270] sm:$0xff]
    %v422 = vld [vmem:[#allocation3 + $0x278] sm:$0xff]
    %v423 = vld [vmem:[#allocation3 + $0x280] sm:$0xff]
    %v424 = vld [vmem:[#allocation3 + $0x288] sm:$0xff]
    %v425 = vld [vmem:[#allocation3 + $0x290] sm:$0xff]
    %v426 = vld [vmem:[#allocation3 + $0x298] sm:$0xff]
    %v427 = vld [vmem:[#allocation3 + $0x2a0] sm:$0xff]
    %v428 = vld [vmem:[#allocation3 + $0x2a8] sm:$0xff]
    %v429 = vld [vmem:[#allocation3 + $0x2b0] sm:$0xff]
    %v430 = vld [vmem:[#allocation3 + $0x2b8] sm:$0xff]
    %v431 = vld [vmem:[#allocation3 + $0x2c0] sm:$0xff]
    %v432 = vld [vmem:[#allocation3 + $0x2c8] sm:$0xff]
    %v433 = vld [vmem:[#allocation3 + $0x2d0] sm:$0xff]
    %v434 = vld [vmem:[#allocation3 + $0x2d8] sm:$0xff]
    %v435 = vld [vmem:[#allocation3 + $0x2e0] sm:$0xff]
    %v436 = vld [vmem:[#allocation3 + $0x2e8] sm:$0xff]
    %v437 = vld [vmem:[#allocation3 + $0x2f0] sm:$0xff]
    %v438 = vld [vmem:[#allocation3 + $0x2f8] sm:$0xff]
    %v439 = vld [vmem:[#allocation3 + $0x300] sm:$0xff]
    %v440 = vld [vmem:[#allocation3 + $0x308] sm:$0xff]
    %v441 = vld [vmem:[#allocation3 + $0x310] sm:$0xff]
    %v442 = vld [vmem:[#allocation3 + $0x318] sm:$0xff]
    %v443 = vld [vmem:[#allocation3 + $0x320] sm:$0xff]
    %v444 = vld [vmem:[#allocation3 + $0x328] sm:$0xff]
    %v445 = vld [vmem:[#allocation3 + $0x330] sm:$0xff]
    %v446 = vld [vmem:[#allocation3 + $0x338] sm:$0xff]
    %v447 = vld [vmem:[#allocation3 + $0x340] sm:$0xff]
    %v448 = vld [vmem:[#allocation3 + $0x348] sm:$0xff]
    %v449 = vld [vmem:[#allocation3 + $0x350] sm:$0xff]
    %v450 = vld [vmem:[#allocation3 + $0x358] sm:$0xff]
    %v451 = vld [vmem:[#allocation3 + $0x360] sm:$0xff]
    %v452 = vld [vmem:[#allocation3 + $0x368] sm:$0xff]
    %v453 = vld [vmem:[#allocation3 + $0x370] sm:$0xff]
    %v454 = vld [vmem:[#allocation3 + $0x378] sm:$0xff]
    %v455 = vld [vmem:[#allocation3 + $0x380] sm:$0xff]
    %v456 = vld [vmem:[#allocation3 + $0x388] sm:$0xff]
    %v457 = vld [vmem:[#allocation3 + $0x390] sm:$0xff]
    %v458 = vld [vmem:[#allocation3 + $0x398] sm:$0xff]
    %v459 = vld [vmem:[#allocation3 + $0x3a0] sm:$0xff]
    %v460 = vld [vmem:[#allocation3 + $0x3a8] sm:$0xff]
    %v461 = vld [vmem:[#allocation3 + $0x3b0] sm:$0xff]
    %v462 = vld [vmem:[#allocation3 + $0x3b8] sm:$0xff]
    %v463 = vld [vmem:[#allocation3 + $0x3c0] sm:$0xff]
    %v464 = vld [vmem:[#allocation3 + $0x3c8] sm:$0xff]
    %v465 = vld [vmem:[#allocation3 + $0x3d0] sm:$0xff]
    %v466 = vld [vmem:[#allocation3 + $0x3d8] sm:$0xff]
    %v467 = vld [vmem:[#allocation3 + $0x3e0] sm:$0xff]
    %v468 = vld [vmem:[#allocation3 + $0x3e8] sm:$0xff]
    %v469 = vld [vmem:[#allocation3 + $0x3f0] sm:$0xff]
    %v470 = vld [vmem:[#allocation3 + $0x3f8] sm:$0xff]
    %v471 = vld [vmem:[#allocation3 + $0x400] sm:$0xff]
    %v472 = vld [vmem:[#allocation3 + $0x408] sm:$0xff]
    %v473 = vld [vmem:[#allocation3 + $0x410] sm:$0xff]
    %v474 = vld [vmem:[#allocation3 + $0x418] sm:$0xff]
    %v475 = vld [vmem:[#allocation3 + $0x420] sm:$0xff]
    %v476 = vld [vmem:[#allocation3 + $0x428] sm:$0xff]
    %v477 = vld [vmem:[#allocation3 + $0x430] sm:$0xff]
    %v478 = vld [vmem:[#allocation3 + $0x438] sm:$0xff]
    %v479 = vld [vmem:[#allocation3 + $0x440] sm:$0xff]
    %v480 = vld [vmem:[#allocation3 + $0x448] sm:$0xff]
    %v481 = vld [vmem:[#allocation3 + $0x450] sm:$0xff]
    %v482 = vld [vmem:[#allocation3 + $0x458] sm:$0xff]
    %v483 = vld [vmem:[#allocation3 + $0x460] sm:$0xff]
    %v484 = vld [vmem:[#allocation3 + $0x468] sm:$0xff]
    %v485 = vld [vmem:[#allocation3 + $0x470] sm:$0xff]
    %v486 = vld [vmem:[#allocation3 + $0x478] sm:$0xff]
    %v487 = vld [vmem:[#allocation3 + $0x480] sm:$0xff]
    %v488 = vld [vmem:[#allocation3 + $0x488] sm:$0xff]
    %v489 = vld [vmem:[#allocation3 + $0x490] sm:$0xff]
    %v490 = vld [vmem:[#allocation3 + $0x498] sm:$0xff]
    %v491 = vld [vmem:[#allocation3 + $0x4a0] sm:$0xff]
    %v492 = vld [vmem:[#allocation3 + $0x4a8] sm:$0xff]
    %v493 = vld [vmem:[#allocation3 + $0x4b0] sm:$0xff]
    %v494 = vld [vmem:[#allocation3 + $0x4b8] sm:$0xff]
    %v495 = vld [vmem:[#allocation3 + $0x4c0] sm:$0xff]
    %v496 = vld [vmem:[#allocation3 + $0x4c8] sm:$0xff]
    %v497 = vld [vmem:[#allocation3 + $0x4d0] sm:$0xff]
    %v498 = vld [vmem:[#allocation3 + $0x4d8] sm:$0xff]
    %v499 = vld [vmem:[#allocation3 + $0x4e0] sm:$0xff]
    %v500 = vld [vmem:[#allocation3 + $0x4e8] sm:$0xff]
    %v501 = vld [vmem:[#allocation3 + $0x4f0] sm:$0xff]
    %v502 = vld [vmem:[#allocation3 + $0x4f8] sm:$0xff]
    %v503 = vld [vmem:[#allocation3 + $0x500] sm:$0xff]
    %v504 = vld [vmem:[#allocation3 + $0x508] sm:$0xff]
    %v505 = vld [vmem:[#allocation3 + $0x510] sm:$0xff]
    %v506 = vld [vmem:[#allocation3 + $0x518] sm:$0xff]
    %v507 = vld [vmem:[#allocation3 + $0x520] sm:$0xff]
    %v508 = vld [vmem:[#allocation3 + $0x528] sm:$0xff]
    %v509 = vld [vmem:[#allocation3 + $0x530] sm:$0xff]
    %v510 = vld [vmem:[#allocation3 + $0x538] sm:$0xff]
    %v511 = vld [vmem:[#allocation3 + $0x540] sm:$0xff]
    %v512 = vld [vmem:[#allocation3 + $0x548] sm:$0xff]
    %v513 = vld [vmem:[#allocation3 + $0x550] sm:$0xff]
    %v514 = vld [vmem:[#allocation3 + $0x558] sm:$0xff]
    %v515 = vld [vmem:[#allocation3 + $0x560] sm:$0xff]
    %v516 = vld [vmem:[#allocation3 + $0x568] sm:$0xff]
    %v517 = vld [vmem:[#allocation3 + $0x570] sm:$0xff]
    %v518 = vld [vmem:[#allocation3 + $0x578] sm:$0xff]
    %v519 = vld [vmem:[#allocation3 + $0x580] sm:$0xff]
    %v520 = vld [vmem:[#allocation3 + $0x588] sm:$0xff]
    %v521 = vld [vmem:[#allocation3 + $0x590] sm:$0xff]
    %v522 = vld [vmem:[#allocation3 + $0x598] sm:$0xff]
    %v523 = vld [vmem:[#allocation3 + $0x5a0] sm:$0xff]
    %v524 = vld [vmem:[#allocation3 + $0x5a8] sm:$0xff]
    %v525 = vld [vmem:[#allocation3 + $0x5b0] sm:$0xff]
    %v526 = vld [vmem:[#allocation3 + $0x5b8] sm:$0xff]
    %v527 = vld [vmem:[#allocation3 + $0x5c0] sm:$0xff]
    %v528 = vld [vmem:[#allocation3 + $0x5c8] sm:$0xff]
    %v529 = vld [vmem:[#allocation3 + $0x5d0] sm:$0xff]
    %v530 = vld [vmem:[#allocation3 + $0x5d8] sm:$0xff]
    %v531 = vld [vmem:[#allocation3 + $0x5e0] sm:$0xff]
    %v532 = vld [vmem:[#allocation3 + $0x5e8] sm:$0xff]
    %v533 = vld [vmem:[#allocation3 + $0x5f0] sm:$0xff]
    %v534 = vld [vmem:[#allocation3 + $0x5f8] sm:$0xff]
    %v535 = vld [vmem:[#allocation3 + $0x600] sm:$0xff]
    %v536 = vld [vmem:[#allocation3 + $0x608] sm:$0xff]
    %v537 = vld [vmem:[#allocation3 + $0x610] sm:$0xff]
    %v538 = vld [vmem:[#allocation3 + $0x618] sm:$0xff]
    %v539 = vld [vmem:[#allocation3 + $0x620] sm:$0xff]
    %v540 = vld [vmem:[#allocation3 + $0x628] sm:$0xff]
    %v541 = vld [vmem:[#allocation3 + $0x630] sm:$0xff]
    %v542 = vld [vmem:[#allocation3 + $0x638] sm:$0xff]
    %v543 = vld [vmem:[#allocation3 + $0x640] sm:$0xff]
    %v544 = vld [vmem:[#allocation3 + $0x648] sm:$0xff]
    %v545 = vld [vmem:[#allocation3 + $0x650] sm:$0xff]
    %v546 = vld [vmem:[#allocation3 + $0x658] sm:$0xff]
    %v547 = vld [vmem:[#allocation3 + $0x660] sm:$0xff]
    %v548 = vld [vmem:[#allocation3 + $0x668] sm:$0xff]
    %v549 = vld [vmem:[#allocation3 + $0x670] sm:$0xff]
    %v550 = vld [vmem:[#allocation3 + $0x678] sm:$0xff]
    %v551 = vld [vmem:[#allocation3 + $0x680] sm:$0xff]
    %v552 = vld [vmem:[#allocation3 + $0x688] sm:$0xff]
    %v553 = vld [vmem:[#allocation3 + $0x690] sm:$0xff]
    %v554 = vld [vmem:[#allocation3 + $0x698] sm:$0xff]
    %v555 = vld [vmem:[#allocation3 + $0x6a0] sm:$0xff]
    %v556 = vld [vmem:[#allocation3 + $0x6a8] sm:$0xff]
    %v557 = vld [vmem:[#allocation3 + $0x6b0] sm:$0xff]
    %v558 = vld [vmem:[#allocation3 + $0x6b8] sm:$0xff]
    %v559 = vld [vmem:[#allocation3 + $0x6c0] sm:$0xff]
    %v560 = vld [vmem:[#allocation3 + $0x6c8] sm:$0xff]
    %v561 = vld [vmem:[#allocation3 + $0x6d0] sm:$0xff]
    %v562 = vld [vmem:[#allocation3 + $0x6d8] sm:$0xff]
    %v563 = vld [vmem:[#allocation3 + $0x6e0] sm:$0xff]
    %v564 = vld [vmem:[#allocation3 + $0x6e8] sm:$0xff]
    %v565 = vld [vmem:[#allocation3 + $0x6f0] sm:$0xff]
    %v566 = vld [vmem:[#allocation3 + $0x6f8] sm:$0xff]
    %v567 = vld [vmem:[%s4] sm:$0xff]
    %v569 = vlaneseq
    %v570 = vshrl.u32 %v569, 7
    %v571 = vsub.s32 0, %v570
    %v572 = vrot.slane %v567, %v571
    %v573 = vlaneseq
    %v574 = vshrl.u32 %v573, 7
    %v575 = vsub.s32 1, %v574
    %v576 = vrot.slane %v567, %v575
    %v577 = vlaneseq
    %v578 = vshrl.u32 %v577, 7
    %v579 = vsub.s32 2, %v578
    %v580 = vrot.slane %v567, %v579
    %v581 = vlaneseq
    %v582 = vshrl.u32 %v581, 7
    %v583 = vsub.s32 3, %v582
    %v584 = vrot.slane %v567, %v583
    %v585 = vlaneseq
    %v586 = vshrl.u32 %v585, 7
    %v587 = vsub.s32 4, %v586
    %v588 = vrot.slane %v567, %v587
    %v589 = vlaneseq
    %v590 = vshrl.u32 %v589, 7
    %v591 = vsub.s32 5, %v590
    %v592 = vrot.slane %v567, %v591
    %v593 = vlaneseq
    %v594 = vshrl.u32 %v593, 7
    %v595 = vsub.s32 6, %v594
    %v596 = vrot.slane %v567, %v595
    %604 = vmatprep.subr.mxu0 %v449
    %605 = vmatpush1.msra.mxu0 %v448
    %606 = vmatprep.subr.mxu0 %v442
    %607 = vmatpush1.msra.mxu0 %v441
    %608 = vmatprep.subr.mxu0 %v435
    %609 = vmatpush1.msra.mxu0 %v434
    %610 = vmatprep.subr.mxu0 %v428
    %611 = vmatpush1.msra.mxu0 %v427
    %612 = vmatprep.subr.mxu0 %v421
    %613 = vmatpush1.msra.mxu0 %v420
    %614 = vmatprep.subr.mxu0 %v414
    %615 = vmatpush1.msra.mxu0 %v413
    %616 = vmatprep.subr.mxu0 %v407
    %617 = vmatpush1.msra.mxu0 %v406
    %618 = vmatprep.subr.mxu0 %v400
    %619 = vmatpush1.msra.mxu0 %v399
    %620 = vmatprep.subr.mxu0 %v393
    %621 = vmatpush1.msra.mxu0 %v392
    %622 = vmatprep.subr.mxu0 %v386
    %623 = vmatpush1.msra.mxu0 %v385
    %624 = vmatprep.subr.mxu0 %v379
    %625 = vmatpush1.msra.mxu0 %v378
    %626 = vmatprep.subr.mxu0 %v372
    %627 = vmatpush1.msra.mxu0 %v371
    %628 = vmatprep.subr.mxu0 %v365
    %629 = vmatpush1.msra.mxu0 %v364
    %630 = vmatprep.subr.mxu0 %v358
    %631 = vmatpush1.msra.mxu0 %v357
    %632 = vmatprep.subr.mxu0 %v351
    %633 = vmatpush1.msra.mxu0 %v350
    %634 = vmatprep.subr.mxu0 %v344
    %635 = vmatpush1.msra.mxu0 %v343
    %636 = vmatprep.subr.mxu0 %v561
    %637 = vmatpush2.msra.mxu0 %v560
    %638 = vmatprep.subr.mxu0 %v554
    %639 = vmatpush2.msra.mxu0 %v553
    %640 = vmatprep.subr.mxu0 %v547
    %641 = vmatpush2.msra.mxu0 %v546
    %642 = vmatprep.subr.mxu0 %v540
    %643 = vmatpush2.msra.mxu0 %v539
    %644 = vmatprep.subr.mxu0 %v533
    %645 = vmatpush2.msra.mxu0 %v532
    %646 = vmatprep.subr.mxu0 %v526
    %647 = vmatpush2.msra.mxu0 %v525
    %648 = vmatprep.subr.mxu0 %v519
    %649 = vmatpush2.msra.mxu0 %v518
    %650 = vmatprep.subr.mxu0 %v512
    %651 = vmatpush2.msra.mxu0 %v511
    %652 = vmatprep.subr.mxu0 %v505
    %653 = vmatpush2.msra.mxu0 %v504
    %654 = vmatprep.subr.mxu0 %v498
    %655 = vmatpush2.msra.mxu0 %v497
    %656 = vmatprep.subr.mxu0 %v491
    %657 = vmatpush2.msra.mxu0 %v490
    %658 = vmatprep.subr.mxu0 %v484
    %659 = vmatpush2.msra.mxu0 %v483
    %660 = vmatprep.subr.mxu0 %v477
    %661 = vmatpush2.msra.mxu0 %v476
    %662 = vmatprep.subr.mxu0 %v470
    %663 = vmatpush2.msra.mxu0 %v469
    %664 = vmatprep.subr.mxu0 %v463
    %665 = vmatpush2.msra.mxu0 %v462
    %666 = vmatprep.subr.mxu0 %v456
    %667 = vmatpush2.msra.mxu0 %v455
    %668 = vmatprep.mubr.f32.mxu0 %v312
    %669 = vmatmul.mubr.f32.gmra.mxu0 %v311
    %v670 = vpop.f32.mrf.mxu0
    %v671 = vadd.f32 %v572, %v670
    %v672 = vpop.f32.mrf.mxu0
    %v673 = vadd.f32 %v576, %v672
    %674 = vmatprep.mubr.f32.mxu0 %v314
    %675 = vmatmul.mubr.f32.gmra.mxu0 %v313
    %v676 = vpop.f32.mrf.mxu0
    %v677 = vadd.f32 %v572, %v676
    %v678 = vpop.f32.mrf.mxu0
    %v679 = vadd.f32 %v576, %v678
    %680 = vmatprep.mubr.f32.mxu0 %v316
    %681 = vmatmul.mubr.f32.gmra.mxu0 %v315
    %v682 = vpop.f32.mrf.mxu0
    %v683 = vadd.f32 %v572, %v682
    %v684 = vpop.f32.mrf.mxu0
    %v685 = vadd.f32 %v576, %v684
    %686 = vmatprep.mubr.f32.mxu0 %v318
    %687 = vmatmul.mubr.f32.gmra.mxu0 %v317
    %v688 = vpop.f32.mrf.mxu0
    %v689 = vadd.f32 %v572, %v688
    %v690 = vpop.f32.mrf.mxu0
    %v691 = vadd.f32 %v576, %v690
    %692 = vmatprep.mubr.f32.mxu0 %v320
    %693 = vmatmul.mubr.f32.gmra.mxu0 %v319
    %v694 = vpop.f32.mrf.mxu0
    %v695 = vadd.f32 %v572, %v694
    %v696 = vpop.f32.mrf.mxu0
    %v697 = vadd.f32 %v576, %v696
    %698 = vmatprep.mubr.f32.mxu0 %v322
    %699 = vmatmul.mubr.f32.gmra.mxu0 %v321
    %v700 = vpop.f32.mrf.mxu0
    %v701 = vadd.f32 %v572, %v700
    %v702 = vpop.f32.mrf.mxu0
    %v703 = vadd.f32 %v576, %v702
    %704 = vmatprep.mubr.f32.mxu0 %v324
    %705 = vmatmul.mubr.f32.gmra.mxu0 %v323
    %v706 = vpop.f32.mrf.mxu0
    %v707 = vadd.f32 %v572, %v706
    %v708 = vpop.f32.mrf.mxu0
    %v709 = vadd.f32 %v576, %v708
    %710 = vmatprep.mubr.f32.mxu0 %v326
    %711 = vmatmul.mubr.f32.gmra.mxu0 %v325
    %v712 = vpop.f32.mrf.mxu0
    %v713 = vadd.f32 %v572, %v712
    %v714 = vpop.f32.mrf.mxu0
    %v715 = vadd.f32 %v576, %v714
    %716 = vmatprep.mubr.f32.mxu0 %v328
    %717 = vmatmul.mubr.f32.gmra.mxu0 %v327
    %v718 = vpop.f32.mrf.mxu0
    %v719 = vadd.f32 %v572, %v718
    %v720 = vpop.f32.mrf.mxu0
    %v721 = vadd.f32 %v576, %v720
    %722 = vmatprep.mubr.f32.mxu0 %v330
    %723 = vmatmul.mubr.f32.gmra.mxu0 %v329
    %v724 = vpop.f32.mrf.mxu0
    %v725 = vadd.f32 %v572, %v724
    %v726 = vpop.f32.mrf.mxu0
    %v727 = vadd.f32 %v576, %v726
    %728 = vmatprep.mubr.f32.mxu0 %v332
    %729 = vmatmul.mubr.f32.gmra.mxu0 %v331
    %v730 = vpop.f32.mrf.mxu0
    %v731 = vadd.f32 %v572, %v730
    %v732 = vpop.f32.mrf.mxu0
    %v733 = vadd.f32 %v576, %v732
    %734 = vmatprep.mubr.f32.mxu0 %v334
    %735 = vmatmul.mubr.f32.gmra.mxu0 %v333
    %v736 = vpop.f32.mrf.mxu0
    %v737 = vadd.f32 %v572, %v736
    %v738 = vpop.f32.mrf.mxu0
    %v739 = vadd.f32 %v576, %v738
    %740 = vmatprep.mubr.f32.mxu0 %v336
    %741 = vmatmul.mubr.f32.gmra.mxu0 %v335
    %v742 = vpop.f32.mrf.mxu0
    %v743 = vadd.f32 %v572, %v742
    %v744 = vpop.f32.mrf.mxu0
    %v745 = vadd.f32 %v576, %v744
    %746 = vmatprep.mubr.f32.mxu0 %v338
    %747 = vmatmul.mubr.f32.gmra.mxu0 %v337
    %v748 = vpop.f32.mrf.mxu0
    %v749 = vadd.f32 %v572, %v748
    %v750 = vpop.f32.mrf.mxu0
    %v751 = vadd.f32 %v576, %v750
    %752 = vmatprep.mubr.f32.mxu0 %v340
    %753 = vmatmul.mubr.f32.gmra.mxu0 %v339
    %v754 = vpop.f32.mrf.mxu0
    %v755 = vadd.f32 %v572, %v754
    %v756 = vpop.f32.mrf.mxu0
    %v757 = vadd.f32 %v576, %v756
    %758 = vmatprep.mubr.f32.mxu0 %v342
    %759 = vmatmul.mubr.f32.gmra.mxu0 %v341
    %v760 = vpop.f32.mrf.mxu0
    %v761 = vadd.f32 %v572, %v760
    %v762 = vpop.f32.mrf.mxu0
    %v763 = vadd.f32 %v576, %v762
    %764 = vdwg.mxu0
    %765 = vmatprep.subr.mxu0 %v451
    %766 = vmatpush1.msra.mxu0 %v450
    %767 = vmatprep.subr.mxu0 %v444
    %768 = vmatpush1.msra.mxu0 %v443
    %769 = vmatprep.subr.mxu0 %v437
    %770 = vmatpush1.msra.mxu0 %v436
    %771 = vmatprep.subr.mxu0 %v430
    %772 = vmatpush1.msra.mxu0 %v429
    %773 = vmatprep.subr.mxu0 %v423
    %774 = vmatpush1.msra.mxu0 %v422
    %775 = vmatprep.subr.mxu0 %v416
    %776 = vmatpush1.msra.mxu0 %v415
    %777 = vmatprep.subr.mxu0 %v409
    %778 = vmatpush1.msra.mxu0 %v408
    %779 = vmatprep.subr.mxu0 %v402
    %780 = vmatpush1.msra.mxu0 %v401
    %781 = vmatprep.subr.mxu0 %v395
    %782 = vmatpush1.msra.mxu0 %v394
    %783 = vmatprep.subr.mxu0 %v388
    %784 = vmatpush1.msra.mxu0 %v387
    %785 = vmatprep.subr.mxu0 %v381
    %786 = vmatpush1.msra.mxu0 %v380
    %787 = vmatprep.subr.mxu0 %v374
    %788 = vmatpush1.msra.mxu0 %v373
    %789 = vmatprep.subr.mxu0 %v367
    %790 = vmatpush1.msra.mxu0 %v366
    %791 = vmatprep.subr.mxu0 %v360
    %792 = vmatpush1.msra.mxu0 %v359
    %793 = vmatprep.subr.mxu0 %v353
    %794 = vmatpush1.msra.mxu0 %v352
    %795 = vmatprep.subr.mxu0 %v346
    %796 = vmatpush1.msra.mxu0 %v345
    %797 = vmatprep.subr.mxu0 %v563
    %798 = vmatpush2.msra.mxu0 %v562
    %799 = vmatprep.subr.mxu0 %v556
    %800 = vmatpush2.msra.mxu0 %v555
    %801 = vmatprep.subr.mxu0 %v549
    %802 = vmatpush2.msra.mxu0 %v548
    %803 = vmatprep.subr.mxu0 %v542
    %804 = vmatpush2.msra.mxu0 %v541
    %805 = vmatprep.subr.mxu0 %v535
    %806 = vmatpush2.msra.mxu0 %v534
    %807 = vmatprep.subr.mxu0 %v528
    %808 = vmatpush2.msra.mxu0 %v527
    %809 = vmatprep.subr.mxu0 %v521
    %810 = vmatpush2.msra.mxu0 %v520
    %811 = vmatprep.subr.mxu0 %v514
    %812 = vmatpush2.msra.mxu0 %v513
    %813 = vmatprep.subr.mxu0 %v507
    %814 = vmatpush2.msra.mxu0 %v506
    %815 = vmatprep.subr.mxu0 %v500
    %816 = vmatpush2.msra.mxu0 %v499
    %817 = vmatprep.subr.mxu0 %v493
    %818 = vmatpush2.msra.mxu0 %v492
    %819 = vmatprep.subr.mxu0 %v486
    %820 = vmatpush2.msra.mxu0 %v485
    %821 = vmatprep.subr.mxu0 %v479
    %822 = vmatpush2.msra.mxu0 %v478
    %823 = vmatprep.subr.mxu0 %v472
    %824 = vmatpush2.msra.mxu0 %v471
    %825 = vmatprep.subr.mxu0 %v465
    %826 = vmatpush2.msra.mxu0 %v464
    %827 = vmatprep.subr.mxu0 %v458
    %828 = vmatpush2.msra.mxu0 %v457
    %829 = vmatprep.mubr.f32.mxu0 %v312
    %830 = vmatmul.mubr.f32.gmra.mxu0 %v311
    %v831 = vpop.f32.mrf.mxu0
    %v832 = vadd.f32 %v580, %v831
    %v833 = vpop.f32.mrf.mxu0
    %v834 = vadd.f32 %v584, %v833
    %835 = vmatprep.mubr.f32.mxu0 %v314
    %836 = vmatmul.mubr.f32.gmra.mxu0 %v313
    %v837 = vpop.f32.mrf.mxu0
    %v838 = vadd.f32 %v580, %v837
    %v839 = vpop.f32.mrf.mxu0
    %v840 = vadd.f32 %v584, %v839
    %841 = vmatprep.mubr.f32.mxu0 %v316
    %842 = vmatmul.mubr.f32.gmra.mxu0 %v315
    %v843 = vpop.f32.mrf.mxu0
    %v844 = vadd.f32 %v580, %v843
    %v845 = vpop.f32.mrf.mxu0
    %v846 = vadd.f32 %v584, %v845
    %847 = vmatprep.mubr.f32.mxu0 %v318
    %848 = vmatmul.mubr.f32.gmra.mxu0 %v317
    %v849 = vpop.f32.mrf.mxu0
    %v850 = vadd.f32 %v580, %v849
    %v851 = vpop.f32.mrf.mxu0
    %v852 = vadd.f32 %v584, %v851
    %853 = vmatprep.mubr.f32.mxu0 %v320
    %854 = vmatmul.mubr.f32.gmra.mxu0 %v319
    %v855 = vpop.f32.mrf.mxu0
    %v856 = vadd.f32 %v580, %v855
    %v857 = vpop.f32.mrf.mxu0
    %v858 = vadd.f32 %v584, %v857
    %859 = vmatprep.mubr.f32.mxu0 %v322
    %860 = vmatmul.mubr.f32.gmra.mxu0 %v321
    %v861 = vpop.f32.mrf.mxu0
    %v862 = vadd.f32 %v580, %v861
    %v863 = vpop.f32.mrf.mxu0
    %v864 = vadd.f32 %v584, %v863
    %865 = vmatprep.mubr.f32.mxu0 %v324
    %866 = vmatmul.mubr.f32.gmra.mxu0 %v323
    %v867 = vpop.f32.mrf.mxu0
    %v868 = vadd.f32 %v580, %v867
    %v869 = vpop.f32.mrf.mxu0
    %v870 = vadd.f32 %v584, %v869
    %871 = vmatprep.mubr.f32.mxu0 %v326
    %872 = vmatmul.mubr.f32.gmra.mxu0 %v325
    %v873 = vpop.f32.mrf.mxu0
    %v874 = vadd.f32 %v580, %v873
    %v875 = vpop.f32.mrf.mxu0
    %v876 = vadd.f32 %v584, %v875
    %877 = vmatprep.mubr.f32.mxu0 %v328
    %878 = vmatmul.mubr.f32.gmra.mxu0 %v327
    %v879 = vpop.f32.mrf.mxu0
    %v880 = vadd.f32 %v580, %v879
    %v881 = vpop.f32.mrf.mxu0
    %v882 = vadd.f32 %v584, %v881
    %883 = vmatprep.mubr.f32.mxu0 %v330
    %884 = vmatmul.mubr.f32.gmra.mxu0 %v329
    %v885 = vpop.f32.mrf.mxu0
    %v886 = vadd.f32 %v580, %v885
    %v887 = vpop.f32.mrf.mxu0
    %v888 = vadd.f32 %v584, %v887
    %889 = vmatprep.mubr.f32.mxu0 %v332
    %890 = vmatmul.mubr.f32.gmra.mxu0 %v331
    %v891 = vpop.f32.mrf.mxu0
    %v892 = vadd.f32 %v580, %v891
    %v893 = vpop.f32.mrf.mxu0
    %v894 = vadd.f32 %v584, %v893
    %895 = vmatprep.mubr.f32.mxu0 %v334
    %896 = vmatmul.mubr.f32.gmra.mxu0 %v333
    %v897 = vpop.f32.mrf.mxu0
    %v898 = vadd.f32 %v580, %v897
    %v899 = vpop.f32.mrf.mxu0
    %v900 = vadd.f32 %v584, %v899
    %901 = vmatprep.mubr.f32.mxu0 %v336
    %902 = vmatmul.mubr.f32.gmra.mxu0 %v335
    %v903 = vpop.f32.mrf.mxu0
    %v904 = vadd.f32 %v580, %v903
    %v905 = vpop.f32.mrf.mxu0
    %v906 = vadd.f32 %v584, %v905
    %907 = vmatprep.mubr.f32.mxu0 %v338
    %908 = vmatmul.mubr.f32.gmra.mxu0 %v337
    %v909 = vpop.f32.mrf.mxu0
    %v910 = vadd.f32 %v580, %v909
    %v911 = vpop.f32.mrf.mxu0
    %v912 = vadd.f32 %v584, %v911
    %913 = vmatprep.mubr.f32.mxu0 %v340
    %914 = vmatmul.mubr.f32.gmra.mxu0 %v339
    %v915 = vpop.f32.mrf.mxu0
    %v916 = vadd.f32 %v580, %v915
    %v917 = vpop.f32.mrf.mxu0
    %v918 = vadd.f32 %v584, %v917
    %919 = vmatprep.mubr.f32.mxu0 %v342
    %920 = vmatmul.mubr.f32.gmra.mxu0 %v341
    %v921 = vpop.f32.mrf.mxu0
    %v922 = vadd.f32 %v580, %v921
    %v923 = vpop.f32.mrf.mxu0
    %v924 = vadd.f32 %v584, %v923
    %925 = vdwg.mxu0
    %926 = vmatprep.subr.mxu0 %v453
    %927 = vmatpush1.msra.mxu0 %v452
    %928 = vmatprep.subr.mxu0 %v446
    %929 = vmatpush1.msra.mxu0 %v445
    %930 = vmatprep.subr.mxu0 %v439
    %931 = vmatpush1.msra.mxu0 %v438
    %932 = vmatprep.subr.mxu0 %v432
    %933 = vmatpush1.msra.mxu0 %v431
    %934 = vmatprep.subr.mxu0 %v425
    %935 = vmatpush1.msra.mxu0 %v424
    %936 = vmatprep.subr.mxu0 %v418
    %937 = vmatpush1.msra.mxu0 %v417
    %938 = vmatprep.subr.mxu0 %v411
    %939 = vmatpush1.msra.mxu0 %v410
    %940 = vmatprep.subr.mxu0 %v404
    %941 = vmatpush1.msra.mxu0 %v403
    %942 = vmatprep.subr.mxu0 %v397
    %943 = vmatpush1.msra.mxu0 %v396
    %944 = vmatprep.subr.mxu0 %v390
    %945 = vmatpush1.msra.mxu0 %v389
    %946 = vmatprep.subr.mxu0 %v383
    %947 = vmatpush1.msra.mxu0 %v382
    %948 = vmatprep.subr.mxu0 %v376
    %949 = vmatpush1.msra.mxu0 %v375
    %950 = vmatprep.subr.mxu0 %v369
    %951 = vmatpush1.msra.mxu0 %v368
    %952 = vmatprep.subr.mxu0 %v362
    %953 = vmatpush1.msra.mxu0 %v361
    %954 = vmatprep.subr.mxu0 %v355
    %955 = vmatpush1.msra.mxu0 %v354
    %956 = vmatprep.subr.mxu0 %v348
    %957 = vmatpush1.msra.mxu0 %v347
    %958 = vmatprep.subr.mxu0 %v565
    %959 = vmatpush2.msra.mxu0 %v564
    %960 = vmatprep.subr.mxu0 %v558
    %961 = vmatpush2.msra.mxu0 %v557
    %962 = vmatprep.subr.mxu0 %v551
    %963 = vmatpush2.msra.mxu0 %v550
    %964 = vmatprep.subr.mxu0 %v544
    %965 = vmatpush2.msra.mxu0 %v543
    %966 = vmatprep.subr.mxu0 %v537
    %967 = vmatpush2.msra.mxu0 %v536
    %968 = vmatprep.subr.mxu0 %v530
    %969 = vmatpush2.msra.mxu0 %v529
    %970 = vmatprep.subr.mxu0 %v523
    %971 = vmatpush2.msra.mxu0 %v522
    %972 = vmatprep.subr.mxu0 %v516
    %973 = vmatpush2.msra.mxu0 %v515
    %974 = vmatprep.subr.mxu0 %v509
    %975 = vmatpush2.msra.mxu0 %v508
    %976 = vmatprep.subr.mxu0 %v502
    %977 = vmatpush2.msra.mxu0 %v501
    %978 = vmatprep.subr.mxu0 %v495
    %979 = vmatpush2.msra.mxu0 %v494
    %980 = vmatprep.subr.mxu0 %v488
    %981 = vmatpush2.msra.mxu0 %v487
    %982 = vmatprep.subr.mxu0 %v481
    %983 = vmatpush2.msra.mxu0 %v480
    %984 = vmatprep.subr.mxu0 %v474
    %985 = vmatpush2.msra.mxu0 %v473
    %986 = vmatprep.subr.mxu0 %v467
    %987 = vmatpush2.msra.mxu0 %v466
    %988 = vmatprep.subr.mxu0 %v460
    %989 = vmatpush2.msra.mxu0 %v459
    %990 = vmatprep.mubr.f32.mxu0 %v312
    %991 = vmatmul.mubr.f32.gmra.mxu0 %v311
    %v992 = vpop.f32.mrf.mxu0
    %v993 = vadd.f32 %v588, %v992
    %v994 = vpop.f32.mrf.mxu0
    %v995 = vadd.f32 %v592, %v994
    %996 = vmatprep.mubr.f32.mxu0 %v314
    %997 = vmatmul.mubr.f32.gmra.mxu0 %v313
    %v998 = vpop.f32.mrf.mxu0
    %v999 = vadd.f32 %v588, %v998
    %v1000 = vpop.f32.mrf.mxu0
    %v1001 = vadd.f32 %v592, %v1000
    %1002 = vmatprep.mubr.f32.mxu0 %v316
    %1003 = vmatmul.mubr.f32.gmra.mxu0 %v315
    %v1004 = vpop.f32.mrf.mxu0
    %v1005 = vadd.f32 %v588, %v1004
    %v1006 = vpop.f32.mrf.mxu0
    %v1007 = vadd.f32 %v592, %v1006
    %1008 = vmatprep.mubr.f32.mxu0 %v318
    %1009 = vmatmul.mubr.f32.gmra.mxu0 %v317
    %v1010 = vpop.f32.mrf.mxu0
    %v1011 = vadd.f32 %v588, %v1010
    %v1012 = vpop.f32.mrf.mxu0
    %v1013 = vadd.f32 %v592, %v1012
    %1014 = vmatprep.mubr.f32.mxu0 %v320
    %1015 = vmatmul.mubr.f32.gmra.mxu0 %v319
    %v1016 = vpop.f32.mrf.mxu0
    %v1017 = vadd.f32 %v588, %v1016
    %v1018 = vpop.f32.mrf.mxu0
    %v1019 = vadd.f32 %v592, %v1018
    %1020 = vmatprep.mubr.f32.mxu0 %v322
    %1021 = vmatmul.mubr.f32.gmra.mxu0 %v321
    %v1022 = vpop.f32.mrf.mxu0
    %v1023 = vadd.f32 %v588, %v1022
    %v1024 = vpop.f32.mrf.mxu0
    %v1025 = vadd.f32 %v592, %v1024
    %1026 = vmatprep.mubr.f32.mxu0 %v324
    %1027 = vmatmul.mubr.f32.gmra.mxu0 %v323
    %v1028 = vpop.f32.mrf.mxu0
    %v1029 = vadd.f32 %v588, %v1028
    %v1030 = vpop.f32.mrf.mxu0
    %v1031 = vadd.f32 %v592, %v1030
    %1032 = vmatprep.mubr.f32.mxu0 %v326
    %1033 = vmatmul.mubr.f32.gmra.mxu0 %v325
    %v1034 = vpop.f32.mrf.mxu0
    %v1035 = vadd.f32 %v588, %v1034
    %v1036 = vpop.f32.mrf.mxu0
    %v1037 = vadd.f32 %v592, %v1036
    %1038 = vmatprep.mubr.f32.mxu0 %v328
    %1039 = vmatmul.mubr.f32.gmra.mxu0 %v327
    %v1040 = vpop.f32.mrf.mxu0
    %v1041 = vadd.f32 %v588, %v1040
    %v1042 = vpop.f32.mrf.mxu0
    %v1043 = vadd.f32 %v592, %v1042
    %1044 = vmatprep.mubr.f32.mxu0 %v330
    %1045 = vmatmul.mubr.f32.gmra.mxu0 %v329
    %v1046 = vpop.f32.mrf.mxu0
    %v1047 = vadd.f32 %v588, %v1046
    %v1048 = vpop.f32.mrf.mxu0
    %v1049 = vadd.f32 %v592, %v1048
    %1050 = vmatprep.mubr.f32.mxu0 %v332
    %1051 = vmatmul.mubr.f32.gmra.mxu0 %v331
    %v1052 = vpop.f32.mrf.mxu0
    %v1053 = vadd.f32 %v588, %v1052
    %v1054 = vpop.f32.mrf.mxu0
    %v1055 = vadd.f32 %v592, %v1054
    %1056 = vmatprep.mubr.f32.mxu0 %v334
    %1057 = vmatmul.mubr.f32.gmra.mxu0 %v333
    %v1058 = vpop.f32.mrf.mxu0
    %v1059 = vadd.f32 %v588, %v1058
    %v1060 = vpop.f32.mrf.mxu0
    %v1061 = vadd.f32 %v592, %v1060
    %1062 = vmatprep.mubr.f32.mxu0 %v336
    %1063 = vmatmul.mubr.f32.gmra.mxu0 %v335
    %v1064 = vpop.f32.mrf.mxu0
    %v1065 = vadd.f32 %v588, %v1064
    %v1066 = vpop.f32.mrf.mxu0
    %v1067 = vadd.f32 %v592, %v1066
    %1068 = vmatprep.mubr.f32.mxu0 %v338
    %1069 = vmatmul.mubr.f32.gmra.mxu0 %v337
    %v1070 = vpop.f32.mrf.mxu0
    %v1071 = vadd.f32 %v588, %v1070
    %v1072 = vpop.f32.mrf.mxu0
    %v1073 = vadd.f32 %v592, %v1072
    %1074 = vmatprep.mubr.f32.mxu0 %v340
    %1075 = vmatmul.mubr.f32.gmra.mxu0 %v339
    %v1076 = vpop.f32.mrf.mxu0
    %v1077 = vadd.f32 %v588, %v1076
    %v1078 = vpop.f32.mrf.mxu0
    %v1079 = vadd.f32 %v592, %v1078
    %1080 = vmatprep.mubr.f32.mxu0 %v342
    %1081 = vmatmul.mubr.f32.gmra.mxu0 %v341
    %v1082 = vpop.f32.mrf.mxu0
    %v1083 = vadd.f32 %v588, %v1082
    %v1084 = vpop.f32.mrf.mxu0
    %v1085 = vadd.f32 %v592, %v1084
    %1086 = vdwg.mxu0
    %1087 = vmatprep.subr.mxu0 0.0
    %1088 = vmatpush1.msra.mxu0 %v454
    %1089 = vmatprep.subr.mxu0 0.0
    %1090 = vmatpush1.msra.mxu0 %v447
    %1091 = vmatprep.subr.mxu0 0.0
    %1092 = vmatpush1.msra.mxu0 %v440
    %1093 = vmatprep.subr.mxu0 0.0
    %1094 = vmatpush1.msra.mxu0 %v433
    %1095 = vmatprep.subr.mxu0 0.0
    %1096 = vmatpush1.msra.mxu0 %v426
    %1097 = vmatprep.subr.mxu0 0.0
    %1098 = vmatpush1.msra.mxu0 %v419
    %1099 = vmatprep.subr.mxu0 0.0
    %1100 = vmatpush1.msra.mxu0 %v412
    %1101 = vmatprep.subr.mxu0 0.0
    %1102 = vmatpush1.msra.mxu0 %v405
    %1103 = vmatprep.subr.mxu0 0.0
    %1104 = vmatpush1.msra.mxu0 %v398
    %1105 = vmatprep.subr.mxu0 0.0
    %1106 = vmatpush1.msra.mxu0 %v391
    %1107 = vmatprep.subr.mxu0 0.0
    %1108 = vmatpush1.msra.mxu0 %v384
    %1109 = vmatprep.subr.mxu0 0.0
    %1110 = vmatpush1.msra.mxu0 %v377
    %1111 = vmatprep.subr.mxu0 0.0
    %1112 = vmatpush1.msra.mxu0 %v370
    %1113 = vmatprep.subr.mxu0 0.0
    %1114 = vmatpush1.msra.mxu0 %v363
    %1115 = vmatprep.subr.mxu0 0.0
    %1116 = vmatpush1.msra.mxu0 %v356
    %1117 = vmatprep.subr.mxu0 0.0
    %1118 = vmatpush1.msra.mxu0 %v349
    %1119 = vmatprep.subr.mxu0 0.0
    %1120 = vmatpush2.msra.mxu0 %v566
    %1121 = vmatprep.subr.mxu0 0.0
    %1122 = vmatpush2.msra.mxu0 %v559
    %1123 = vmatprep.subr.mxu0 0.0
    %1124 = vmatpush2.msra.mxu0 %v552
    %1125 = vmatprep.subr.mxu0 0.0
    %1126 = vmatpush2.msra.mxu0 %v545
    %1127 = vmatprep.subr.mxu0 0.0
    %1128 = vmatpush2.msra.mxu0 %v538
    %1129 = vmatprep.subr.mxu0 0.0
    %1130 = vmatpush2.msra.mxu0 %v531
    %1131 = vmatprep.subr.mxu0 0.0
    %1132 = vmatpush2.msra.mxu0 %v524
    %1133 = vmatprep.subr.mxu0 0.0
    %1134 = vmatpush2.msra.mxu0 %v517
    %1135 = vmatprep.subr.mxu0 0.0
    %1136 = vmatpush2.msra.mxu0 %v510
    %1137 = vmatprep.subr.mxu0 0.0
    %1138 = vmatpush2.msra.mxu0 %v503
    %1139 = vmatprep.subr.mxu0 0.0
    %1140 = vmatpush2.msra.mxu0 %v496
    %1141 = vmatprep.subr.mxu0 0.0
    %1142 = vmatpush2.msra.mxu0 %v489
    %1143 = vmatprep.subr.mxu0 0.0
    %1144 = vmatpush2.msra.mxu0 %v482
    %1145 = vmatprep.subr.mxu0 0.0
    %1146 = vmatpush2.msra.mxu0 %v475
    %1147 = vmatprep.subr.mxu0 0.0
    %1148 = vmatpush2.msra.mxu0 %v468
    %1149 = vmatprep.subr.mxu0 0.0
    %1150 = vmatpush2.msra.mxu0 %v461
    %1151 = vmatprep.mubr.f32.mxu0 %v312
    %1152 = vmatmul.mubr.f32.gmra.mxu0 %v311
    %v1153 = vpop.f32.mrf.mxu0
    %v1154 = vadd.f32 %v596, %v1153
    %v1155 = vpop.f32.mrf.mxu0
    %1156 = vmatprep.mubr.f32.mxu0 %v314
    %1157 = vmatmul.mubr.f32.gmra.mxu0 %v313
    %v1158 = vpop.f32.mrf.mxu0
    %v1159 = vadd.f32 %v596, %v1158
    %v1160 = vpop.f32.mrf.mxu0
    %1161 = vmatprep.mubr.f32.mxu0 %v316
    %1162 = vmatmul.mubr.f32.gmra.mxu0 %v315
    %v1163 = vpop.f32.mrf.mxu0
    %v1164 = vadd.f32 %v596, %v1163
    %v1165 = vpop.f32.mrf.mxu0
    %1166 = vmatprep.mubr.f32.mxu0 %v318
    %1167 = vmatmul.mubr.f32.gmra.mxu0 %v317
    %v1168 = vpop.f32.mrf.mxu0
    %v1169 = vadd.f32 %v596, %v1168
    %v1170 = vpop.f32.mrf.mxu0
    %1171 = vmatprep.mubr.f32.mxu0 %v320
    %1172 = vmatmul.mubr.f32.gmra.mxu0 %v319
    %v1173 = vpop.f32.mrf.mxu0
    %v1174 = vadd.f32 %v596, %v1173
    %v1175 = vpop.f32.mrf.mxu0
    %1176 = vmatprep.mubr.f32.mxu0 %v322
    %1177 = vmatmul.mubr.f32.gmra.mxu0 %v321
    %v1178 = vpop.f32.mrf.mxu0
    %v1179 = vadd.f32 %v596, %v1178
    %v1180 = vpop.f32.mrf.mxu0
    %1181 = vmatprep.mubr.f32.mxu0 %v324
    %1182 = vmatmul.mubr.f32.gmra.mxu0 %v323
    %v1183 = vpop.f32.mrf.mxu0
    %v1184 = vadd.f32 %v596, %v1183
    %v1185 = vpop.f32.mrf.mxu0
    %1186 = vmatprep.mubr.f32.mxu0 %v326
    %1187 = vmatmul.mubr.f32.gmra.mxu0 %v325
    %v1188 = vpop.f32.mrf.mxu0
    %v1189 = vadd.f32 %v596, %v1188
    %v1190 = vpop.f32.mrf.mxu0
    %1191 = vmatprep.mubr.f32.mxu0 %v328
    %1192 = vmatmul.mubr.f32.gmra.mxu0 %v327
    %v1193 = vpop.f32.mrf.mxu0
    %v1194 = vadd.f32 %v596, %v1193
    %v1195 = vpop.f32.mrf.mxu0
    %1196 = vmatprep.mubr.f32.mxu0 %v330
    %1197 = vmatmul.mubr.f32.gmra.mxu0 %v329
    %v1198 = vpop.f32.mrf.mxu0
    %v1199 = vadd.f32 %v596, %v1198
    %v1200 = vpop.f32.mrf.mxu0
    %1201 = vmatprep.mubr.f32.mxu0 %v332
    %1202 = vmatmul.mubr.f32.gmra.mxu0 %v331
    %v1203 = vpop.f32.mrf.mxu0
    %v1204 = vadd.f32 %v596, %v1203
    %v1205 = vpop.f32.mrf.mxu0
    %1206 = vmatprep.mubr.f32.mxu0 %v334
    %1207 = vmatmul.mubr.f32.gmra.mxu0 %v333
    %v1208 = vpop.f32.mrf.mxu0
    %v1209 = vadd.f32 %v596, %v1208
    %v1210 = vpop.f32.mrf.mxu0
    %1211 = vmatprep.mubr.f32.mxu0 %v336
    %1212 = vmatmul.mubr.f32.gmra.mxu0 %v335
    %v1213 = vpop.f32.mrf.mxu0
    %v1214 = vadd.f32 %v596, %v1213
    %v1215 = vpop.f32.mrf.mxu0
    %1216 = vmatprep.mubr.f32.mxu0 %v338
    %1217 = vmatmul.mubr.f32.gmra.mxu0 %v337
    %v1218 = vpop.f32.mrf.mxu0
    %v1219 = vadd.f32 %v596, %v1218
    %v1220 = vpop.f32.mrf.mxu0
    %1221 = vmatprep.mubr.f32.mxu0 %v340
    %1222 = vmatmul.mubr.f32.gmra.mxu0 %v339
    %v1223 = vpop.f32.mrf.mxu0
    %v1224 = vadd.f32 %v596, %v1223
    %v1225 = vpop.f32.mrf.mxu0
    %1226 = vmatprep.mubr.f32.mxu0 %v342
    %1227 = vmatmul.mubr.f32.gmra.mxu0 %v341
    %v1228 = vpop.f32.mrf.mxu0
    %v1229 = vadd.f32 %v596, %v1228
    %v1230 = vpop.f32.mrf.mxu0
    %1231 = vdwg.mxu0
    %v1232 = vmax.f32 %v671, 0.0
    %v1233 = vmax.f32 %v673, 0.0
    %v1234 = vmax.f32 %v832, 0.0
    %v1235 = vmax.f32 %v834, 0.0
    %v1236 = vmax.f32 %v993, 0.0
    %v1237 = vmax.f32 %v995, 0.0
    %v1238 = vmax.f32 %v1154, 0.0
    %v1239 = vmax.f32 %v677, 0.0
    %v1240 = vmax.f32 %v679, 0.0
    %v1241 = vmax.f32 %v838, 0.0
    %v1242 = vmax.f32 %v840, 0.0
    %v1243 = vmax.f32 %v999, 0.0
    %v1244 = vmax.f32 %v1001, 0.0
    %v1245 = vmax.f32 %v1159, 0.0
    %v1246 = vmax.f32 %v683, 0.0
    %v1247 = vmax.f32 %v685, 0.0
    %v1248 = vmax.f32 %v844, 0.0
    %v1249 = vmax.f32 %v846, 0.0
    %v1250 = vmax.f32 %v1005, 0.0
    %v1251 = vmax.f32 %v1007, 0.0
    %v1252 = vmax.f32 %v1164, 0.0
    %v1253 = vmax.f32 %v689, 0.0
    %v1254 = vmax.f32 %v691, 0.0
    %v1255 = vmax.f32 %v850, 0.0
    %v1256 = vmax.f32 %v852, 0.0
    %v1257 = vmax.f32 %v1011, 0.0
    %v1258 = vmax.f32 %v1013, 0.0
    %v1259 = vmax.f32 %v1169, 0.0
    %v1260 = vmax.f32 %v695, 0.0
    %v1261 = vmax.f32 %v697, 0.0
    %v1262 = vmax.f32 %v856, 0.0
    %v1263 = vmax.f32 %v858, 0.0
    %v1264 = vmax.f32 %v1017, 0.0
    %v1265 = vmax.f32 %v1019, 0.0
    %v1266 = vmax.f32 %v1174, 0.0
    %v1267 = vmax.f32 %v701, 0.0
    %v1268 = vmax.f32 %v703, 0.0
    %v1269 = vmax.f32 %v862, 0.0
    %v1270 = vmax.f32 %v864, 0.0
    %v1271 = vmax.f32 %v1023, 0.0
    %v1272 = vmax.f32 %v1025, 0.0
    %v1273 = vmax.f32 %v1179, 0.0
    %v1274 = vmax.f32 %v707, 0.0
    %v1275 = vmax.f32 %v709, 0.0
    %v1276 = vmax.f32 %v868, 0.0
    %v1277 = vmax.f32 %v870, 0.0
    %v1278 = vmax.f32 %v1029, 0.0
    %v1279 = vmax.f32 %v1031, 0.0
    %v1280 = vmax.f32 %v1184, 0.0
    %v1281 = vmax.f32 %v713, 0.0
    %v1282 = vmax.f32 %v715, 0.0
    %v1283 = vmax.f32 %v874, 0.0
    %v1284 = vmax.f32 %v876, 0.0
    %v1285 = vmax.f32 %v1035, 0.0
    %v1286 = vmax.f32 %v1037, 0.0
    %v1287 = vmax.f32 %v1189, 0.0
    %v1288 = vmax.f32 %v719, 0.0
    %v1289 = vmax.f32 %v721, 0.0
    %v1290 = vmax.f32 %v880, 0.0
    %v1291 = vmax.f32 %v882, 0.0
    %v1292 = vmax.f32 %v1041, 0.0
    %v1293 = vmax.f32 %v1043, 0.0
    %v1294 = vmax.f32 %v1194, 0.0
    %v1295 = vmax.f32 %v725, 0.0
    %v1296 = vmax.f32 %v727, 0.0
    %v1297 = vmax.f32 %v886, 0.0
    %v1298 = vmax.f32 %v888, 0.0
    %v1299 = vmax.f32 %v1047, 0.0
    %v1300 = vmax.f32 %v1049, 0.0
    %v1301 = vmax.f32 %v1199, 0.0
    %v1302 = vmax.f32 %v731, 0.0
    %v1303 = vmax.f32 %v733, 0.0
    %v1304 = vmax.f32 %v892, 0.0
    %v1305 = vmax.f32 %v894, 0.0
    %v1306 = vmax.f32 %v1053, 0.0
    %v1307 = vmax.f32 %v1055, 0.0
    %v1308 = vmax.f32 %v1204, 0.0
    %v1309 = vmax.f32 %v737, 0.0
    %v1310 = vmax.f32 %v739, 0.0
    %v1311 = vmax.f32 %v898, 0.0
    %v1312 = vmax.f32 %v900, 0.0
    %v1313 = vmax.f32 %v1059, 0.0
    %v1314 = vmax.f32 %v1061, 0.0
    %v1315 = vmax.f32 %v1209, 0.0
    %v1316 = vmax.f32 %v743, 0.0
    %v1317 = vmax.f32 %v745, 0.0
    %v1318 = vmax.f32 %v904, 0.0
    %v1319 = vmax.f32 %v906, 0.0
    %v1320 = vmax.f32 %v1065, 0.0
    %v1321 = vmax.f32 %v1067, 0.0
    %v1322 = vmax.f32 %v1214, 0.0
    %v1323 = vmax.f32 %v749, 0.0
    %v1324 = vmax.f32 %v751, 0.0
    %v1325 = vmax.f32 %v910, 0.0
    %v1326 = vmax.f32 %v912, 0.0
    %v1327 = vmax.f32 %v1071, 0.0
    %v1328 = vmax.f32 %v1073, 0.0
    %v1329 = vmax.f32 %v1219, 0.0
    %v1330 = vmax.f32 %v755, 0.0
    %v1331 = vmax.f32 %v757, 0.0
    %v1332 = vmax.f32 %v916, 0.0
    %v1333 = vmax.f32 %v918, 0.0
    %v1334 = vmax.f32 %v1077, 0.0
    %v1335 = vmax.f32 %v1079, 0.0
    %v1336 = vmax.f32 %v1224, 0.0
    %v1337 = vmax.f32 %v761, 0.0
    %v1338 = vmax.f32 %v763, 0.0
    %v1339 = vmax.f32 %v922, 0.0
    %v1340 = vmax.f32 %v924, 0.0
    %v1341 = vmax.f32 %v1083, 0.0
    %v1342 = vmax.f32 %v1085, 0.0
    %v1343 = vmax.f32 %v1229, 0.0
    %v1344 = vld [vmem:[#allocation6] sm:$0xff]
    %v1345 = vld [vmem:[#allocation6 + $0x8] sm:$0xff]
    %v1346 = vld [vmem:[#allocation6 + $0x10] sm:$0xff]
    %v1347 = vld [vmem:[#allocation6 + $0x18] sm:$0xff]
    %v1348 = vld [vmem:[#allocation6 + $0x20] sm:$0xff]
    %v1349 = vld [vmem:[#allocation6 + $0x28] sm:$0xff]
    %v1350 = vld [vmem:[#allocation6 + $0x30] sm:$0xff]
    %v1351 = vld [vmem:[#allocation6 + $0x38] sm:$0xff]
    %v1352 = vld [vmem:[#allocation6 + $0x40] sm:$0xff]
    %v1353 = vld [vmem:[#allocation6 + $0x48] sm:$0xff]
    %v1354 = vld [vmem:[#allocation6 + $0x50] sm:$0xff]
    %v1355 = vld [vmem:[#allocation6 + $0x58] sm:$0xff]
    %v1356 = vld [vmem:[#allocation6 + $0x60] sm:$0xff]
    %v1357 = vld [vmem:[#allocation6 + $0x68] sm:$0xff]
    %v1358 = vld [vmem:[#allocation6 + $0x70] sm:$0xff]
    %v1359 = vld [vmem:[#allocation6 + $0x78] sm:$0xff]
    %v1360 = vld [vmem:[#allocation6 + $0x80] sm:$0xff]
    %v1361 = vld [vmem:[#allocation6 + $0x88] sm:$0xff]
    %v1362 = vld [vmem:[#allocation6 + $0x90] sm:$0xff]
    %v1363 = vld [vmem:[#allocation6 + $0x98] sm:$0xff]
    %v1364 = vld [vmem:[#allocation6 + $0xa0] sm:$0xff]
    %v1365 = vld [vmem:[#allocation6 + $0xa8] sm:$0xff]
    %v1366 = vld [vmem:[#allocation6 + $0xb0] sm:$0xff]
    %v1367 = vld [vmem:[#allocation6 + $0xb8] sm:$0xff]
    %v1368 = vld [vmem:[#allocation6 + $0xc0] sm:$0xff]
    %v1369 = vld [vmem:[#allocation6 + $0xc8] sm:$0xff]
    %v1370 = vld [vmem:[#allocation6 + $0xd0] sm:$0xff]
    %v1371 = vld [vmem:[#allocation6 + $0xd8] sm:$0xff]
    %v1372 = vld [vmem:[#allocation6 + $0xe0] sm:$0xff]
    %v1373 = vld [vmem:[#allocation6 + $0xe8] sm:$0xff]
    %v1374 = vld [vmem:[#allocation6 + $0xf0] sm:$0xff]
    %v1375 = vld [vmem:[#allocation6 + $0xf8] sm:$0xff]
    %v1376 = vld [vmem:[#allocation6 + $0x100] sm:$0xff]
    %v1377 = vld [vmem:[#allocation6 + $0x108] sm:$0xff]
    %v1378 = vld [vmem:[#allocation6 + $0x110] sm:$0xff]
    %v1379 = vld [vmem:[#allocation6 + $0x118] sm:$0xff]
    %v1380 = vld [vmem:[#allocation6 + $0x120] sm:$0xff]
    %v1381 = vld [vmem:[#allocation6 + $0x128] sm:$0xff]
    %v1382 = vld [vmem:[#allocation6 + $0x130] sm:$0xff]
    %v1383 = vld [vmem:[#allocation6 + $0x138] sm:$0xff]
    %v1384 = vld [vmem:[#allocation6 + $0x140] sm:$0xff]
    %v1385 = vld [vmem:[#allocation6 + $0x148] sm:$0xff]
    %v1386 = vld [vmem:[#allocation6 + $0x150] sm:$0xff]
    %v1387 = vld [vmem:[#allocation6 + $0x158] sm:$0xff]
    %v1388 = vld [vmem:[#allocation6 + $0x160] sm:$0xff]
    %v1389 = vld [vmem:[#allocation6 + $0x168] sm:$0xff]
    %v1390 = vld [vmem:[#allocation6 + $0x170] sm:$0xff]
    %v1391 = vld [vmem:[#allocation6 + $0x178] sm:$0xff]
    %v1392 = vld [vmem:[#allocation6 + $0x180] sm:$0xff]
    %v1393 = vld [vmem:[#allocation6 + $0x188] sm:$0xff]
    %v1394 = vld [vmem:[#allocation6 + $0x190] sm:$0xff]
    %v1395 = vld [vmem:[#allocation6 + $0x198] sm:$0xff]
    %v1396 = vld [vmem:[#allocation6 + $0x1a0] sm:$0xff]
    %v1397 = vld [vmem:[#allocation6 + $0x1a8] sm:$0xff]
    %v1398 = vld [vmem:[#allocation6 + $0x1b0] sm:$0xff]
    %v1399 = vld [vmem:[#allocation6 + $0x1b8] sm:$0xff]
    %v1400 = vld [vmem:[#allocation6 + $0x1c0] sm:$0xff]
    %v1401 = vld [vmem:[#allocation6 + $0x1c8] sm:$0xff]
    %v1402 = vld [vmem:[#allocation6 + $0x1d0] sm:$0xff]
    %v1403 = vld [vmem:[#allocation6 + $0x1d8] sm:$0xff]
    %v1404 = vld [vmem:[#allocation6 + $0x1e0] sm:$0xff]
    %v1405 = vld [vmem:[#allocation6 + $0x1e8] sm:$0xff]
    %v1406 = vld [vmem:[#allocation6 + $0x1f0] sm:$0xff]
    %v1407 = vld [vmem:[#allocation6 + $0x1f8] sm:$0xff]
    %v1408 = vld [vmem:[#allocation6 + $0x200] sm:$0xff]
    %v1409 = vld [vmem:[#allocation6 + $0x208] sm:$0xff]
    %v1410 = vld [vmem:[#allocation6 + $0x210] sm:$0xff]
    %v1411 = vld [vmem:[#allocation6 + $0x218] sm:$0xff]
    %v1412 = vld [vmem:[#allocation6 + $0x220] sm:$0xff]
    %v1413 = vld [vmem:[#allocation6 + $0x228] sm:$0xff]
    %v1414 = vld [vmem:[#allocation6 + $0x230] sm:$0xff]
    %v1415 = vld [vmem:[#allocation6 + $0x238] sm:$0xff]
    %v1416 = vld [vmem:[#allocation6 + $0x240] sm:$0xff]
    %v1417 = vld [vmem:[#allocation6 + $0x248] sm:$0xff]
    %v1418 = vld [vmem:[#allocation6 + $0x250] sm:$0xff]
    %v1419 = vld [vmem:[#allocation6 + $0x258] sm:$0xff]
    %v1420 = vld [vmem:[#allocation6 + $0x260] sm:$0xff]
    %v1421 = vld [vmem:[#allocation6 + $0x268] sm:$0xff]
    %v1422 = vld [vmem:[#allocation6 + $0x270] sm:$0xff]
    %v1423 = vld [vmem:[#allocation6 + $0x278] sm:$0xff]
    %v1424 = vld [vmem:[#allocation6 + $0x280] sm:$0xff]
    %v1425 = vld [vmem:[#allocation6 + $0x288] sm:$0xff]
    %v1426 = vld [vmem:[#allocation6 + $0x290] sm:$0xff]
    %v1427 = vld [vmem:[#allocation6 + $0x298] sm:$0xff]
    %v1428 = vld [vmem:[#allocation6 + $0x2a0] sm:$0xff]
    %v1429 = vld [vmem:[#allocation6 + $0x2a8] sm:$0xff]
    %v1430 = vld [vmem:[#allocation6 + $0x2b0] sm:$0xff]
    %v1431 = vld [vmem:[#allocation6 + $0x2b8] sm:$0xff]
    %v1432 = vld [vmem:[#allocation6 + $0x2c0] sm:$0xff]
    %v1433 = vld [vmem:[#allocation6 + $0x2c8] sm:$0xff]
    %v1434 = vld [vmem:[#allocation6 + $0x2d0] sm:$0xff]
    %v1435 = vld [vmem:[#allocation6 + $0x2d8] sm:$0xff]
    %v1436 = vld [vmem:[#allocation6 + $0x2e0] sm:$0xff]
    %v1437 = vld [vmem:[#allocation6 + $0x2e8] sm:$0xff]
    %v1438 = vld [vmem:[#allocation6 + $0x2f0] sm:$0xff]
    %v1439 = vld [vmem:[#allocation6 + $0x2f8] sm:$0xff]
    %v1440 = vld [vmem:[#allocation6 + $0x300] sm:$0xff]
    %v1441 = vld [vmem:[#allocation6 + $0x308] sm:$0xff]
    %v1442 = vld [vmem:[#allocation6 + $0x310] sm:$0xff]
    %v1443 = vld [vmem:[#allocation6 + $0x318] sm:$0xff]
    %v1444 = vld [vmem:[#allocation6 + $0x320] sm:$0xff]
    %v1445 = vld [vmem:[#allocation6 + $0x328] sm:$0xff]
    %v1446 = vld [vmem:[#allocation6 + $0x330] sm:$0xff]
    %v1447 = vld [vmem:[#allocation6 + $0x338] sm:$0xff]
    %v1448 = vld [vmem:[#allocation6 + $0x340] sm:$0xff]
    %v1449 = vld [vmem:[#allocation6 + $0x348] sm:$0xff]
    %v1450 = vld [vmem:[#allocation6 + $0x350] sm:$0xff]
    %v1451 = vld [vmem:[#allocation6 + $0x358] sm:$0xff]
    %v1452 = vld [vmem:[#allocation6 + $0x360] sm:$0xff]
    %v1453 = vld [vmem:[#allocation6 + $0x368] sm:$0xff]
    %v1454 = vld [vmem:[#allocation6 + $0x370] sm:$0xff]
    %v1455 = vld [vmem:[#allocation6 + $0x378] sm:$0xff]
    %v1456 = vld [vmem:[%s6] sm:$0x1]
    %v1458 = vlaneseq
    %v1459 = vshrl.u32 %v1458, 7
    %v1460 = vsub.s32 0, %v1459
    %v1461 = vrot.slane %v1456, %v1460
    %1463 = vmatprep.subr.mxu0 0.0
    %1464 = vmatpush1.msra.mxu0 %v1359
    %1465 = vmatprep.subr.mxu0 0.0
    %1466 = vmatpush1.msra.mxu0 %v1358
    %1467 = vmatprep.subr.mxu0 0.0
    %1468 = vmatpush1.msra.mxu0 %v1357
    %1469 = vmatprep.subr.mxu0 0.0
    %1470 = vmatpush1.msra.mxu0 %v1356
    %1471 = vmatprep.subr.mxu0 0.0
    %1472 = vmatpush1.msra.mxu0 %v1355
    %1473 = vmatprep.subr.mxu0 0.0
    %1474 = vmatpush1.msra.mxu0 %v1354
    %1475 = vmatprep.subr.mxu0 0.0
    %1476 = vmatpush1.msra.mxu0 %v1353
    %1477 = vmatprep.subr.mxu0 0.0
    %1478 = vmatpush1.msra.mxu0 %v1352
    %1479 = vmatprep.subr.mxu0 0.0
    %1480 = vmatpush1.msra.mxu0 %v1351
    %1481 = vmatprep.subr.mxu0 0.0
    %1482 = vmatpush1.msra.mxu0 %v1350
    %1483 = vmatprep.subr.mxu0 0.0
    %1484 = vmatpush1.msra.mxu0 %v1349
    %1485 = vmatprep.subr.mxu0 0.0
    %1486 = vmatpush1.msra.mxu0 %v1348
    %1487 = vmatprep.subr.mxu0 0.0
    %1488 = vmatpush1.msra.mxu0 %v1347
    %1489 = vmatprep.subr.mxu0 0.0
    %1490 = vmatpush1.msra.mxu0 %v1346
    %1491 = vmatprep.subr.mxu0 0.0
    %1492 = vmatpush1.msra.mxu0 %v1345
    %1493 = vmatprep.subr.mxu0 0.0
    %1494 = vmatpush1.msra.mxu0 %v1344
    %1495 = vmatprep.subr.mxu0 0.0
    %1496 = vmatpush2.msra.mxu0 %v1375
    %1497 = vmatprep.subr.mxu0 0.0
    %1498 = vmatpush2.msra.mxu0 %v1374
    %1499 = vmatprep.subr.mxu0 0.0
    %1500 = vmatpush2.msra.mxu0 %v1373
    %1501 = vmatprep.subr.mxu0 0.0
    %1502 = vmatpush2.msra.mxu0 %v1372
    %1503 = vmatprep.subr.mxu0 0.0
    %1504 = vmatpush2.msra.mxu0 %v1371
    %1505 = vmatprep.subr.mxu0 0.0
    %1506 = vmatpush2.msra.mxu0 %v1370
    %1507 = vmatprep.subr.mxu0 0.0
    %1508 = vmatpush2.msra.mxu0 %v1369
    %1509 = vmatprep.subr.mxu0 0.0
    %1510 = vmatpush2.msra.mxu0 %v1368
    %1511 = vmatprep.subr.mxu0 0.0
    %1512 = vmatpush2.msra.mxu0 %v1367
    %1513 = vmatprep.subr.mxu0 0.0
    %1514 = vmatpush2.msra.mxu0 %v1366
    %1515 = vmatprep.subr.mxu0 0.0
    %1516 = vmatpush2.msra.mxu0 %v1365
    %1517 = vmatprep.subr.mxu0 0.0
    %1518 = vmatpush2.msra.mxu0 %v1364
    %1519 = vmatprep.subr.mxu0 0.0
    %1520 = vmatpush2.msra.mxu0 %v1363
    %1521 = vmatprep.subr.mxu0 0.0
    %1522 = vmatpush2.msra.mxu0 %v1362
    %1523 = vmatprep.subr.mxu0 0.0
    %1524 = vmatpush2.msra.mxu0 %v1361
    %1525 = vmatprep.subr.mxu0 0.0
    %1526 = vmatpush2.msra.mxu0 %v1360
    %1527 = vmatprep.mubr.f32.mxu0 %v1233
    %1528 = vmatmul.mubr.f32.gmra.mxu0 %v1232
    %v1529 = vpop.f32.mrf.mxu0
    %v1530 = vadd.f32 %v1461, %v1529
    %v1531 = vpop.f32.mrf.mxu0
    %1532 = vmatprep.mubr.f32.mxu0 %v1240
    %1533 = vmatmul.mubr.f32.gmra.mxu0 %v1239
    %v1534 = vpop.f32.mrf.mxu0
    %v1535 = vadd.f32 %v1461, %v1534
    %v1536 = vpop.f32.mrf.mxu0
    %1537 = vmatprep.mubr.f32.mxu0 %v1247
    %1538 = vmatmul.mubr.f32.gmra.mxu0 %v1246
    %v1539 = vpop.f32.mrf.mxu0
    %v1540 = vadd.f32 %v1461, %v1539
    %v1541 = vpop.f32.mrf.mxu0
    %1542 = vmatprep.mubr.f32.mxu0 %v1254
    %1543 = vmatmul.mubr.f32.gmra.mxu0 %v1253
    %v1544 = vpop.f32.mrf.mxu0
    %v1545 = vadd.f32 %v1461, %v1544
    %v1546 = vpop.f32.mrf.mxu0
    %1547 = vmatprep.mubr.f32.mxu0 %v1261
    %1548 = vmatmul.mubr.f32.gmra.mxu0 %v1260
    %v1549 = vpop.f32.mrf.mxu0
    %v1550 = vadd.f32 %v1461, %v1549
    %v1551 = vpop.f32.mrf.mxu0
    %1552 = vmatprep.mubr.f32.mxu0 %v1268
    %1553 = vmatmul.mubr.f32.gmra.mxu0 %v1267
    %v1554 = vpop.f32.mrf.mxu0
    %v1555 = vadd.f32 %v1461, %v1554
    %v1556 = vpop.f32.mrf.mxu0
    %1557 = vmatprep.mubr.f32.mxu0 %v1275
    %1558 = vmatmul.mubr.f32.gmra.mxu0 %v1274
    %v1559 = vpop.f32.mrf.mxu0
    %v1560 = vadd.f32 %v1461, %v1559
    %v1561 = vpop.f32.mrf.mxu0
    %1562 = vmatprep.mubr.f32.mxu0 %v1282
    %1563 = vmatmul.mubr.f32.gmra.mxu0 %v1281
    %v1564 = vpop.f32.mrf.mxu0
    %v1565 = vadd.f32 %v1461, %v1564
    %v1566 = vpop.f32.mrf.mxu0
    %1567 = vmatprep.mubr.f32.mxu0 %v1289
    %1568 = vmatmul.mubr.f32.gmra.mxu0 %v1288
    %v1569 = vpop.f32.mrf.mxu0
    %v1570 = vadd.f32 %v1461, %v1569
    %v1571 = vpop.f32.mrf.mxu0
    %1572 = vmatprep.mubr.f32.mxu0 %v1296
    %1573 = vmatmul.mubr.f32.gmra.mxu0 %v1295
    %v1574 = vpop.f32.mrf.mxu0
    %v1575 = vadd.f32 %v1461, %v1574
    %v1576 = vpop.f32.mrf.mxu0
    %1577 = vmatprep.mubr.f32.mxu0 %v1303
    %1578 = vmatmul.mubr.f32.gmra.mxu0 %v1302
    %v1579 = vpop.f32.mrf.mxu0
    %v1580 = vadd.f32 %v1461, %v1579
    %v1581 = vpop.f32.mrf.mxu0
    %1582 = vmatprep.mubr.f32.mxu0 %v1310
    %1583 = vmatmul.mubr.f32.gmra.mxu0 %v1309
    %v1584 = vpop.f32.mrf.mxu0
    %v1585 = vadd.f32 %v1461, %v1584
    %v1586 = vpop.f32.mrf.mxu0
    %1587 = vmatprep.mubr.f32.mxu0 %v1317
    %1588 = vmatmul.mubr.f32.gmra.mxu0 %v1316
    %v1589 = vpop.f32.mrf.mxu0
    %v1590 = vadd.f32 %v1461, %v1589
    %v1591 = vpop.f32.mrf.mxu0
    %1592 = vmatprep.mubr.f32.mxu0 %v1324
    %1593 = vmatmul.mubr.f32.gmra.mxu0 %v1323
    %v1594 = vpop.f32.mrf.mxu0
    %v1595 = vadd.f32 %v1461, %v1594
    %v1596 = vpop.f32.mrf.mxu0
    %1597 = vmatprep.mubr.f32.mxu0 %v1331
    %1598 = vmatmul.mubr.f32.gmra.mxu0 %v1330
    %v1599 = vpop.f32.mrf.mxu0
    %v1600 = vadd.f32 %v1461, %v1599
    %v1601 = vpop.f32.mrf.mxu0
    %1602 = vmatprep.mubr.f32.mxu0 %v1338
    %1603 = vmatmul.mubr.f32.gmra.mxu0 %v1337
    %v1604 = vpop.f32.mrf.mxu0
    %v1605 = vadd.f32 %v1461, %v1604
    %v1606 = vpop.f32.mrf.mxu0
    %1607 = vdwg.mxu0
    %1608 = vmatprep.subr.mxu0 0.0
    %1609 = vmatpush1.msra.mxu0 %v1391
    %1610 = vmatprep.subr.mxu0 0.0
    %1611 = vmatpush1.msra.mxu0 %v1390
    %1612 = vmatprep.subr.mxu0 0.0
    %1613 = vmatpush1.msra.mxu0 %v1389
    %1614 = vmatprep.subr.mxu0 0.0
    %1615 = vmatpush1.msra.mxu0 %v1388
    %1616 = vmatprep.subr.mxu0 0.0
    %1617 = vmatpush1.msra.mxu0 %v1387
    %1618 = vmatprep.subr.mxu0 0.0
    %1619 = vmatpush1.msra.mxu0 %v1386
    %1620 = vmatprep.subr.mxu0 0.0
    %1621 = vmatpush1.msra.mxu0 %v1385
    %1622 = vmatprep.subr.mxu0 0.0
    %1623 = vmatpush1.msra.mxu0 %v1384
    %1624 = vmatprep.subr.mxu0 0.0
    %1625 = vmatpush1.msra.mxu0 %v1383
    %1626 = vmatprep.subr.mxu0 0.0
    %1627 = vmatpush1.msra.mxu0 %v1382
    %1628 = vmatprep.subr.mxu0 0.0
    %1629 = vmatpush1.msra.mxu0 %v1381
    %1630 = vmatprep.subr.mxu0 0.0
    %1631 = vmatpush1.msra.mxu0 %v1380
    %1632 = vmatprep.subr.mxu0 0.0
    %1633 = vmatpush1.msra.mxu0 %v1379
    %1634 = vmatprep.subr.mxu0 0.0
    %1635 = vmatpush1.msra.mxu0 %v1378
    %1636 = vmatprep.subr.mxu0 0.0
    %1637 = vmatpush1.msra.mxu0 %v1377
    %1638 = vmatprep.subr.mxu0 0.0
    %1639 = vmatpush1.msra.mxu0 %v1376
    %1640 = vmatprep.subr.mxu0 0.0
    %1641 = vmatpush2.msra.mxu0 %v1407
    %1642 = vmatprep.subr.mxu0 0.0
    %1643 = vmatpush2.msra.mxu0 %v1406
    %1644 = vmatprep.subr.mxu0 0.0
    %1645 = vmatpush2.msra.mxu0 %v1405
    %1646 = vmatprep.subr.mxu0 0.0
    %1647 = vmatpush2.msra.mxu0 %v1404
    %1648 = vmatprep.subr.mxu0 0.0
    %1649 = vmatpush2.msra.mxu0 %v1403
    %1650 = vmatprep.subr.mxu0 0.0
    %1651 = vmatpush2.msra.mxu0 %v1402
    %1652 = vmatprep.subr.mxu0 0.0
    %1653 = vmatpush2.msra.mxu0 %v1401
    %1654 = vmatprep.subr.mxu0 0.0
    %1655 = vmatpush2.msra.mxu0 %v1400
    %1656 = vmatprep.subr.mxu0 0.0
    %1657 = vmatpush2.msra.mxu0 %v1399
    %1658 = vmatprep.subr.mxu0 0.0
    %1659 = vmatpush2.msra.mxu0 %v1398
    %1660 = vmatprep.subr.mxu0 0.0
    %1661 = vmatpush2.msra.mxu0 %v1397
    %1662 = vmatprep.subr.mxu0 0.0
    %1663 = vmatpush2.msra.mxu0 %v1396
    %1664 = vmatprep.subr.mxu0 0.0
    %1665 = vmatpush2.msra.mxu0 %v1395
    %1666 = vmatprep.subr.mxu0 0.0
    %1667 = vmatpush2.msra.mxu0 %v1394
    %1668 = vmatprep.subr.mxu0 0.0
    %1669 = vmatpush2.msra.mxu0 %v1393
    %1670 = vmatprep.subr.mxu0 0.0
    %1671 = vmatpush2.msra.mxu0 %v1392
    %1672 = vmatprep.mubr.f32.mxu0 %v1235
    %1673 = vmatmul.mubr.f32.gmra.mxu0 %v1234
    %v1674 = vpop.f32.mrf.mxu0
    %v1675 = vadd.f32 %v1530, %v1674
    %v1676 = vpop.f32.mrf.mxu0
    %1677 = vmatprep.mubr.f32.mxu0 %v1242
    %1678 = vmatmul.mubr.f32.gmra.mxu0 %v1241
    %v1679 = vpop.f32.mrf.mxu0
    %v1680 = vadd.f32 %v1535, %v1679
    %v1681 = vpop.f32.mrf.mxu0
    %1682 = vmatprep.mubr.f32.mxu0 %v1249
    %1683 = vmatmul.mubr.f32.gmra.mxu0 %v1248
    %v1684 = vpop.f32.mrf.mxu0
    %v1685 = vadd.f32 %v1540, %v1684
    %v1686 = vpop.f32.mrf.mxu0
    %1687 = vmatprep.mubr.f32.mxu0 %v1256
    %1688 = vmatmul.mubr.f32.gmra.mxu0 %v1255
    %v1689 = vpop.f32.mrf.mxu0
    %v1690 = vadd.f32 %v1545, %v1689
    %v1691 = vpop.f32.mrf.mxu0
    %1692 = vmatprep.mubr.f32.mxu0 %v1263
    %1693 = vmatmul.mubr.f32.gmra.mxu0 %v1262
    %v1694 = vpop.f32.mrf.mxu0
    %v1695 = vadd.f32 %v1550, %v1694
    %v1696 = vpop.f32.mrf.mxu0
    %1697 = vmatprep.mubr.f32.mxu0 %v1270
    %1698 = vmatmul.mubr.f32.gmra.mxu0 %v1269
    %v1699 = vpop.f32.mrf.mxu0
    %v1700 = vadd.f32 %v1555, %v1699
    %v1701 = vpop.f32.mrf.mxu0
    %1702 = vmatprep.mubr.f32.mxu0 %v1277
    %1703 = vmatmul.mubr.f32.gmra.mxu0 %v1276
    %v1704 = vpop.f32.mrf.mxu0
    %v1705 = vadd.f32 %v1560, %v1704
    %v1706 = vpop.f32.mrf.mxu0
    %1707 = vmatprep.mubr.f32.mxu0 %v1284
    %1708 = vmatmul.mubr.f32.gmra.mxu0 %v1283
    %v1709 = vpop.f32.mrf.mxu0
    %v1710 = vadd.f32 %v1565, %v1709
    %v1711 = vpop.f32.mrf.mxu0
    %1712 = vmatprep.mubr.f32.mxu0 %v1291
    %1713 = vmatmul.mubr.f32.gmra.mxu0 %v1290
    %v1714 = vpop.f32.mrf.mxu0
    %v1715 = vadd.f32 %v1570, %v1714
    %v1716 = vpop.f32.mrf.mxu0
    %1717 = vmatprep.mubr.f32.mxu0 %v1298
    %1718 = vmatmul.mubr.f32.gmra.mxu0 %v1297
    %v1719 = vpop.f32.mrf.mxu0
    %v1720 = vadd.f32 %v1575, %v1719
    %v1721 = vpop.f32.mrf.mxu0
    %1722 = vmatprep.mubr.f32.mxu0 %v1305
    %1723 = vmatmul.mubr.f32.gmra.mxu0 %v1304
    %v1724 = vpop.f32.mrf.mxu0
    %v1725 = vadd.f32 %v1580, %v1724
    %v1726 = vpop.f32.mrf.mxu0
    %1727 = vmatprep.mubr.f32.mxu0 %v1312
    %1728 = vmatmul.mubr.f32.gmra.mxu0 %v1311
    %v1729 = vpop.f32.mrf.mxu0
    %v1730 = vadd.f32 %v1585, %v1729
    %v1731 = vpop.f32.mrf.mxu0
    %1732 = vmatprep.mubr.f32.mxu0 %v1319
    %1733 = vmatmul.mubr.f32.gmra.mxu0 %v1318
    %v1734 = vpop.f32.mrf.mxu0
    %v1735 = vadd.f32 %v1590, %v1734
    %v1736 = vpop.f32.mrf.mxu0
    %1737 = vmatprep.mubr.f32.mxu0 %v1326
    %1738 = vmatmul.mubr.f32.gmra.mxu0 %v1325
    %v1739 = vpop.f32.mrf.mxu0
    %v1740 = vadd.f32 %v1595, %v1739
    %v1741 = vpop.f32.mrf.mxu0
    %1742 = vmatprep.mubr.f32.mxu0 %v1333
    %1743 = vmatmul.mubr.f32.gmra.mxu0 %v1332
    %v1744 = vpop.f32.mrf.mxu0
    %v1745 = vadd.f32 %v1600, %v1744
    %v1746 = vpop.f32.mrf.mxu0
    %1747 = vmatprep.mubr.f32.mxu0 %v1340
    %1748 = vmatmul.mubr.f32.gmra.mxu0 %v1339
    %v1749 = vpop.f32.mrf.mxu0
    %v1750 = vadd.f32 %v1605, %v1749
    %v1751 = vpop.f32.mrf.mxu0
    %1752 = vdwg.mxu0
    %1753 = vmatprep.subr.mxu0 0.0
    %1754 = vmatpush1.msra.mxu0 %v1423
    %1755 = vmatprep.subr.mxu0 0.0
    %1756 = vmatpush1.msra.mxu0 %v1422
    %1757 = vmatprep.subr.mxu0 0.0
    %1758 = vmatpush1.msra.mxu0 %v1421
    %1759 = vmatprep.subr.mxu0 0.0
    %1760 = vmatpush1.msra.mxu0 %v1420
    %1761 = vmatprep.subr.mxu0 0.0
    %1762 = vmatpush1.msra.mxu0 %v1419
    %1763 = vmatprep.subr.mxu0 0.0
    %1764 = vmatpush1.msra.mxu0 %v1418
    %1765 = vmatprep.subr.mxu0 0.0
    %1766 = vmatpush1.msra.mxu0 %v1417
    %1767 = vmatprep.subr.mxu0 0.0
    %1768 = vmatpush1.msra.mxu0 %v1416
    %1769 = vmatprep.subr.mxu0 0.0
    %1770 = vmatpush1.msra.mxu0 %v1415
    %1771 = vmatprep.subr.mxu0 0.0
    %1772 = vmatpush1.msra.mxu0 %v1414
    %1773 = vmatprep.subr.mxu0 0.0
    %1774 = vmatpush1.msra.mxu0 %v1413
    %1775 = vmatprep.subr.mxu0 0.0
    %1776 = vmatpush1.msra.mxu0 %v1412
    %1777 = vmatprep.subr.mxu0 0.0
    %1778 = vmatpush1.msra.mxu0 %v1411
    %1779 = vmatprep.subr.mxu0 0.0
    %1780 = vmatpush1.msra.mxu0 %v1410
    %1781 = vmatprep.subr.mxu0 0.0
    %1782 = vmatpush1.msra.mxu0 %v1409
    %1783 = vmatprep.subr.mxu0 0.0
    %1784 = vmatpush1.msra.mxu0 %v1408
    %1785 = vmatprep.subr.mxu0 0.0
    %1786 = vmatpush2.msra.mxu0 %v1439
    %1787 = vmatprep.subr.mxu0 0.0
    %1788 = vmatpush2.msra.mxu0 %v1438
    %1789 = vmatprep.subr.mxu0 0.0
    %1790 = vmatpush2.msra.mxu0 %v1437
    %1791 = vmatprep.subr.mxu0 0.0
    %1792 = vmatpush2.msra.mxu0 %v1436
    %1793 = vmatprep.subr.mxu0 0.0
    %1794 = vmatpush2.msra.mxu0 %v1435
    %1795 = vmatprep.subr.mxu0 0.0
    %1796 = vmatpush2.msra.mxu0 %v1434
    %1797 = vmatprep.subr.mxu0 0.0
    %1798 = vmatpush2.msra.mxu0 %v1433
    %1799 = vmatprep.subr.mxu0 0.0
    %1800 = vmatpush2.msra.mxu0 %v1432
    %1801 = vmatprep.subr.mxu0 0.0
    %1802 = vmatpush2.msra.mxu0 %v1431
    %1803 = vmatprep.subr.mxu0 0.0
    %1804 = vmatpush2.msra.mxu0 %v1430
    %1805 = vmatprep.subr.mxu0 0.0
    %1806 = vmatpush2.msra.mxu0 %v1429
    %1807 = vmatprep.subr.mxu0 0.0
    %1808 = vmatpush2.msra.mxu0 %v1428
    %1809 = vmatprep.subr.mxu0 0.0
    %1810 = vmatpush2.msra.mxu0 %v1427
    %1811 = vmatprep.subr.mxu0 0.0
    %1812 = vmatpush2.msra.mxu0 %v1426
    %1813 = vmatprep.subr.mxu0 0.0
    %1814 = vmatpush2.msra.mxu0 %v1425
    %1815 = vmatprep.subr.mxu0 0.0
    %1816 = vmatpush2.msra.mxu0 %v1424
    %1817 = vmatprep.mubr.f32.mxu0 %v1237
    %1818 = vmatmul.mubr.f32.gmra.mxu0 %v1236
    %v1819 = vpop.f32.mrf.mxu0
    %v1820 = vadd.f32 %v1675, %v1819
    %v1821 = vpop.f32.mrf.mxu0
    %1822 = vmatprep.mubr.f32.mxu0 %v1244
    %1823 = vmatmul.mubr.f32.gmra.mxu0 %v1243
    %v1824 = vpop.f32.mrf.mxu0
    %v1825 = vadd.f32 %v1680, %v1824
    %v1826 = vpop.f32.mrf.mxu0
    %1827 = vmatprep.mubr.f32.mxu0 %v1251
    %1828 = vmatmul.mubr.f32.gmra.mxu0 %v1250
    %v1829 = vpop.f32.mrf.mxu0
    %v1830 = vadd.f32 %v1685, %v1829
    %v1831 = vpop.f32.mrf.mxu0
    %1832 = vmatprep.mubr.f32.mxu0 %v1258
    %1833 = vmatmul.mubr.f32.gmra.mxu0 %v1257
    %v1834 = vpop.f32.mrf.mxu0
    %v1835 = vadd.f32 %v1690, %v1834
    %v1836 = vpop.f32.mrf.mxu0
    %1837 = vmatprep.mubr.f32.mxu0 %v1265
    %1838 = vmatmul.mubr.f32.gmra.mxu0 %v1264
    %v1839 = vpop.f32.mrf.mxu0
    %v1840 = vadd.f32 %v1695, %v1839
    %v1841 = vpop.f32.mrf.mxu0
    %1842 = vmatprep.mubr.f32.mxu0 %v1272
    %1843 = vmatmul.mubr.f32.gmra.mxu0 %v1271
    %v1844 = vpop.f32.mrf.mxu0
    %v1845 = vadd.f32 %v1700, %v1844
    %v1846 = vpop.f32.mrf.mxu0
    %1847 = vmatprep.mubr.f32.mxu0 %v1279
    %1848 = vmatmul.mubr.f32.gmra.mxu0 %v1278
    %v1849 = vpop.f32.mrf.mxu0
    %v1850 = vadd.f32 %v1705, %v1849
    %v1851 = vpop.f32.mrf.mxu0
    %1852 = vmatprep.mubr.f32.mxu0 %v1286
    %1853 = vmatmul.mubr.f32.gmra.mxu0 %v1285
    %v1854 = vpop.f32.mrf.mxu0
    %v1855 = vadd.f32 %v1710, %v1854
    %v1856 = vpop.f32.mrf.mxu0
    %1857 = vmatprep.mubr.f32.mxu0 %v1293
    %1858 = vmatmul.mubr.f32.gmra.mxu0 %v1292
    %v1859 = vpop.f32.mrf.mxu0
    %v1860 = vadd.f32 %v1715, %v1859
    %v1861 = vpop.f32.mrf.mxu0
    %1862 = vmatprep.mubr.f32.mxu0 %v1300
    %1863 = vmatmul.mubr.f32.gmra.mxu0 %v1299
    %v1864 = vpop.f32.mrf.mxu0
    %v1865 = vadd.f32 %v1720, %v1864
    %v1866 = vpop.f32.mrf.mxu0
    %1867 = vmatprep.mubr.f32.mxu0 %v1307
    %1868 = vmatmul.mubr.f32.gmra.mxu0 %v1306
    %v1869 = vpop.f32.mrf.mxu0
    %v1870 = vadd.f32 %v1725, %v1869
    %v1871 = vpop.f32.mrf.mxu0
    %1872 = vmatprep.mubr.f32.mxu0 %v1314
    %1873 = vmatmul.mubr.f32.gmra.mxu0 %v1313
    %v1874 = vpop.f32.mrf.mxu0
    %v1875 = vadd.f32 %v1730, %v1874
    %v1876 = vpop.f32.mrf.mxu0
    %1877 = vmatprep.mubr.f32.mxu0 %v1321
    %1878 = vmatmul.mubr.f32.gmra.mxu0 %v1320
    %v1879 = vpop.f32.mrf.mxu0
    %v1880 = vadd.f32 %v1735, %v1879
    %v1881 = vpop.f32.mrf.mxu0
    %1882 = vmatprep.mubr.f32.mxu0 %v1328
    %1883 = vmatmul.mubr.f32.gmra.mxu0 %v1327
    %v1884 = vpop.f32.mrf.mxu0
    %v1885 = vadd.f32 %v1740, %v1884
    %v1886 = vpop.f32.mrf.mxu0
    %1887 = vmatprep.mubr.f32.mxu0 %v1335
    %1888 = vmatmul.mubr.f32.gmra.mxu0 %v1334
    %v1889 = vpop.f32.mrf.mxu0
    %v1890 = vadd.f32 %v1745, %v1889
    %v1891 = vpop.f32.mrf.mxu0
    %1892 = vmatprep.mubr.f32.mxu0 %v1342
    %1893 = vmatmul.mubr.f32.gmra.mxu0 %v1341
    %v1894 = vpop.f32.mrf.mxu0
    %v1895 = vadd.f32 %v1750, %v1894
    %v1896 = vpop.f32.mrf.mxu0
    %1897 = vdwg.mxu0
    %1898 = vmatprep.subr.mxu0 0.0
    %1899 = vmatpush1.msra.mxu0 %v1455
    %1900 = vmatprep.subr.mxu0 0.0
    %1901 = vmatpush1.msra.mxu0 %v1454
    %1902 = vmatprep.subr.mxu0 0.0
    %1903 = vmatpush1.msra.mxu0 %v1453
    %1904 = vmatprep.subr.mxu0 0.0
    %1905 = vmatpush1.msra.mxu0 %v1452
    %1906 = vmatprep.subr.mxu0 0.0
    %1907 = vmatpush1.msra.mxu0 %v1451
    %1908 = vmatprep.subr.mxu0 0.0
    %1909 = vmatpush1.msra.mxu0 %v1450
    %1910 = vmatprep.subr.mxu0 0.0
    %1911 = vmatpush1.msra.mxu0 %v1449
    %1912 = vmatprep.subr.mxu0 0.0
    %1913 = vmatpush1.msra.mxu0 %v1448
    %1914 = vmatprep.subr.mxu0 0.0
    %1915 = vmatpush1.msra.mxu0 %v1447
    %1916 = vmatprep.subr.mxu0 0.0
    %1917 = vmatpush1.msra.mxu0 %v1446
    %1918 = vmatprep.subr.mxu0 0.0
    %1919 = vmatpush1.msra.mxu0 %v1445
    %1920 = vmatprep.subr.mxu0 0.0
    %1921 = vmatpush1.msra.mxu0 %v1444
    %1922 = vmatprep.subr.mxu0 0.0
    %1923 = vmatpush1.msra.mxu0 %v1443
    %1924 = vmatprep.subr.mxu0 0.0
    %1925 = vmatpush1.msra.mxu0 %v1442
    %1926 = vmatprep.subr.mxu0 0.0
    %1927 = vmatpush1.msra.mxu0 %v1441
    %1928 = vmatprep.subr.mxu0 0.0
    %1929 = vmatpush1.msra.mxu0 %v1440
    %1930 = vmatprep.subr.mxu0 0.0
    %1931 = vmatpush2.msra.mxu0 0.0
    %1932 = vmatprep.subr.mxu0 0.0
    %1933 = vmatpush2.msra.mxu0 0.0
    %1934 = vmatprep.subr.mxu0 0.0
    %1935 = vmatpush2.msra.mxu0 0.0
    %1936 = vmatprep.subr.mxu0 0.0
    %1937 = vmatpush2.msra.mxu0 0.0
    %1938 = vmatprep.subr.mxu0 0.0
    %1939 = vmatpush2.msra.mxu0 0.0
    %1940 = vmatprep.subr.mxu0 0.0
    %1941 = vmatpush2.msra.mxu0 0.0
    %1942 = vmatprep.subr.mxu0 0.0
    %1943 = vmatpush2.msra.mxu0 0.0
    %1944 = vmatprep.subr.mxu0 0.0
    %1945 = vmatpush2.msra.mxu0 0.0
    %1946 = vmatprep.subr.mxu0 0.0
    %1947 = vmatpush2.msra.mxu0 0.0
    %1948 = vmatprep.subr.mxu0 0.0
    %1949 = vmatpush2.msra.mxu0 0.0
    %1950 = vmatprep.subr.mxu0 0.0
    %1951 = vmatpush2.msra.mxu0 0.0
    %1952 = vmatprep.subr.mxu0 0.0
    %1953 = vmatpush2.msra.mxu0 0.0
    %1954 = vmatprep.subr.mxu0 0.0
    %1955 = vmatpush2.msra.mxu0 0.0
    %1956 = vmatprep.subr.mxu0 0.0
    %1957 = vmatpush2.msra.mxu0 0.0
    %1958 = vmatprep.subr.mxu0 0.0
    %1959 = vmatpush2.msra.mxu0 0.0
    %1960 = vmatprep.subr.mxu0 0.0
    %1961 = vmatpush2.msra.mxu0 0.0
    %1962 = vmatprep.mubr.f32.mxu0 0.0
    %1963 = vmatmul.mubr.f32.gmra.mxu0 %v1238
    %v1964 = vpop.f32.mrf.mxu0
    %v1965 = vadd.f32 %v1820, %v1964
    %v1966 = vpop.f32.mrf.mxu0
    %1967 = vmatprep.mubr.f32.mxu0 0.0
    %1968 = vmatmul.mubr.f32.gmra.mxu0 %v1245
    %v1969 = vpop.f32.mrf.mxu0
    %v1970 = vadd.f32 %v1825, %v1969
    %v1971 = vpop.f32.mrf.mxu0
    %1972 = vmatprep.mubr.f32.mxu0 0.0
    %1973 = vmatmul.mubr.f32.gmra.mxu0 %v1252
    %v1974 = vpop.f32.mrf.mxu0
    %v1975 = vadd.f32 %v1830, %v1974
    %v1976 = vpop.f32.mrf.mxu0
    %1977 = vmatprep.mubr.f32.mxu0 0.0
    %1978 = vmatmul.mubr.f32.gmra.mxu0 %v1259
    %v1979 = vpop.f32.mrf.mxu0
    %v1980 = vadd.f32 %v1835, %v1979
    %v1981 = vpop.f32.mrf.mxu0
    %1982 = vmatprep.mubr.f32.mxu0 0.0
    %1983 = vmatmul.mubr.f32.gmra.mxu0 %v1266
    %v1984 = vpop.f32.mrf.mxu0
    %v1985 = vadd.f32 %v1840, %v1984
    %v1986 = vpop.f32.mrf.mxu0
    %1987 = vmatprep.mubr.f32.mxu0 0.0
    %1988 = vmatmul.mubr.f32.gmra.mxu0 %v1273
    %v1989 = vpop.f32.mrf.mxu0
    %v1990 = vadd.f32 %v1845, %v1989
    %v1991 = vpop.f32.mrf.mxu0
    %1992 = vmatprep.mubr.f32.mxu0 0.0
    %1993 = vmatmul.mubr.f32.gmra.mxu0 %v1280
    %v1994 = vpop.f32.mrf.mxu0
    %v1995 = vadd.f32 %v1850, %v1994
    %v1996 = vpop.f32.mrf.mxu0
    %1997 = vmatprep.mubr.f32.mxu0 0.0
    %1998 = vmatmul.mubr.f32.gmra.mxu0 %v1287
    %v1999 = vpop.f32.mrf.mxu0
    %v2000 = vadd.f32 %v1855, %v1999
    %v2001 = vpop.f32.mrf.mxu0
    %2002 = vmatprep.mubr.f32.mxu0 0.0
    %2003 = vmatmul.mubr.f32.gmra.mxu0 %v1294
    %v2004 = vpop.f32.mrf.mxu0
    %v2005 = vadd.f32 %v1860, %v2004
    %v2006 = vpop.f32.mrf.mxu0
    %2007 = vmatprep.mubr.f32.mxu0 0.0
    %2008 = vmatmul.mubr.f32.gmra.mxu0 %v1301
    %v2009 = vpop.f32.mrf.mxu0
    %v2010 = vadd.f32 %v1865, %v2009
    %v2011 = vpop.f32.mrf.mxu0
    %2012 = vmatprep.mubr.f32.mxu0 0.0
    %2013 = vmatmul.mubr.f32.gmra.mxu0 %v1308
    %v2014 = vpop.f32.mrf.mxu0
    %v2015 = vadd.f32 %v1870, %v2014
    %v2016 = vpop.f32.mrf.mxu0
    %2017 = vmatprep.mubr.f32.mxu0 0.0
    %2018 = vmatmul.mubr.f32.gmra.mxu0 %v1315
    %v2019 = vpop.f32.mrf.mxu0
    %v2020 = vadd.f32 %v1875, %v2019
    %v2021 = vpop.f32.mrf.mxu0
    %2022 = vmatprep.mubr.f32.mxu0 0.0
    %2023 = vmatmul.mubr.f32.gmra.mxu0 %v1322
    %v2024 = vpop.f32.mrf.mxu0
    %v2025 = vadd.f32 %v1880, %v2024
    %v2026 = vpop.f32.mrf.mxu0
    %2027 = vmatprep.mubr.f32.mxu0 0.0
    %2028 = vmatmul.mubr.f32.gmra.mxu0 %v1329
    %v2029 = vpop.f32.mrf.mxu0
    %v2030 = vadd.f32 %v1885, %v2029
    %v2031 = vpop.f32.mrf.mxu0
    %2032 = vmatprep.mubr.f32.mxu0 0.0
    %2033 = vmatmul.mubr.f32.gmra.mxu0 %v1336
    %v2034 = vpop.f32.mrf.mxu0
    %v2035 = vadd.f32 %v1890, %v2034
    %v2036 = vpop.f32.mrf.mxu0
    %2037 = vmatprep.mubr.f32.mxu0 0.0
    %2038 = vmatmul.mubr.f32.gmra.mxu0 %v1343
    %v2039 = vpop.f32.mrf.mxu0
    %v2040 = vadd.f32 %v1895, %v2039
    %v2041 = vpop.f32.mrf.mxu0
    %2042 = vdwg.mxu0
    %v2043 = vmax.f32 %v1965, 0.0
    %v2044 = vmax.f32 %v1970, 0.0
    %v2045 = vmax.f32 %v1975, 0.0
    %v2046 = vmax.f32 %v1980, 0.0
    %v2047 = vmax.f32 %v1985, 0.0
    %v2048 = vmax.f32 %v1990, 0.0
    %v2049 = vmax.f32 %v1995, 0.0
    %v2050 = vmax.f32 %v2000, 0.0
    %v2051 = vmax.f32 %v2005, 0.0
    %v2052 = vmax.f32 %v2010, 0.0
    %v2053 = vmax.f32 %v2015, 0.0
    %v2054 = vmax.f32 %v2020, 0.0
    %v2055 = vmax.f32 %v2025, 0.0
    %v2056 = vmax.f32 %v2030, 0.0
    %v2057 = vmax.f32 %v2035, 0.0
    %v2058 = vmax.f32 %v2040, 0.0
    %v2059 = vld [vmem:[%s7] sm:$0xff]
    %2060 = vmatprep.subr.mxu0 0.0
    %2061 = vmatpush1.xpose.msra.mxu0 %v2058
    %2062 = vmatprep.subr.mxu0 0.0
    %2063 = vmatpush1.xpose.msra.mxu0 %v2057
    %2064 = vmatprep.subr.mxu0 0.0
    %2065 = vmatpush1.xpose.msra.mxu0 %v2056
    %2066 = vmatprep.subr.mxu0 0.0
    %2067 = vmatpush1.xpose.msra.mxu0 %v2055
    %2068 = vmatprep.subr.mxu0 0.0
    %2069 = vmatpush1.xpose.msra.mxu0 %v2054
    %2070 = vmatprep.subr.mxu0 0.0
    %2071 = vmatpush1.xpose.msra.mxu0 %v2053
    %2072 = vmatprep.subr.mxu0 0.0
    %2073 = vmatpush1.xpose.msra.mxu0 %v2052
    %2074 = vmatprep.subr.mxu0 0.0
    %2075 = vmatpush1.xpose.msra.mxu0 %v2051
    %2076 = vmatprep.subr.mxu0 0.0
    %2077 = vmatpush1.xpose.msra.mxu0 %v2050
    %2078 = vmatprep.subr.mxu0 0.0
    %2079 = vmatpush1.xpose.msra.mxu0 %v2049
    %2080 = vmatprep.subr.mxu0 0.0
    %2081 = vmatpush1.xpose.msra.mxu0 %v2048
    %2082 = vmatprep.subr.mxu0 0.0
    %2083 = vmatpush1.xpose.msra.mxu0 %v2047
    %2084 = vmatprep.subr.mxu0 0.0
    %2085 = vmatpush1.xpose.msra.mxu0 %v2046
    %2086 = vmatprep.subr.mxu0 0.0
    %2087 = vmatpush1.xpose.msra.mxu0 %v2045
    %2088 = vmatprep.subr.mxu0 0.0
    %2089 = vmatpush1.xpose.msra.mxu0 %v2044
    %2090 = vmatprep.subr.mxu0 0.0
    %2091 = vmatpush1.xpose.msra.mxu0 %v2043
    %2092 = vmatprep.subr.mxu0 0.0
    %2093 = vmatpush2.xpose.msra.mxu0 0.0
    %2094 = vmatprep.subr.mxu0 0.0
    %2095 = vmatpush2.xpose.msra.mxu0 0.0
    %2096 = vmatprep.subr.mxu0 0.0
    %2097 = vmatpush2.xpose.msra.mxu0 0.0
    %2098 = vmatprep.subr.mxu0 0.0
    %2099 = vmatpush2.xpose.msra.mxu0 0.0
    %2100 = vmatprep.subr.mxu0 0.0
    %2101 = vmatpush2.xpose.msra.mxu0 0.0
    %2102 = vmatprep.subr.mxu0 0.0
    %2103 = vmatpush2.xpose.msra.mxu0 0.0
    %2104 = vmatprep.subr.mxu0 0.0
    %2105 = vmatpush2.xpose.msra.mxu0 0.0
    %2106 = vmatprep.subr.mxu0 0.0
    %2107 = vmatpush2.xpose.msra.mxu0 0.0
    %2108 = vmatprep.subr.mxu0 0.0
    %2109 = vmatpush2.xpose.msra.mxu0 0.0
    %2110 = vmatprep.subr.mxu0 0.0
    %2111 = vmatpush2.xpose.msra.mxu0 0.0
    %2112 = vmatprep.subr.mxu0 0.0
    %2113 = vmatpush2.xpose.msra.mxu0 0.0
    %2114 = vmatprep.subr.mxu0 0.0
    %2115 = vmatpush2.xpose.msra.mxu0 0.0
    %2116 = vmatprep.subr.mxu0 0.0
    %2117 = vmatpush2.xpose.msra.mxu0 0.0
    %2118 = vmatprep.subr.mxu0 0.0
    %2119 = vmatpush2.xpose.msra.mxu0 0.0
    %2120 = vmatprep.subr.mxu0 0.0
    %2121 = vmatpush2.xpose.msra.mxu0 0.0
    %2122 = vmatprep.subr.mxu0 0.0
    %2123 = vmatpush2.xpose.msra.mxu0 0.0
    %2124 = vmatprep.mubr.f32.mxu0 0.0
    %2125 = vmatmul.mubr.f32.gmra.mxu0 %v2059
    %v2126 = vpop.f32.mrf.mxu0
    %v2127 = vadd.f32 0.0, %v2126
    %v2128 = vpop.f32.mrf.mxu0
    %2129 = vdwg.mxu0
    %s2130 = sld [smem:[#allocation2]]
    %v2131 = vstv %s2130
    %v2132 = vadd.f32 %v2127, %v2131
    %2133 = vst [vmem:[#allocation8] sm:$0x1] %v2132
    // Predicated region
    $region46: #{tpu_custom_call.1} parent=1 // pred_check
      _
    $region47: #{tpu_custom_call.1} parent=1 // pred_check_branch
      %2135 = sbr.rel (0) target = $region49
    $region48: #{tpu_custom_call.1} parent=1 // pred_region
      %s2137 = ssub.s32 16, 16
      %2138 = vsyncadd [#allocation5], %s2137
      %s2140 = sshll.u32 [#allocation8], 4
      %s2141 = int_to_ptr.vmem [resolvable:$true] %s2140
      %2143 = dma.vmem_to_hbm [thread:$0]  %s2141, 16, %s9, [#allocation5]
    $region49: #{tpu_custom_call.1} parent=1 // pred_fallthru
      _
    // Predicated region
    $region50: #{tpu_custom_call.1} parent=1 // pred_check
      _
    $region51: #{tpu_custom_call.1} parent=1 // pred_check_branch
      %2145 = sbr.rel (0) target = $region53
    $region52: #{tpu_custom_call.1} parent=1 // pred_region
      %2146 = dma.done [#allocation5], 16
    $region53: #{tpu_custom_call.1} parent=1 // pred_fallthru
      _
    %2147 = vsyncpa [#allocation4], 1
    %2148 = vsyncpa [#allocation7], 1
    %2149 = vsyncpa [#allocation5], 1

// kernel: tpu_custom_call.1
$region0: #{tpu_custom_call.1}
  #allocation0 [shape = 'u32[]', space=smem, size = 0x4, offset = 0x4, fixed_abs, tag = 'smem constant byte address 0x4 - core index']
  #allocation1 [shape = 'u32[144,128]{1,0:T(1,128)}', space=vmem, size = 0x12000, scoped, tag = 'internal scratch']
  #allocation2 [shape = 'f32[1,1]{1,0:T(1,128)S(6)}', space=smem, size = 0x200, scoped, tag = 'scoped memory for tpu_custom_call.1']
  %s0 = inlined_call_operand.vmem [shape: f32[128,14], index: 0, kind: input, shape index: {}]
  %s1 = inlined_call_operand.vmem [shape: f32[14,256], index: 1, kind: input, shape index: {}]
  %s2 = inlined_call_operand.vmem [shape: f32[1,256], index: 2, kind: input, shape index: {}]
  %s3 = inlined_call_operand.hbm [shape: f32[256,896], index: 3, kind: input, shape index: {}]
  %s4 = inlined_call_operand.vmem [shape: f32[1,896], index: 4, kind: input, shape index: {}]
  %s5 = inlined_call_operand.hbm [shape: f32[896,128], index: 5, kind: input, shape index: {}]
  %s6 = inlined_call_operand.vmem [shape: f32[1,128], index: 6, kind: input, shape index: {}]
  %s7 = inlined_call_operand.vmem [shape: f32[8,128], index: 7, kind: input, shape index: {}]
  %s8 = inlined_call_operand.<no memory space> [shape: f32[1,1], index: 8, kind: input, shape index: {}]
  %s9 = inlined_call_operand.hbm [shape: f32[1,128], index: 9, kind: output, shape index: {}]
  %s10 = sld [smem:[#allocation0]]
  $region54: #{tpu_custom_call.1} parent=0
    _
  %s12 = ssub.s32 1, %s10
  %s13 = scalar_select 0, %s12, %s10
  %14 = sst [smem:[#allocation2]] %s8
  $region1: #{tpu_custom_call.1} parent=0
    #allocation3 [shape = 'u8[917504]{0}', space=vmem, size = 0xe0000, scoped, tag = 'input window, operand 3, single buffered']
    #allocation4 [shape = 's32[1]{0}', space=sflag, size = 0x4, scoped, tag = 'scoped memory for tpu_custom_call.1']
    #allocation5 [shape = 's32[1]{0}', space=sflag, size = 0x4, scoped, tag = 'scoped memory for tpu_custom_call.1']
    #allocation6 [shape = 'u8[458752]{0}', space=vmem, size = 0x70000, scoped, tag = 'input window, operand 5, single buffered']
    #allocation7 [shape = 's32[1]{0}', space=sflag, size = 0x4, scoped, tag = 'scoped memory for tpu_custom_call.1']
    #allocation8 [shape = 'u8[512]{0}', space=vmem, size = 0x400, scoped, tag = 'output window, operand 0, single buffered']
    %15 = vsyncpa [#allocation4], 0
    %16 = vsyncpa [#allocation7], 0
    %17 = vsyncpa [#allocation5], 0
    // Predicated region
    $region2: #{tpu_custom_call.1} parent=1 // pred_check
      _
    $region3: #{tpu_custom_call.1} parent=1 // pred_check_branch
      %19 = sbr.rel (0) target = $region5
    $region4: #{tpu_custom_call.1} parent=1 // pred_region
      _
    $region5: #{tpu_custom_call.1} parent=1 // pred_fallthru
      _
    // Predicated region
    $region6: #{tpu_custom_call.1} parent=1 // pred_check
      _
    $region7: #{tpu_custom_call.1} parent=1 // pred_check_branch
      %21 = sbr.rel (0) target = $region9
    $region8: #{tpu_custom_call.1} parent=1 // pred_region
      _
    $region9: #{tpu_custom_call.1} parent=1 // pred_fallthru
      _
    // Predicated region
    $region10: #{tpu_custom_call.1} parent=1 // pred_check
      _
    $region11: #{tpu_custom_call.1} parent=1 // pred_check_branch
      %23 = sbr.rel (0) target = $region13
    $region12: #{tpu_custom_call.1} parent=1 // pred_region
      _
    $region13: #{tpu_custom_call.1} parent=1 // pred_fallthru
      _
    // Predicated region
    $region14: #{tpu_custom_call.1} parent=1 // pred_check
      _
    $region15: #{tpu_custom_call.1} parent=1 // pred_check_branch
      %25 = sbr.rel (0) target = $region17
    $region16: #{tpu_custom_call.1} parent=1 // pred_region
      %s27 = ssub.s32 28672, 28672
      %28 = vsyncadd [#allocation4], %s27
      %s29 = sshll.u32 [#allocation3], 4
      %s30 = int_to_ptr.vmem [resolvable:$true] %s29
      %35 = dma.hbm_to_vmem [thread:$0]  %s3, 28672, %s30, [#allocation4], 896, 896, 56
    $region17: #{tpu_custom_call.1} parent=1 // pred_fallthru
      _
    // Predicated region
    $region18: #{tpu_custom_call.1} parent=1 // pred_check
      _
    $region19: #{tpu_custom_call.1} parent=1 // pred_check_branch
      %37 = sbr.rel (0) target = $region21
    $region20: #{tpu_custom_call.1} parent=1 // pred_region
      _
    $region21: #{tpu_custom_call.1} parent=1 // pred_fallthru
      _
    // Predicated region
    $region22: #{tpu_custom_call.1} parent=1 // pred_check
      _
    $region23: #{tpu_custom_call.1} parent=1 // pred_check_branch
      %39 = sbr.rel (0) target = $region25
    $region24: #{tpu_custom_call.1} parent=1 // pred_region
      %s41 = ssub.s32 14336, 14336
      %42 = vsyncadd [#allocation7], %s41
      %s43 = sshll.u32 [#allocation6], 4
      %s44 = int_to_ptr.vmem [resolvable:$true] %s43
      %49 = dma.hbm_to_vmem [thread:$0]  %s5, 14336, %s44, [#allocation7], 128, 128, 8
    $region25: #{tpu_custom_call.1} parent=1 // pred_fallthru
      _
    // Predicated region
    $region26: #{tpu_custom_call.1} parent=1 // pred_check
      _
    $region27: #{tpu_custom_call.1} parent=1 // pred_check_branch
      %51 = sbr.rel (0) target = $region29
    $region28: #{tpu_custom_call.1} parent=1 // pred_region
      _
    $region29: #{tpu_custom_call.1} parent=1 // pred_fallthru
      _
    // Predicated region
    $region30: #{tpu_custom_call.1} parent=1 // pred_check
      _
    $region31: #{tpu_custom_call.1} parent=1 // pred_check_branch
      %53 = sbr.rel (0) target = $region33
    $region32: #{tpu_custom_call.1} parent=1 // pred_region
      _
    $region33: #{tpu_custom_call.1} parent=1 // pred_fallthru
      _
    // Predicated region
    $region34: #{tpu_custom_call.1} parent=1 // pred_check
      _
    $region35: #{tpu_custom_call.1} parent=1 // pred_check_branch
      %55 = sbr.rel (0) target = $region37
    $region36: #{tpu_custom_call.1} parent=1 // pred_region
      _
    $region37: #{tpu_custom_call.1} parent=1 // pred_fallthru
      _
    // Predicated region
    $region38: #{tpu_custom_call.1} parent=1 // pred_check
      _
    $region39: #{tpu_custom_call.1} parent=1 // pred_check_branch
      %57 = sbr.rel (0) target = $region41
    $region40: #{tpu_custom_call.1} parent=1 // pred_region
      %58 = dma.done [#allocation4], 28672
    $region41: #{tpu_custom_call.1} parent=1 // pred_fallthru
      _
    // Predicated region
    $region42: #{tpu_custom_call.1} parent=1 // pred_check
      _
    $region43: #{tpu_custom_call.1} parent=1 // pred_check_branch
      %60 = sbr.rel (0) target = $region45
    $region44: #{tpu_custom_call.1} parent=1 // pred_region
      %61 = dma.done [#allocation7], 14336
    $region45: #{tpu_custom_call.1} parent=1 // pred_fallthru
      _
    %v62 = vld [vmem:[%s0] sm:$0xff]
    %v63 = vld [vmem:[%s0 + $0x8] sm:$0xff]
    %v64 = vld [vmem:[%s0 + $0x10] sm:$0xff]
    %v65 = vld [vmem:[%s0 + $0x18] sm:$0xff]
    %v66 = vld [vmem:[%s0 + $0x20] sm:$0xff]
    %v67 = vld [vmem:[%s0 + $0x28] sm:$0xff]
    %v68 = vld [vmem:[%s0 + $0x30] sm:$0xff]
    %v69 = vld [vmem:[%s0 + $0x38] sm:$0xff]
    %v70 = vld [vmem:[%s0 + $0x40] sm:$0xff]
    %v71 = vld [vmem:[%s0 + $0x48] sm:$0xff]
    %v72 = vld [vmem:[%s0 + $0x50] sm:$0xff]
    %v73 = vld [vmem:[%s0 + $0x58] sm:$0xff]
    %v74 = vld [vmem:[%s0 + $0x60] sm:$0xff]
    %v75 = vld [vmem:[%s0 + $0x68] sm:$0xff]
    %v76 = vld [vmem:[%s0 + $0x70] sm:$0xff]
    %v77 = vld [vmem:[%s0 + $0x78] sm:$0xff]
    %v78 = vld [vmem:[%s1] sm:$0xff]
    %v79 = vld [vmem:[%s1 + $0x8] sm:$0xff]
    %v80 = vld [vmem:[%s1 + $0x10] sm:$0x3f]
    %v81 = vld [vmem:[%s1 + $0x18] sm:$0x3f]
    %v82 = vld [vmem:[%s2] sm:$0x3]
    %v84 = vlaneseq
    %v85 = vshrl.u32 %v84, 7
    %v86 = vsub.s32 0, %v85
    %v87 = vrot.slane %v82, %v86
    %v88 = vlaneseq
    %v89 = vshrl.u32 %v88, 7
    %v90 = vsub.s32 1, %v89
    %v91 = vrot.slane %v82, %v90
    %vm94 = vcmask 113664
    %v96 = vsel %vm94, %v62, 0
    %v99 = vsel %vm94, %v63, 0
    %v102 = vsel %vm94, %v64, 0
    %v105 = vsel %vm94, %v65, 0
    %v108 = vsel %vm94, %v66, 0
    %v111 = vsel %vm94, %v67, 0
    %v114 = vsel %vm94, %v68, 0
    %v117 = vsel %vm94, %v69, 0
    %v120 = vsel %vm94, %v70, 0
    %v123 = vsel %vm94, %v71, 0
    %v126 = vsel %vm94, %v72, 0
    %v129 = vsel %vm94, %v73, 0
    %v132 = vsel %vm94, %v74, 0
    %v135 = vsel %vm94, %v75, 0
    %v138 = vsel %vm94, %v76, 0
    %v141 = vsel %vm94, %v77, 0
    %vm143 = vcmask 1045504
    %v145 = vsel %vm143, %v80, 0
    %v148 = vsel %vm143, %v81, 0
    %150 = vmatprep.subr.mxu0 0.0
    %151 = vmatpush1.msra.mxu0 0.0
    %152 = vmatprep.subr.mxu0 0.0
    %153 = vmatpush1.msra.mxu0 0.0
    %154 = vmatprep.subr.mxu0 0.0
    %155 = vmatpush1.msra.mxu0 0.0
    %156 = vmatprep.subr.mxu0 0.0
    %157 = vmatpush1.msra.mxu0 0.0
    %158 = vmatprep.subr.mxu0 0.0
    %159 = vmatpush1.msra.mxu0 0.0
    %160 = vmatprep.subr.mxu0 0.0
    %161 = vmatpush1.msra.mxu0 0.0
    %162 = vmatprep.subr.mxu0 0.0
    %163 = vmatpush1.msra.mxu0 0.0
    %164 = vmatprep.subr.mxu0 0.0
    %165 = vmatpush1.msra.mxu0 0.0
    %166 = vmatprep.subr.mxu0 0.0
    %167 = vmatpush1.msra.mxu0 0.0
    %168 = vmatprep.subr.mxu0 0.0
    %169 = vmatpush1.msra.mxu0 0.0
    %170 = vmatprep.subr.mxu0 0.0
    %171 = vmatpush1.msra.mxu0 0.0
    %172 = vmatprep.subr.mxu0 0.0
    %173 = vmatpush1.msra.mxu0 0.0
    %174 = vmatprep.subr.mxu0 0.0
    %175 = vmatpush1.msra.mxu0 0.0
    %176 = vmatprep.subr.mxu0 0.0
    %177 = vmatpush1.msra.mxu0 0.0
    %178 = vmatprep.subr.mxu0 %v148
    %179 = vmatpush1.msra.mxu0 %v145
    %180 = vmatprep.subr.mxu0 %v79
    %181 = vmatpush1.msra.mxu0 %v78
    %182 = vmatprep.subr.mxu0 0.0
    %183 = vmatpush2.msra.mxu0 0.0
    %184 = vmatprep.subr.mxu0 0.0
    %185 = vmatpush2.msra.mxu0 0.0
    %186 = vmatprep.subr.mxu0 0.0
    %187 = vmatpush2.msra.mxu0 0.0
    %188 = vmatprep.subr.mxu0 0.0
    %189 = vmatpush2.msra.mxu0 0.0
    %190 = vmatprep.subr.mxu0 0.0
    %191 = vmatpush2.msra.mxu0 0.0
    %192 = vmatprep.subr.mxu0 0.0
    %193 = vmatpush2.msra.mxu0 0.0
    %194 = vmatprep.subr.mxu0 0.0
    %195 = vmatpush2.msra.mxu0 0.0
    %196 = vmatprep.subr.mxu0 0.0
    %197 = vmatpush2.msra.mxu0 0.0
    %198 = vmatprep.subr.mxu0 0.0
    %199 = vmatpush2.msra.mxu0 0.0
    %200 = vmatprep.subr.mxu0 0.0
    %201 = vmatpush2.msra.mxu0 0.0
    %202 = vmatprep.subr.mxu0 0.0
    %203 = vmatpush2.msra.mxu0 0.0
    %204 = vmatprep.subr.mxu0 0.0
    %205 = vmatpush2.msra.mxu0 0.0
    %206 = vmatprep.subr.mxu0 0.0
    %207 = vmatpush2.msra.mxu0 0.0
    %208 = vmatprep.subr.mxu0 0.0
    %209 = vmatpush2.msra.mxu0 0.0
    %210 = vmatprep.subr.mxu0 0.0
    %211 = vmatpush2.msra.mxu0 0.0
    %212 = vmatprep.subr.mxu0 0.0
    %213 = vmatpush2.msra.mxu0 0.0
    %214 = vmatprep.mubr.f32.mxu0 0.0
    %215 = vmatmul.mubr.f32.gmra.mxu0 %v96
    %v216 = vpop.f32.mrf.mxu0
    %v217 = vadd.f32 %v87, %v216
    %v218 = vpop.f32.mrf.mxu0
    %v219 = vadd.f32 %v91, %v218
    %220 = vmatprep.mubr.f32.mxu0 0.0
    %221 = vmatmul.mubr.f32.gmra.mxu0 %v99
    %v222 = vpop.f32.mrf.mxu0
    %v223 = vadd.f32 %v87, %v222
    %v224 = vpop.f32.mrf.mxu0
    %v225 = vadd.f32 %v91, %v224
    %226 = vmatprep.mubr.f32.mxu0 0.0
    %227 = vmatmul.mubr.f32.gmra.mxu0 %v102
    %v228 = vpop.f32.mrf.mxu0
    %v229 = vadd.f32 %v87, %v228
    %v230 = vpop.f32.mrf.mxu0
    %v231 = vadd.f32 %v91, %v230
    %232 = vmatprep.mubr.f32.mxu0 0.0
    %233 = vmatmul.mubr.f32.gmra.mxu0 %v105
    %v234 = vpop.f32.mrf.mxu0
    %v235 = vadd.f32 %v87, %v234
    %v236 = vpop.f32.mrf.mxu0
    %v237 = vadd.f32 %v91, %v236
    %238 = vmatprep.mubr.f32.mxu0 0.0
    %239 = vmatmul.mubr.f32.gmra.mxu0 %v108
    %v240 = vpop.f32.mrf.mxu0
    %v241 = vadd.f32 %v87, %v240
    %v242 = vpop.f32.mrf.mxu0
    %v243 = vadd.f32 %v91, %v242
    %244 = vmatprep.mubr.f32.mxu0 0.0
    %245 = vmatmul.mubr.f32.gmra.mxu0 %v111
    %v246 = vpop.f32.mrf.mxu0
    %v247 = vadd.f32 %v87, %v246
    %v248 = vpop.f32.mrf.mxu0
    %v249 = vadd.f32 %v91, %v248
    %250 = vmatprep.mubr.f32.mxu0 0.0
    %251 = vmatmul.mubr.f32.gmra.mxu0 %v114
    %v252 = vpop.f32.mrf.mxu0
    %v253 = vadd.f32 %v87, %v252
    %v254 = vpop.f32.mrf.mxu0
    %v255 = vadd.f32 %v91, %v254
    %256 = vmatprep.mubr.f32.mxu0 0.0
    %257 = vmatmul.mubr.f32.gmra.mxu0 %v117
    %v258 = vpop.f32.mrf.mxu0
    %v259 = vadd.f32 %v87, %v258
    %v260 = vpop.f32.mrf.mxu0
    %v261 = vadd.f32 %v91, %v260
    %262 = vmatprep.mubr.f32.mxu0 0.0
    %263 = vmatmul.mubr.f32.gmra.mxu0 %v120
    %v264 = vpop.f32.mrf.mxu0
    %v265 = vadd.f32 %v87, %v264
    %v266 = vpop.f32.mrf.mxu0
    %v267 = vadd.f32 %v91, %v266
    %268 = vmatprep.mubr.f32.mxu0 0.0
    %269 = vmatmul.mubr.f32.gmra.mxu0 %v123
    %v270 = vpop.f32.mrf.mxu0
    %v271 = vadd.f32 %v87, %v270
    %v272 = vpop.f32.mrf.mxu0
    %v273 = vadd.f32 %v91, %v272
    %274 = vmatprep.mubr.f32.mxu0 0.0
    %275 = vmatmul.mubr.f32.gmra.mxu0 %v126
    %v276 = vpop.f32.mrf.mxu0
    %v277 = vadd.f32 %v87, %v276
    %v278 = vpop.f32.mrf.mxu0
    %v279 = vadd.f32 %v91, %v278
    %280 = vmatprep.mubr.f32.mxu0 0.0
    %281 = vmatmul.mubr.f32.gmra.mxu0 %v129
    %v282 = vpop.f32.mrf.mxu0
    %v283 = vadd.f32 %v87, %v282
    %v284 = vpop.f32.mrf.mxu0
    %v285 = vadd.f32 %v91, %v284
    %286 = vmatprep.mubr.f32.mxu0 0.0
    %287 = vmatmul.mubr.f32.gmra.mxu0 %v132
    %v288 = vpop.f32.mrf.mxu0
    %v289 = vadd.f32 %v87, %v288
    %v290 = vpop.f32.mrf.mxu0
    %v291 = vadd.f32 %v91, %v290
    %292 = vmatprep.mubr.f32.mxu0 0.0
    %293 = vmatmul.mubr.f32.gmra.mxu0 %v135
    %v294 = vpop.f32.mrf.mxu0
    %v295 = vadd.f32 %v87, %v294
    %v296 = vpop.f32.mrf.mxu0
    %v297 = vadd.f32 %v91, %v296
    %298 = vmatprep.mubr.f32.mxu0 0.0
    %299 = vmatmul.mubr.f32.gmra.mxu0 %v138
    %v300 = vpop.f32.mrf.mxu0
    %v301 = vadd.f32 %v87, %v300
    %v302 = vpop.f32.mrf.mxu0
    %v303 = vadd.f32 %v91, %v302
    %304 = vmatprep.mubr.f32.mxu0 0.0
    %305 = vmatmul.mubr.f32.gmra.mxu0 %v141
    %v306 = vpop.f32.mrf.mxu0
    %v307 = vadd.f32 %v87, %v306
    %v308 = vpop.f32.mrf.mxu0
    %v309 = vadd.f32 %v91, %v308
    %310 = vdwg.mxu0
    %v311 = vmax.f32 %v217, 0.0
    %v312 = vmax.f32 %v219, 0.0
    %v313 = vmax.f32 %v223, 0.0
    %v314 = vmax.f32 %v225, 0.0
    %v315 = vmax.f32 %v229, 0.0
    %v316 = vmax.f32 %v231, 0.0
    %v317 = vmax.f32 %v235, 0.0
    %v318 = vmax.f32 %v237, 0.0
    %v319 = vmax.f32 %v241, 0.0
    %v320 = vmax.f32 %v243, 0.0
    %v321 = vmax.f32 %v247, 0.0
    %v322 = vmax.f32 %v249, 0.0
    %v323 = vmax.f32 %v253, 0.0
    %v324 = vmax.f32 %v255, 0.0
    %v325 = vmax.f32 %v259, 0.0
    %v326 = vmax.f32 %v261, 0.0
    %v327 = vmax.f32 %v265, 0.0
    %v328 = vmax.f32 %v267, 0.0
    %v329 = vmax.f32 %v271, 0.0
    %v330 = vmax.f32 %v273, 0.0
    %v331 = vmax.f32 %v277, 0.0
    %v332 = vmax.f32 %v279, 0.0
    %v333 = vmax.f32 %v283, 0.0
    %v334 = vmax.f32 %v285, 0.0
    %v335 = vmax.f32 %v289, 0.0
    %v336 = vmax.f32 %v291, 0.0
    %v337 = vmax.f32 %v295, 0.0
    %v338 = vmax.f32 %v297, 0.0
    %v339 = vmax.f32 %v301, 0.0
    %v340 = vmax.f32 %v303, 0.0
    %v341 = vmax.f32 %v307, 0.0
    %v342 = vmax.f32 %v309, 0.0
    %v343 = vld [vmem:[#allocation3] sm:$0xff]
    %v344 = vld [vmem:[#allocation3 + $0x8] sm:$0xff]
    %v345 = vld [vmem:[#allocation3 + $0x10] sm:$0xff]
    %v346 = vld [vmem:[#allocation3 + $0x18] sm:$0xff]
    %v347 = vld [vmem:[#allocation3 + $0x20] sm:$0xff]
    %v348 = vld [vmem:[#allocation3 + $0x28] sm:$0xff]
    %v349 = vld [vmem:[#allocation3 + $0x30] sm:$0xff]
    %v350 = vld [vmem:[#allocation3 + $0x38] sm:$0xff]
    %v351 = vld [vmem:[#allocation3 + $0x40] sm:$0xff]
    %v352 = vld [vmem:[#allocation3 + $0x48] sm:$0xff]
    %v353 = vld [vmem:[#allocation3 + $0x50] sm:$0xff]
    %v354 = vld [vmem:[#allocation3 + $0x58] sm:$0xff]
    %v355 = vld [vmem:[#allocation3 + $0x60] sm:$0xff]
    %v356 = vld [vmem:[#allocation3 + $0x68] sm:$0xff]
    %v357 = vld [vmem:[#allocation3 + $0x70] sm:$0xff]
    %v358 = vld [vmem:[#allocation3 + $0x78] sm:$0xff]
    %v359 = vld [vmem:[#allocation3 + $0x80] sm:$0xff]
    %v360 = vld [vmem:[#allocation3 + $0x88] sm:$0xff]
    %v361 = vld [vmem:[#allocation3 + $0x90] sm:$0xff]
    %v362 = vld [vmem:[#allocation3 + $0x98] sm:$0xff]
    %v363 = vld [vmem:[#allocation3 + $0xa0] sm:$0xff]
    %v364 = vld [vmem:[#allocation3 + $0xa8] sm:$0xff]
    %v365 = vld [vmem:[#allocation3 + $0xb0] sm:$0xff]
    %v366 = vld [vmem:[#allocation3 + $0xb8] sm:$0xff]
    %v367 = vld [vmem:[#allocation3 + $0xc0] sm:$0xff]
    %v368 = vld [vmem:[#allocation3 + $0xc8] sm:$0xff]
    %v369 = vld [vmem:[#allocation3 + $0xd0] sm:$0xff]
    %v370 = vld [vmem:[#allocation3 + $0xd8] sm:$0xff]
    %v371 = vld [vmem:[#allocation3 + $0xe0] sm:$0xff]
    %v372 = vld [vmem:[#allocation3 + $0xe8] sm:$0xff]
    %v373 = vld [vmem:[#allocation3 + $0xf0] sm:$0xff]
    %v374 = vld [vmem:[#allocation3 + $0xf8] sm:$0xff]
    %v375 = vld [vmem:[#allocation3 + $0x100] sm:$0xff]
    %v376 = vld [vmem:[#allocation3 + $0x108] sm:$0xff]
    %v377 = vld [vmem:[#allocation3 + $0x110] sm:$0xff]
    %v378 = vld [vmem:[#allocation3 + $0x118] sm:$0xff]
    %v379 = vld [vmem:[#allocation3 + $0x120] sm:$0xff]
    %v380 = vld [vmem:[#allocation3 + $0x128] sm:$0xff]
    %v381 = vld [vmem:[#allocation3 + $0x130] sm:$0xff]
    %v382 = vld [vmem:[#allocation3 + $0x138] sm:$0xff]
    %v383 = vld [vmem:[#allocation3 + $0x140] sm:$0xff]
    %v384 = vld [vmem:[#allocation3 + $0x148] sm:$0xff]
    %v385 = vld [vmem:[#allocation3 + $0x150] sm:$0xff]
    %v386 = vld [vmem:[#allocation3 + $0x158] sm:$0xff]
    %v387 = vld [vmem:[#allocation3 + $0x160] sm:$0xff]
    %v388 = vld [vmem:[#allocation3 + $0x168] sm:$0xff]
    %v389 = vld [vmem:[#allocation3 + $0x170] sm:$0xff]
    %v390 = vld [vmem:[#allocation3 + $0x178] sm:$0xff]
    %v391 = vld [vmem:[#allocation3 + $0x180] sm:$0xff]
    %v392 = vld [vmem:[#allocation3 + $0x188] sm:$0xff]
    %v393 = vld [vmem:[#allocation3 + $0x190] sm:$0xff]
    %v394 = vld [vmem:[#allocation3 + $0x198] sm:$0xff]
    %v395 = vld [vmem:[#allocation3 + $0x1a0] sm:$0xff]
    %v396 = vld [vmem:[#allocation3 + $0x1a8] sm:$0xff]
    %v397 = vld [vmem:[#allocation3 + $0x1b0] sm:$0xff]
    %v398 = vld [vmem:[#allocation3 + $0x1b8] sm:$0xff]
    %v399 = vld [vmem:[#allocation3 + $0x1c0] sm:$0xff]
    %v400 = vld [vmem:[#allocation3 + $0x1c8] sm:$0xff]
    %v401 = vld [vmem:[#allocation3 + $0x1d0] sm:$0xff]
    %v402 = vld [vmem:[#allocation3 + $0x1d8] sm:$0xff]
    %v403 = vld [vmem:[#allocation3 + $0x1e0] sm:$0xff]
    %v404 = vld [vmem:[#allocation3 + $0x1e8] sm:$0xff]
    %v405 = vld [vmem:[#allocation3 + $0x1f0] sm:$0xff]
    %v406 = vld [vmem:[#allocation3 + $0x1f8] sm:$0xff]
    %v407 = vld [vmem:[#allocation3 + $0x200] sm:$0xff]
    %v408 = vld [vmem:[#allocation3 + $0x208] sm:$0xff]
    %v409 = vld [vmem:[#allocation3 + $0x210] sm:$0xff]
    %v410 = vld [vmem:[#allocation3 + $0x218] sm:$0xff]
    %v411 = vld [vmem:[#allocation3 + $0x220] sm:$0xff]
    %v412 = vld [vmem:[#allocation3 + $0x228] sm:$0xff]
    %v413 = vld [vmem:[#allocation3 + $0x230] sm:$0xff]
    %v414 = vld [vmem:[#allocation3 + $0x238] sm:$0xff]
    %v415 = vld [vmem:[#allocation3 + $0x240] sm:$0xff]
    %v416 = vld [vmem:[#allocation3 + $0x248] sm:$0xff]
    %v417 = vld [vmem:[#allocation3 + $0x250] sm:$0xff]
    %v418 = vld [vmem:[#allocation3 + $0x258] sm:$0xff]
    %v419 = vld [vmem:[#allocation3 + $0x260] sm:$0xff]
    %v420 = vld [vmem:[#allocation3 + $0x268] sm:$0xff]
    %v421 = vld [vmem:[#allocation3 + $0x270] sm:$0xff]
    %v422 = vld [vmem:[#allocation3 + $0x278] sm:$0xff]
    %v423 = vld [vmem:[#allocation3 + $0x280] sm:$0xff]
    %v424 = vld [vmem:[#allocation3 + $0x288] sm:$0xff]
    %v425 = vld [vmem:[#allocation3 + $0x290] sm:$0xff]
    %v426 = vld [vmem:[#allocation3 + $0x298] sm:$0xff]
    %v427 = vld [vmem:[#allocation3 + $0x2a0] sm:$0xff]
    %v428 = vld [vmem:[#allocation3 + $0x2a8] sm:$0xff]
    %v429 = vld [vmem:[#allocation3 + $0x2b0] sm:$0xff]
    %v430 = vld [vmem:[#allocation3 + $0x2b8] sm:$0xff]
    %v431 = vld [vmem:[#allocation3 + $0x2c0] sm:$0xff]
    %v432 = vld [vmem:[#allocation3 + $0x2c8] sm:$0xff]
    %v433 = vld [vmem:[#allocation3 + $0x2d0] sm:$0xff]
    %v434 = vld [vmem:[#allocation3 + $0x2d8] sm:$0xff]
    %v435 = vld [vmem:[#allocation3 + $0x2e0] sm:$0xff]
    %v436 = vld [vmem:[#allocation3 + $0x2e8] sm:$0xff]
    %v437 = vld [vmem:[#allocation3 + $0x2f0] sm:$0xff]
    %v438 = vld [vmem:[#allocation3 + $0x2f8] sm:$0xff]
    %v439 = vld [vmem:[#allocation3 + $0x300] sm:$0xff]
    %v440 = vld [vmem:[#allocation3 + $0x308] sm:$0xff]
    %v441 = vld [vmem:[#allocation3 + $0x310] sm:$0xff]
    %v442 = vld [vmem:[#allocation3 + $0x318] sm:$0xff]
    %v443 = vld [vmem:[#allocation3 + $0x320] sm:$0xff]
    %v444 = vld [vmem:[#allocation3 + $0x328] sm:$0xff]
    %v445 = vld [vmem:[#allocation3 + $0x330] sm:$0xff]
    %v446 = vld [vmem:[#allocation3 + $0x338] sm:$0xff]
    %v447 = vld [vmem:[#allocation3 + $0x340] sm:$0xff]
    %v448 = vld [vmem:[#allocation3 + $0x348] sm:$0xff]
    %v449 = vld [vmem:[#allocation3 + $0x350] sm:$0xff]
    %v450 = vld [vmem:[#allocation3 + $0x358] sm:$0xff]
    %v451 = vld [vmem:[#allocation3 + $0x360] sm:$0xff]
    %v452 = vld [vmem:[#allocation3 + $0x368] sm:$0xff]
    %v453 = vld [vmem:[#allocation3 + $0x370] sm:$0xff]
    %v454 = vld [vmem:[#allocation3 + $0x378] sm:$0xff]
    %v455 = vld [vmem:[#allocation3 + $0x380] sm:$0xff]
    %v456 = vld [vmem:[#allocation3 + $0x388] sm:$0xff]
    %v457 = vld [vmem:[#allocation3 + $0x390] sm:$0xff]
    %v458 = vld [vmem:[#allocation3 + $0x398] sm:$0xff]
    %v459 = vld [vmem:[#allocation3 + $0x3a0] sm:$0xff]
    %v460 = vld [vmem:[#allocation3 + $0x3a8] sm:$0xff]
    %v461 = vld [vmem:[#allocation3 + $0x3b0] sm:$0xff]
    %v462 = vld [vmem:[#allocation3 + $0x3b8] sm:$0xff]
    %v463 = vld [vmem:[#allocation3 + $0x3c0] sm:$0xff]
    %v464 = vld [vmem:[#allocation3 + $0x3c8] sm:$0xff]
    %v465 = vld [vmem:[#allocation3 + $0x3d0] sm:$0xff]
    %v466 = vld [vmem:[#allocation3 + $0x3d8] sm:$0xff]
    %v467 = vld [vmem:[#allocation3 + $0x3e0] sm:$0xff]
    %v468 = vld [vmem:[#allocation3 + $0x3e8] sm:$0xff]
    %v469 = vld [vmem:[#allocation3 + $0x3f0] sm:$0xff]
    %v470 = vld [vmem:[#allocation3 + $0x3f8] sm:$0xff]
    %v471 = vld [vmem:[#allocation3 + $0x400] sm:$0xff]
    %v472 = vld [vmem:[#allocation3 + $0x408] sm:$0xff]
    %v473 = vld [vmem:[#allocation3 + $0x410] sm:$0xff]
    %v474 = vld [vmem:[#allocation3 + $0x418] sm:$0xff]
    %v475 = vld [vmem:[#allocation3 + $0x420] sm:$0xff]
    %v476 = vld [vmem:[#allocation3 + $0x428] sm:$0xff]
    %v477 = vld [vmem:[#allocation3 + $0x430] sm:$0xff]
    %v478 = vld [vmem:[#allocation3 + $0x438] sm:$0xff]
    %v479 = vld [vmem:[#allocation3 + $0x440] sm:$0xff]
    %v480 = vld [vmem:[#allocation3 + $0x448] sm:$0xff]
    %v481 = vld [vmem:[#allocation3 + $0x450] sm:$0xff]
    %v482 = vld [vmem:[#allocation3 + $0x458] sm:$0xff]
    %v483 = vld [vmem:[#allocation3 + $0x460] sm:$0xff]
    %v484 = vld [vmem:[#allocation3 + $0x468] sm:$0xff]
    %v485 = vld [vmem:[#allocation3 + $0x470] sm:$0xff]
    %v486 = vld [vmem:[#allocation3 + $0x478] sm:$0xff]
    %v487 = vld [vmem:[#allocation3 + $0x480] sm:$0xff]
    %v488 = vld [vmem:[#allocation3 + $0x488] sm:$0xff]
    %v489 = vld [vmem:[#allocation3 + $0x490] sm:$0xff]
    %v490 = vld [vmem:[#allocation3 + $0x498] sm:$0xff]
    %v491 = vld [vmem:[#allocation3 + $0x4a0] sm:$0xff]
    %v492 = vld [vmem:[#allocation3 + $0x4a8] sm:$0xff]
    %v493 = vld [vmem:[#allocation3 + $0x4b0] sm:$0xff]
    %v494 = vld [vmem:[#allocation3 + $0x4b8] sm:$0xff]
    %v495 = vld [vmem:[#allocation3 + $0x4c0] sm:$0xff]
    %v496 = vld [vmem:[#allocation3 + $0x4c8] sm:$0xff]
    %v497 = vld [vmem:[#allocation3 + $0x4d0] sm:$0xff]
    %v498 = vld [vmem:[#allocation3 + $0x4d8] sm:$0xff]
    %v499 = vld [vmem:[#allocation3 + $0x4e0] sm:$0xff]
    %v500 = vld [vmem:[#allocation3 + $0x4e8] sm:$0xff]
    %v501 = vld [vmem:[#allocation3 + $0x4f0] sm:$0xff]
    %v502 = vld [vmem:[#allocation3 + $0x4f8] sm:$0xff]
    %v503 = vld [vmem:[#allocation3 + $0x500] sm:$0xff]
    %v504 = vld [vmem:[#allocation3 + $0x508] sm:$0xff]
    %v505 = vld [vmem:[#allocation3 + $0x510] sm:$0xff]
    %v506 = vld [vmem:[#allocation3 + $0x518] sm:$0xff]
    %v507 = vld [vmem:[#allocation3 + $0x520] sm:$0xff]
    %v508 = vld [vmem:[#allocation3 + $0x528] sm:$0xff]
    %v509 = vld [vmem:[#allocation3 + $0x530] sm:$0xff]
    %v510 = vld [vmem:[#allocation3 + $0x538] sm:$0xff]
    %v511 = vld [vmem:[#allocation3 + $0x540] sm:$0xff]
    %v512 = vld [vmem:[#allocation3 + $0x548] sm:$0xff]
    %v513 = vld [vmem:[#allocation3 + $0x550] sm:$0xff]
    %v514 = vld [vmem:[#allocation3 + $0x558] sm:$0xff]
    %v515 = vld [vmem:[#allocation3 + $0x560] sm:$0xff]
    %v516 = vld [vmem:[#allocation3 + $0x568] sm:$0xff]
    %v517 = vld [vmem:[#allocation3 + $0x570] sm:$0xff]
    %v518 = vld [vmem:[#allocation3 + $0x578] sm:$0xff]
    %v519 = vld [vmem:[#allocation3 + $0x580] sm:$0xff]
    %v520 = vld [vmem:[#allocation3 + $0x588] sm:$0xff]
    %v521 = vld [vmem:[#allocation3 + $0x590] sm:$0xff]
    %v522 = vld [vmem:[#allocation3 + $0x598] sm:$0xff]
    %v523 = vld [vmem:[#allocation3 + $0x5a0] sm:$0xff]
    %v524 = vld [vmem:[#allocation3 + $0x5a8] sm:$0xff]
    %v525 = vld [vmem:[#allocation3 + $0x5b0] sm:$0xff]
    %v526 = vld [vmem:[#allocation3 + $0x5b8] sm:$0xff]
    %v527 = vld [vmem:[#allocation3 + $0x5c0] sm:$0xff]
    %v528 = vld [vmem:[#allocation3 + $0x5c8] sm:$0xff]
    %v529 = vld [vmem:[#allocation3 + $0x5d0] sm:$0xff]
    %v530 = vld [vmem:[#allocation3 + $0x5d8] sm:$0xff]
    %v531 = vld [vmem:[#allocation3 + $0x5e0] sm:$0xff]
    %v532 = vld [vmem:[#allocation3 + $0x5e8] sm:$0xff]
    %v533 = vld [vmem:[#allocation3 + $0x5f0] sm:$0xff]
    %v534 = vld [vmem:[#allocation3 + $0x5f8] sm:$0xff]
    %v535 = vld [vmem:[#allocation3 + $0x600] sm:$0xff]
    %v536 = vld [vmem:[#allocation3 + $0x608] sm:$0xff]
    %v537 = vld [vmem:[#allocation3 + $0x610] sm:$0xff]
    %v538 = vld [vmem:[#allocation3 + $0x618] sm:$0xff]
    %v539 = vld [vmem:[#allocation3 + $0x620] sm:$0xff]
    %v540 = vld [vmem:[#allocation3 + $0x628] sm:$0xff]
    %v541 = vld [vmem:[#allocation3 + $0x630] sm:$0xff]
    %v542 = vld [vmem:[#allocation3 + $0x638] sm:$0xff]
    %v543 = vld [vmem:[#allocation3 + $0x640] sm:$0xff]
    %v544 = vld [vmem:[#allocation3 + $0x648] sm:$0xff]
    %v545 = vld [vmem:[#allocation3 + $0x650] sm:$0xff]
    %v546 = vld [vmem:[#allocation3 + $0x658] sm:$0xff]
    %v547 = vld [vmem:[#allocation3 + $0x660] sm:$0xff]
    %v548 = vld [vmem:[#allocation3 + $0x668] sm:$0xff]
    %v549 = vld [vmem:[#allocation3 + $0x670] sm:$0xff]
    %v550 = vld [vmem:[#allocation3 + $0x678] sm:$0xff]
    %v551 = vld [vmem:[#allocation3 + $0x680] sm:$0xff]
    %v552 = vld [vmem:[#allocation3 + $0x688] sm:$0xff]
    %v553 = vld [vmem:[#allocation3 + $0x690] sm:$0xff]
    %v554 = vld [vmem:[#allocation3 + $0x698] sm:$0xff]
    %v555 = vld [vmem:[#allocation3 + $0x6a0] sm:$0xff]
    %v556 = vld [vmem:[#allocation3 + $0x6a8] sm:$0xff]
    %v557 = vld [vmem:[#allocation3 + $0x6b0] sm:$0xff]
    %v558 = vld [vmem:[#allocation3 + $0x6b8] sm:$0xff]
    %v559 = vld [vmem:[#allocation3 + $0x6c0] sm:$0xff]
    %v560 = vld [vmem:[#allocation3 + $0x6c8] sm:$0xff]
    %v561 = vld [vmem:[#allocation3 + $0x6d0] sm:$0xff]
    %v562 = vld [vmem:[#allocation3 + $0x6d8] sm:$0xff]
    %v563 = vld [vmem:[#allocation3 + $0x6e0] sm:$0xff]
    %v564 = vld [vmem:[#allocation3 + $0x6e8] sm:$0xff]
    %v565 = vld [vmem:[#allocation3 + $0x6f0] sm:$0xff]
    %v566 = vld [vmem:[#allocation3 + $0x6f8] sm:$0xff]
    %v567 = vld [vmem:[%s4] sm:$0xff]
    %v569 = vlaneseq
    %v570 = vshrl.u32 %v569, 7
    %v571 = vsub.s32 0, %v570
    %v572 = vrot.slane %v567, %v571
    %v573 = vlaneseq
    %v574 = vshrl.u32 %v573, 7
    %v575 = vsub.s32 1, %v574
    %v576 = vrot.slane %v567, %v575
    %v577 = vlaneseq
    %v578 = vshrl.u32 %v577, 7
    %v579 = vsub.s32 2, %v578
    %v580 = vrot.slane %v567, %v579
    %v581 = vlaneseq
    %v582 = vshrl.u32 %v581, 7
    %v583 = vsub.s32 3, %v582
    %v584 = vrot.slane %v567, %v583
    %v585 = vlaneseq
    %v586 = vshrl.u32 %v585, 7
    %v587 = vsub.s32 4, %v586
    %v588 = vrot.slane %v567, %v587
    %v589 = vlaneseq
    %v590 = vshrl.u32 %v589, 7
    %v591 = vsub.s32 5, %v590
    %v592 = vrot.slane %v567, %v591
    %v593 = vlaneseq
    %v594 = vshrl.u32 %v593, 7
    %v595 = vsub.s32 6, %v594
    %v596 = vrot.slane %v567, %v595
    %604 = vmatprep.subr.mxu0 %v449
    %605 = vmatpush1.msra.mxu0 %v448
    %606 = vmatprep.subr.mxu0 %v442
    %607 = vmatpush1.msra.mxu0 %v441
    %608 = vmatprep.subr.mxu0 %v435
    %609 = vmatpush1.msra.mxu0 %v434
    %610 = vmatprep.subr.mxu0 %v428
    %611 = vmatpush1.msra.mxu0 %v427
    %612 = vmatprep.subr.mxu0 %v421
    %613 = vmatpush1.msra.mxu0 %v420
    %614 = vmatprep.subr.mxu0 %v414
    %615 = vmatpush1.msra.mxu0 %v413
    %616 = vmatprep.subr.mxu0 %v407
    %617 = vmatpush1.msra.mxu0 %v406
    %618 = vmatprep.subr.mxu0 %v400
    %619 = vmatpush1.msra.mxu0 %v399
    %620 = vmatprep.subr.mxu0 %v393
    %621 = vmatpush1.msra.mxu0 %v392
    %622 = vmatprep.subr.mxu0 %v386
    %623 = vmatpush1.msra.mxu0 %v385
    %624 = vmatprep.subr.mxu0 %v379
    %625 = vmatpush1.msra.mxu0 %v378
    %626 = vmatprep.subr.mxu0 %v372
    %627 = vmatpush1.msra.mxu0 %v371
    %628 = vmatprep.subr.mxu0 %v365
    %629 = vmatpush1.msra.mxu0 %v364
    %630 = vmatprep.subr.mxu0 %v358
    %631 = vmatpush1.msra.mxu0 %v357
    %632 = vmatprep.subr.mxu0 %v351
    %633 = vmatpush1.msra.mxu0 %v350
    %634 = vmatprep.subr.mxu0 %v344
    %635 = vmatpush1.msra.mxu0 %v343
    %636 = vmatprep.subr.mxu0 %v561
    %637 = vmatpush2.msra.mxu0 %v560
    %638 = vmatprep.subr.mxu0 %v554
    %639 = vmatpush2.msra.mxu0 %v553
    %640 = vmatprep.subr.mxu0 %v547
    %641 = vmatpush2.msra.mxu0 %v546
    %642 = vmatprep.subr.mxu0 %v540
    %643 = vmatpush2.msra.mxu0 %v539
    %644 = vmatprep.subr.mxu0 %v533
    %645 = vmatpush2.msra.mxu0 %v532
    %646 = vmatprep.subr.mxu0 %v526
    %647 = vmatpush2.msra.mxu0 %v525
    %648 = vmatprep.subr.mxu0 %v519
    %649 = vmatpush2.msra.mxu0 %v518
    %650 = vmatprep.subr.mxu0 %v512
    %651 = vmatpush2.msra.mxu0 %v511
    %652 = vmatprep.subr.mxu0 %v505
    %653 = vmatpush2.msra.mxu0 %v504
    %654 = vmatprep.subr.mxu0 %v498
    %655 = vmatpush2.msra.mxu0 %v497
    %656 = vmatprep.subr.mxu0 %v491
    %657 = vmatpush2.msra.mxu0 %v490
    %658 = vmatprep.subr.mxu0 %v484
    %659 = vmatpush2.msra.mxu0 %v483
    %660 = vmatprep.subr.mxu0 %v477
    %661 = vmatpush2.msra.mxu0 %v476
    %662 = vmatprep.subr.mxu0 %v470
    %663 = vmatpush2.msra.mxu0 %v469
    %664 = vmatprep.subr.mxu0 %v463
    %665 = vmatpush2.msra.mxu0 %v462
    %666 = vmatprep.subr.mxu0 %v456
    %667 = vmatpush2.msra.mxu0 %v455
    %668 = vmatprep.mubr.f32.mxu0 %v312
    %669 = vmatmul.mubr.f32.gmra.mxu0 %v311
    %v670 = vpop.f32.mrf.mxu0
    %v671 = vadd.f32 %v572, %v670
    %v672 = vpop.f32.mrf.mxu0
    %v673 = vadd.f32 %v576, %v672
    %674 = vmatprep.mubr.f32.mxu0 %v314
    %675 = vmatmul.mubr.f32.gmra.mxu0 %v313
    %v676 = vpop.f32.mrf.mxu0
    %v677 = vadd.f32 %v572, %v676
    %v678 = vpop.f32.mrf.mxu0
    %v679 = vadd.f32 %v576, %v678
    %680 = vmatprep.mubr.f32.mxu0 %v316
    %681 = vmatmul.mubr.f32.gmra.mxu0 %v315
    %v682 = vpop.f32.mrf.mxu0
    %v683 = vadd.f32 %v572, %v682
    %v684 = vpop.f32.mrf.mxu0
    %v685 = vadd.f32 %v576, %v684
    %686 = vmatprep.mubr.f32.mxu0 %v318
    %687 = vmatmul.mubr.f32.gmra.mxu0 %v317
    %v688 = vpop.f32.mrf.mxu0
    %v689 = vadd.f32 %v572, %v688
    %v690 = vpop.f32.mrf.mxu0
    %v691 = vadd.f32 %v576, %v690
    %692 = vmatprep.mubr.f32.mxu0 %v320
    %693 = vmatmul.mubr.f32.gmra.mxu0 %v319
    %v694 = vpop.f32.mrf.mxu0
    %v695 = vadd.f32 %v572, %v694
    %v696 = vpop.f32.mrf.mxu0
    %v697 = vadd.f32 %v576, %v696
    %698 = vmatprep.mubr.f32.mxu0 %v322
    %699 = vmatmul.mubr.f32.gmra.mxu0 %v321
    %v700 = vpop.f32.mrf.mxu0
    %v701 = vadd.f32 %v572, %v700
    %v702 = vpop.f32.mrf.mxu0
    %v703 = vadd.f32 %v576, %v702
    %704 = vmatprep.mubr.f32.mxu0 %v324
    %705 = vmatmul.mubr.f32.gmra.mxu0 %v323
    %v706 = vpop.f32.mrf.mxu0
    %v707 = vadd.f32 %v572, %v706
    %v708 = vpop.f32.mrf.mxu0
    %v709 = vadd.f32 %v576, %v708
    %710 = vmatprep.mubr.f32.mxu0 %v326
    %711 = vmatmul.mubr.f32.gmra.mxu0 %v325
    %v712 = vpop.f32.mrf.mxu0
    %v713 = vadd.f32 %v572, %v712
    %v714 = vpop.f32.mrf.mxu0
    %v715 = vadd.f32 %v576, %v714
    %716 = vmatprep.mubr.f32.mxu0 %v328
    %717 = vmatmul.mubr.f32.gmra.mxu0 %v327
    %v718 = vpop.f32.mrf.mxu0
    %v719 = vadd.f32 %v572, %v718
    %v720 = vpop.f32.mrf.mxu0
    %v721 = vadd.f32 %v576, %v720
    %722 = vmatprep.mubr.f32.mxu0 %v330
    %723 = vmatmul.mubr.f32.gmra.mxu0 %v329
    %v724 = vpop.f32.mrf.mxu0
    %v725 = vadd.f32 %v572, %v724
    %v726 = vpop.f32.mrf.mxu0
    %v727 = vadd.f32 %v576, %v726
    %728 = vmatprep.mubr.f32.mxu0 %v332
    %729 = vmatmul.mubr.f32.gmra.mxu0 %v331
    %v730 = vpop.f32.mrf.mxu0
    %v731 = vadd.f32 %v572, %v730
    %v732 = vpop.f32.mrf.mxu0
    %v733 = vadd.f32 %v576, %v732
    %734 = vmatprep.mubr.f32.mxu0 %v334
    %735 = vmatmul.mubr.f32.gmra.mxu0 %v333
    %v736 = vpop.f32.mrf.mxu0
    %v737 = vadd.f32 %v572, %v736
    %v738 = vpop.f32.mrf.mxu0
    %v739 = vadd.f32 %v576, %v738
    %740 = vmatprep.mubr.f32.mxu0 %v336
    %741 = vmatmul.mubr.f32.gmra.mxu0 %v335
    %v742 = vpop.f32.mrf.mxu0
    %v743 = vadd.f32 %v572, %v742
    %v744 = vpop.f32.mrf.mxu0
    %v745 = vadd.f32 %v576, %v744
    %746 = vmatprep.mubr.f32.mxu0 %v338
    %747 = vmatmul.mubr.f32.gmra.mxu0 %v337
    %v748 = vpop.f32.mrf.mxu0
    %v749 = vadd.f32 %v572, %v748
    %v750 = vpop.f32.mrf.mxu0
    %v751 = vadd.f32 %v576, %v750
    %752 = vmatprep.mubr.f32.mxu0 %v340
    %753 = vmatmul.mubr.f32.gmra.mxu0 %v339
    %v754 = vpop.f32.mrf.mxu0
    %v755 = vadd.f32 %v572, %v754
    %v756 = vpop.f32.mrf.mxu0
    %v757 = vadd.f32 %v576, %v756
    %758 = vmatprep.mubr.f32.mxu0 %v342
    %759 = vmatmul.mubr.f32.gmra.mxu0 %v341
    %v760 = vpop.f32.mrf.mxu0
    %v761 = vadd.f32 %v572, %v760
    %v762 = vpop.f32.mrf.mxu0
    %v763 = vadd.f32 %v576, %v762
    %764 = vdwg.mxu0
    %765 = vmatprep.subr.mxu0 %v451
    %766 = vmatpush1.msra.mxu0 %v450
    %767 = vmatprep.subr.mxu0 %v444
    %768 = vmatpush1.msra.mxu0 %v443
    %769 = vmatprep.subr.mxu0 %v437
    %770 = vmatpush1.msra.mxu0 %v436
    %771 = vmatprep.subr.mxu0 %v430
    %772 = vmatpush1.msra.mxu0 %v429
    %773 = vmatprep.subr.mxu0 %v423
    %774 = vmatpush1.msra.mxu0 %v422
    %775 = vmatprep.subr.mxu0 %v416
    %776 = vmatpush1.msra.mxu0 %v415
    %777 = vmatprep.subr.mxu0 %v409
    %778 = vmatpush1.msra.mxu0 %v408
    %779 = vmatprep.subr.mxu0 %v402
    %780 = vmatpush1.msra.mxu0 %v401
    %781 = vmatprep.subr.mxu0 %v395
    %782 = vmatpush1.msra.mxu0 %v394
    %783 = vmatprep.subr.mxu0 %v388
    %784 = vmatpush1.msra.mxu0 %v387
    %785 = vmatprep.subr.mxu0 %v381
    %786 = vmatpush1.msra.mxu0 %v380
    %787 = vmatprep.subr.mxu0 %v374
    %788 = vmatpush1.msra.mxu0 %v373
    %789 = vmatprep.subr.mxu0 %v367
    %790 = vmatpush1.msra.mxu0 %v366
    %791 = vmatprep.subr.mxu0 %v360
    %792 = vmatpush1.msra.mxu0 %v359
    %793 = vmatprep.subr.mxu0 %v353
    %794 = vmatpush1.msra.mxu0 %v352
    %795 = vmatprep.subr.mxu0 %v346
    %796 = vmatpush1.msra.mxu0 %v345
    %797 = vmatprep.subr.mxu0 %v563
    %798 = vmatpush2.msra.mxu0 %v562
    %799 = vmatprep.subr.mxu0 %v556
    %800 = vmatpush2.msra.mxu0 %v555
    %801 = vmatprep.subr.mxu0 %v549
    %802 = vmatpush2.msra.mxu0 %v548
    %803 = vmatprep.subr.mxu0 %v542
    %804 = vmatpush2.msra.mxu0 %v541
    %805 = vmatprep.subr.mxu0 %v535
    %806 = vmatpush2.msra.mxu0 %v534
    %807 = vmatprep.subr.mxu0 %v528
    %808 = vmatpush2.msra.mxu0 %v527
    %809 = vmatprep.subr.mxu0 %v521
    %810 = vmatpush2.msra.mxu0 %v520
    %811 = vmatprep.subr.mxu0 %v514
    %812 = vmatpush2.msra.mxu0 %v513
    %813 = vmatprep.subr.mxu0 %v507
    %814 = vmatpush2.msra.mxu0 %v506
    %815 = vmatprep.subr.mxu0 %v500
    %816 = vmatpush2.msra.mxu0 %v499
    %817 = vmatprep.subr.mxu0 %v493
    %818 = vmatpush2.msra.mxu0 %v492
    %819 = vmatprep.subr.mxu0 %v486
    %820 = vmatpush2.msra.mxu0 %v485
    %821 = vmatprep.subr.mxu0 %v479
    %822 = vmatpush2.msra.mxu0 %v478
    %823 = vmatprep.subr.mxu0 %v472
    %824 = vmatpush2.msra.mxu0 %v471
    %825 = vmatprep.subr.mxu0 %v465
    %826 = vmatpush2.msra.mxu0 %v464
    %827 = vmatprep.subr.mxu0 %v458
    %828 = vmatpush2.msra.mxu0 %v457
    %829 = vmatprep.mubr.f32.mxu0 %v312
    %830 = vmatmul.mubr.f32.gmra.mxu0 %v311
    %v831 = vpop.f32.mrf.mxu0
    %v832 = vadd.f32 %v580, %v831
    %v833 = vpop.f32.mrf.mxu0
    %v834 = vadd.f32 %v584, %v833
    %835 = vmatprep.mubr.f32.mxu0 %v314
    %836 = vmatmul.mubr.f32.gmra.mxu0 %v313
    %v837 = vpop.f32.mrf.mxu0
    %v838 = vadd.f32 %v580, %v837
    %v839 = vpop.f32.mrf.mxu0
    %v840 = vadd.f32 %v584, %v839
    %841 = vmatprep.mubr.f32.mxu0 %v316
    %842 = vmatmul.mubr.f32.gmra.mxu0 %v315
    %v843 = vpop.f32.mrf.mxu0
    %v844 = vadd.f32 %v580, %v843
    %v845 = vpop.f32.mrf.mxu0
    %v846 = vadd.f32 %v584, %v845
    %847 = vmatprep.mubr.f32.mxu0 %v318
    %848 = vmatmul.mubr.f32.gmra.mxu0 %v317
    %v849 = vpop.f32.mrf.mxu0
    %v850 = vadd.f32 %v580, %v849
    %v851 = vpop.f32.mrf.mxu0
    %v852 = vadd.f32 %v584, %v851
    %853 = vmatprep.mubr.f32.mxu0 %v320
    %854 = vmatmul.mubr.f32.gmra.mxu0 %v319
    %v855 = vpop.f32.mrf.mxu0
    %v856 = vadd.f32 %v580, %v855
    %v857 = vpop.f32.mrf.mxu0
    %v858 = vadd.f32 %v584, %v857
    %859 = vmatprep.mubr.f32.mxu0 %v322
    %860 = vmatmul.mubr.f32.gmra.mxu0 %v321
    %v861 = vpop.f32.mrf.mxu0
    %v862 = vadd.f32 %v580, %v861
    %v863 = vpop.f32.mrf.mxu0
    %v864 = vadd.f32 %v584, %v863
    %865 = vmatprep.mubr.f32.mxu0 %v324
    %866 = vmatmul.mubr.f32.gmra.mxu0 %v323
    %v867 = vpop.f32.mrf.mxu0
    %v868 = vadd.f32 %v580, %v867
    %v869 = vpop.f32.mrf.mxu0
    %v870 = vadd.f32 %v584, %v869
    %871 = vmatprep.mubr.f32.mxu0 %v326
    %872 = vmatmul.mubr.f32.gmra.mxu0 %v325
    %v873 = vpop.f32.mrf.mxu0
    %v874 = vadd.f32 %v580, %v873
    %v875 = vpop.f32.mrf.mxu0
    %v876 = vadd.f32 %v584, %v875
    %877 = vmatprep.mubr.f32.mxu0 %v328
    %878 = vmatmul.mubr.f32.gmra.mxu0 %v327
    %v879 = vpop.f32.mrf.mxu0
    %v880 = vadd.f32 %v580, %v879
    %v881 = vpop.f32.mrf.mxu0
    %v882 = vadd.f32 %v584, %v881
    %883 = vmatprep.mubr.f32.mxu0 %v330
    %884 = vmatmul.mubr.f32.gmra.mxu0 %v329
    %v885 = vpop.f32.mrf.mxu0
    %v886 = vadd.f32 %v580, %v885
    %v887 = vpop.f32.mrf.mxu0
    %v888 = vadd.f32 %v584, %v887
    %889 = vmatprep.mubr.f32.mxu0 %v332
    %890 = vmatmul.mubr.f32.gmra.mxu0 %v331
    %v891 = vpop.f32.mrf.mxu0
    %v892 = vadd.f32 %v580, %v891
    %v893 = vpop.f32.mrf.mxu0
    %v894 = vadd.f32 %v584, %v893
    %895 = vmatprep.mubr.f32.mxu0 %v334
    %896 = vmatmul.mubr.f32.gmra.mxu0 %v333
    %v897 = vpop.f32.mrf.mxu0
    %v898 = vadd.f32 %v580, %v897
    %v899 = vpop.f32.mrf.mxu0
    %v900 = vadd.f32 %v584, %v899
    %901 = vmatprep.mubr.f32.mxu0 %v336
    %902 = vmatmul.mubr.f32.gmra.mxu0 %v335
    %v903 = vpop.f32.mrf.mxu0
    %v904 = vadd.f32 %v580, %v903
    %v905 = vpop.f32.mrf.mxu0
    %v906 = vadd.f32 %v584, %v905
    %907 = vmatprep.mubr.f32.mxu0 %v338
    %908 = vmatmul.mubr.f32.gmra.mxu0 %v337
    %v909 = vpop.f32.mrf.mxu0
    %v910 = vadd.f32 %v580, %v909
    %v911 = vpop.f32.mrf.mxu0
    %v912 = vadd.f32 %v584, %v911
    %913 = vmatprep.mubr.f32.mxu0 %v340
    %914 = vmatmul.mubr.f32.gmra.mxu0 %v339
    %v915 = vpop.f32.mrf.mxu0
    %v916 = vadd.f32 %v580, %v915
    %v917 = vpop.f32.mrf.mxu0
    %v918 = vadd.f32 %v584, %v917
    %919 = vmatprep.mubr.f32.mxu0 %v342
    %920 = vmatmul.mubr.f32.gmra.mxu0 %v341
    %v921 = vpop.f32.mrf.mxu0
    %v922 = vadd.f32 %v580, %v921
    %v923 = vpop.f32.mrf.mxu0
    %v924 = vadd.f32 %v584, %v923
    %925 = vdwg.mxu0
    %926 = vmatprep.subr.mxu0 %v453
    %927 = vmatpush1.msra.mxu0 %v452
    %928 = vmatprep.subr.mxu0 %v446
    %929 = vmatpush1.msra.mxu0 %v445
    %930 = vmatprep.subr.mxu0 %v439
    %931 = vmatpush1.msra.mxu0 %v438
    %932 = vmatprep.subr.mxu0 %v432
    %933 = vmatpush1.msra.mxu0 %v431
    %934 = vmatprep.subr.mxu0 %v425
    %935 = vmatpush1.msra.mxu0 %v424
    %936 = vmatprep.subr.mxu0 %v418
    %937 = vmatpush1.msra.mxu0 %v417
    %938 = vmatprep.subr.mxu0 %v411
    %939 = vmatpush1.msra.mxu0 %v410
    %940 = vmatprep.subr.mxu0 %v404
    %941 = vmatpush1.msra.mxu0 %v403
    %942 = vmatprep.subr.mxu0 %v397
    %943 = vmatpush1.msra.mxu0 %v396
    %944 = vmatprep.subr.mxu0 %v390
    %945 = vmatpush1.msra.mxu0 %v389
    %946 = vmatprep.subr.mxu0 %v383
    %947 = vmatpush1.msra.mxu0 %v382
    %948 = vmatprep.subr.mxu0 %v376
    %949 = vmatpush1.msra.mxu0 %v375
    %950 = vmatprep.subr.mxu0 %v369
    %951 = vmatpush1.msra.mxu0 %v368
    %952 = vmatprep.subr.mxu0 %v362
    %953 = vmatpush1.msra.mxu0 %v361
    %954 = vmatprep.subr.mxu0 %v355
    %955 = vmatpush1.msra.mxu0 %v354
    %956 = vmatprep.subr.mxu0 %v348
    %957 = vmatpush1.msra.mxu0 %v347
    %958 = vmatprep.subr.mxu0 %v565
    %959 = vmatpush2.msra.mxu0 %v564
    %960 = vmatprep.subr.mxu0 %v558
    %961 = vmatpush2.msra.mxu0 %v557
    %962 = vmatprep.subr.mxu0 %v551
    %963 = vmatpush2.msra.mxu0 %v550
    %964 = vmatprep.subr.mxu0 %v544
    %965 = vmatpush2.msra.mxu0 %v543
    %966 = vmatprep.subr.mxu0 %v537
    %967 = vmatpush2.msra.mxu0 %v536
    %968 = vmatprep.subr.mxu0 %v530
    %969 = vmatpush2.msra.mxu0 %v529
    %970 = vmatprep.subr.mxu0 %v523
    %971 = vmatpush2.msra.mxu0 %v522
    %972 = vmatprep.subr.mxu0 %v516
    %973 = vmatpush2.msra.mxu0 %v515
    %974 = vmatprep.subr.mxu0 %v509
    %975 = vmatpush2.msra.mxu0 %v508
    %976 = vmatprep.subr.mxu0 %v502
    %977 = vmatpush2.msra.mxu0 %v501
    %978 = vmatprep.subr.mxu0 %v495
    %979 = vmatpush2.msra.mxu0 %v494
    %980 = vmatprep.subr.mxu0 %v488
    %981 = vmatpush2.msra.mxu0 %v487
    %982 = vmatprep.subr.mxu0 %v481
    %983 = vmatpush2.msra.mxu0 %v480
    %984 = vmatprep.subr.mxu0 %v474
    %985 = vmatpush2.msra.mxu0 %v473
    %986 = vmatprep.subr.mxu0 %v467
    %987 = vmatpush2.msra.mxu0 %v466
    %988 = vmatprep.subr.mxu0 %v460
    %989 = vmatpush2.msra.mxu0 %v459
    %990 = vmatprep.mubr.f32.mxu0 %v312
    %991 = vmatmul.mubr.f32.gmra.mxu0 %v311
    %v992 = vpop.f32.mrf.mxu0
    %v993 = vadd.f32 %v588, %v992
    %v994 = vpop.f32.mrf.mxu0
    %v995 = vadd.f32 %v592, %v994
    %996 = vmatprep.mubr.f32.mxu0 %v314
    %997 = vmatmul.mubr.f32.gmra.mxu0 %v313
    %v998 = vpop.f32.mrf.mxu0
    %v999 = vadd.f32 %v588, %v998
    %v1000 = vpop.f32.mrf.mxu0
    %v1001 = vadd.f32 %v592, %v1000
    %1002 = vmatprep.mubr.f32.mxu0 %v316
    %1003 = vmatmul.mubr.f32.gmra.mxu0 %v315
    %v1004 = vpop.f32.mrf.mxu0
    %v1005 = vadd.f32 %v588, %v1004
    %v1006 = vpop.f32.mrf.mxu0
    %v1007 = vadd.f32 %v592, %v1006
    %1008 = vmatprep.mubr.f32.mxu0 %v318
    %1009 = vmatmul.mubr.f32.gmra.mxu0 %v317
    %v1010 = vpop.f32.mrf.mxu0
    %v1011 = vadd.f32 %v588, %v1010
    %v1012 = vpop.f32.mrf.mxu0
    %v1013 = vadd.f32 %v592, %v1012
    %1014 = vmatprep.mubr.f32.mxu0 %v320
    %1015 = vmatmul.mubr.f32.gmra.mxu0 %v319
    %v1016 = vpop.f32.mrf.mxu0
    %v1017 = vadd.f32 %v588, %v1016
    %v1018 = vpop.f32.mrf.mxu0
    %v1019 = vadd.f32 %v592, %v1018
    %1020 = vmatprep.mubr.f32.mxu0 %v322
    %1021 = vmatmul.mubr.f32.gmra.mxu0 %v321
    %v1022 = vpop.f32.mrf.mxu0
    %v1023 = vadd.f32 %v588, %v1022
    %v1024 = vpop.f32.mrf.mxu0
    %v1025 = vadd.f32 %v592, %v1024
    %1026 = vmatprep.mubr.f32.mxu0 %v324
    %1027 = vmatmul.mubr.f32.gmra.mxu0 %v323
    %v1028 = vpop.f32.mrf.mxu0
    %v1029 = vadd.f32 %v588, %v1028
    %v1030 = vpop.f32.mrf.mxu0
    %v1031 = vadd.f32 %v592, %v1030
    %1032 = vmatprep.mubr.f32.mxu0 %v326
    %1033 = vmatmul.mubr.f32.gmra.mxu0 %v325
    %v1034 = vpop.f32.mrf.mxu0
    %v1035 = vadd.f32 %v588, %v1034
    %v1036 = vpop.f32.mrf.mxu0
    %v1037 = vadd.f32 %v592, %v1036
    %1038 = vmatprep.mubr.f32.mxu0 %v328
    %1039 = vmatmul.mubr.f32.gmra.mxu0 %v327
    %v1040 = vpop.f32.mrf.mxu0
    %v1041 = vadd.f32 %v588, %v1040
    %v1042 = vpop.f32.mrf.mxu0
    %v1043 = vadd.f32 %v592, %v1042
    %1044 = vmatprep.mubr.f32.mxu0 %v330
    %1045 = vmatmul.mubr.f32.gmra.mxu0 %v329
    %v1046 = vpop.f32.mrf.mxu0
    %v1047 = vadd.f32 %v588, %v1046
    %v1048 = vpop.f32.mrf.mxu0
    %v1049 = vadd.f32 %v592, %v1048
    %1050 = vmatprep.mubr.f32.mxu0 %v332
    %1051 = vmatmul.mubr.f32.gmra.mxu0 %v331
    %v1052 = vpop.f32.mrf.mxu0
    %v1053 = vadd.f32 %v588, %v1052
    %v1054 = vpop.f32.mrf.mxu0
    %v1055 = vadd.f32 %v592, %v1054
    %1056 = vmatprep.mubr.f32.mxu0 %v334
    %1057 = vmatmul.mubr.f32.gmra.mxu0 %v333
    %v1058 = vpop.f32.mrf.mxu0
    %v1059 = vadd.f32 %v588, %v1058
    %v1060 = vpop.f32.mrf.mxu0
    %v1061 = vadd.f32 %v592, %v1060
    %1062 = vmatprep.mubr.f32.mxu0 %v336
    %1063 = vmatmul.mubr.f32.gmra.mxu0 %v335
    %v1064 = vpop.f32.mrf.mxu0
    %v1065 = vadd.f32 %v588, %v1064
    %v1066 = vpop.f32.mrf.mxu0
    %v1067 = vadd.f32 %v592, %v1066
    %1068 = vmatprep.mubr.f32.mxu0 %v338
    %1069 = vmatmul.mubr.f32.gmra.mxu0 %v337
    %v1070 = vpop.f32.mrf.mxu0
    %v1071 = vadd.f32 %v588, %v1070
    %v1072 = vpop.f32.mrf.mxu0
    %v1073 = vadd.f32 %v592, %v1072
    %1074 = vmatprep.mubr.f32.mxu0 %v340
    %1075 = vmatmul.mubr.f32.gmra.mxu0 %v339
    %v1076 = vpop.f32.mrf.mxu0
    %v1077 = vadd.f32 %v588, %v1076
    %v1078 = vpop.f32.mrf.mxu0
    %v1079 = vadd.f32 %v592, %v1078
    %1080 = vmatprep.mubr.f32.mxu0 %v342
    %1081 = vmatmul.mubr.f32.gmra.mxu0 %v341
    %v1082 = vpop.f32.mrf.mxu0
    %v1083 = vadd.f32 %v588, %v1082
    %v1084 = vpop.f32.mrf.mxu0
    %v1085 = vadd.f32 %v592, %v1084
    %1086 = vdwg.mxu0
    %1087 = vmatprep.subr.mxu0 0.0
    %1088 = vmatpush1.msra.mxu0 %v454
    %1089 = vmatprep.subr.mxu0 0.0
    %1090 = vmatpush1.msra.mxu0 %v447
    %1091 = vmatprep.subr.mxu0 0.0
    %1092 = vmatpush1.msra.mxu0 %v440
    %1093 = vmatprep.subr.mxu0 0.0
    %1094 = vmatpush1.msra.mxu0 %v433
    %1095 = vmatprep.subr.mxu0 0.0
    %1096 = vmatpush1.msra.mxu0 %v426
    %1097 = vmatprep.subr.mxu0 0.0
    %1098 = vmatpush1.msra.mxu0 %v419
    %1099 = vmatprep.subr.mxu0 0.0
    %1100 = vmatpush1.msra.mxu0 %v412
    %1101 = vmatprep.subr.mxu0 0.0
    %1102 = vmatpush1.msra.mxu0 %v405
    %1103 = vmatprep.subr.mxu0 0.0
    %1104 = vmatpush1.msra.mxu0 %v398
    %1105 = vmatprep.subr.mxu0 0.0
    %1106 = vmatpush1.msra.mxu0 %v391
    %1107 = vmatprep.subr.mxu0 0.0
    %1108 = vmatpush1.msra.mxu0 %v384
    %1109 = vmatprep.subr.mxu0 0.0
    %1110 = vmatpush1.msra.mxu0 %v377
    %1111 = vmatprep.subr.mxu0 0.0
    %1112 = vmatpush1.msra.mxu0 %v370
    %1113 = vmatprep.subr.mxu0 0.0
    %1114 = vmatpush1.msra.mxu0 %v363
    %1115 = vmatprep.subr.mxu0 0.0
    %1116 = vmatpush1.msra.mxu0 %v356
    %1117 = vmatprep.subr.mxu0 0.0
    %1118 = vmatpush1.msra.mxu0 %v349
    %1119 = vmatprep.subr.mxu0 0.0
    %1120 = vmatpush2.msra.mxu0 %v566
    %1121 = vmatprep.subr.mxu0 0.0
    %1122 = vmatpush2.msra.mxu0 %v559
    %1123 = vmatprep.subr.mxu0 0.0
    %1124 = vmatpush2.msra.mxu0 %v552
    %1125 = vmatprep.subr.mxu0 0.0
    %1126 = vmatpush2.msra.mxu0 %v545
    %1127 = vmatprep.subr.mxu0 0.0
    %1128 = vmatpush2.msra.mxu0 %v538
    %1129 = vmatprep.subr.mxu0 0.0
    %1130 = vmatpush2.msra.mxu0 %v531
    %1131 = vmatprep.subr.mxu0 0.0
    %1132 = vmatpush2.msra.mxu0 %v524
    %1133 = vmatprep.subr.mxu0 0.0
    %1134 = vmatpush2.msra.mxu0 %v517
    %1135 = vmatprep.subr.mxu0 0.0
    %1136 = vmatpush2.msra.mxu0 %v510
    %1137 = vmatprep.subr.mxu0 0.0
    %1138 = vmatpush2.msra.mxu0 %v503
    %1139 = vmatprep.subr.mxu0 0.0
    %1140 = vmatpush2.msra.mxu0 %v496
    %1141 = vmatprep.subr.mxu0 0.0
    %1142 = vmatpush2.msra.mxu0 %v489
    %1143 = vmatprep.subr.mxu0 0.0
    %1144 = vmatpush2.msra.mxu0 %v482
    %1145 = vmatprep.subr.mxu0 0.0
    %1146 = vmatpush2.msra.mxu0 %v475
    %1147 = vmatprep.subr.mxu0 0.0
    %1148 = vmatpush2.msra.mxu0 %v468
    %1149 = vmatprep.subr.mxu0 0.0
    %1150 = vmatpush2.msra.mxu0 %v461
    %1151 = vmatprep.mubr.f32.mxu0 %v312
    %1152 = vmatmul.mubr.f32.gmra.mxu0 %v311
    %v1153 = vpop.f32.mrf.mxu0
    %v1154 = vadd.f32 %v596, %v1153
    %v1155 = vpop.f32.mrf.mxu0
    %1156 = vmatprep.mubr.f32.mxu0 %v314
    %1157 = vmatmul.mubr.f32.gmra.mxu0 %v313
    %v1158 = vpop.f32.mrf.mxu0
    %v1159 = vadd.f32 %v596, %v1158
    %v1160 = vpop.f32.mrf.mxu0
    %1161 = vmatprep.mubr.f32.mxu0 %v316
    %1162 = vmatmul.mubr.f32.gmra.mxu0 %v315
    %v1163 = vpop.f32.mrf.mxu0
    %v1164 = vadd.f32 %v596, %v1163
    %v1165 = vpop.f32.mrf.mxu0
    %1166 = vmatprep.mubr.f32.mxu0 %v318
    %1167 = vmatmul.mubr.f32.gmra.mxu0 %v317
    %v1168 = vpop.f32.mrf.mxu0
    %v1169 = vadd.f32 %v596, %v1168
    %v1170 = vpop.f32.mrf.mxu0
    %1171 = vmatprep.mubr.f32.mxu0 %v320
    %1172 = vmatmul.mubr.f32.gmra.mxu0 %v319
    %v1173 = vpop.f32.mrf.mxu0
    %v1174 = vadd.f32 %v596, %v1173
    %v1175 = vpop.f32.mrf.mxu0
    %1176 = vmatprep.mubr.f32.mxu0 %v322
    %1177 = vmatmul.mubr.f32.gmra.mxu0 %v321
    %v1178 = vpop.f32.mrf.mxu0
    %v1179 = vadd.f32 %v596, %v1178
    %v1180 = vpop.f32.mrf.mxu0
    %1181 = vmatprep.mubr.f32.mxu0 %v324
    %1182 = vmatmul.mubr.f32.gmra.mxu0 %v323
    %v1183 = vpop.f32.mrf.mxu0
    %v1184 = vadd.f32 %v596, %v1183
    %v1185 = vpop.f32.mrf.mxu0
    %1186 = vmatprep.mubr.f32.mxu0 %v326
    %1187 = vmatmul.mubr.f32.gmra.mxu0 %v325
    %v1188 = vpop.f32.mrf.mxu0
    %v1189 = vadd.f32 %v596, %v1188
    %v1190 = vpop.f32.mrf.mxu0
    %1191 = vmatprep.mubr.f32.mxu0 %v328
    %1192 = vmatmul.mubr.f32.gmra.mxu0 %v327
    %v1193 = vpop.f32.mrf.mxu0
    %v1194 = vadd.f32 %v596, %v1193
    %v1195 = vpop.f32.mrf.mxu0
    %1196 = vmatprep.mubr.f32.mxu0 %v330
    %1197 = vmatmul.mubr.f32.gmra.mxu0 %v329
    %v1198 = vpop.f32.mrf.mxu0
    %v1199 = vadd.f32 %v596, %v1198
    %v1200 = vpop.f32.mrf.mxu0
    %1201 = vmatprep.mubr.f32.mxu0 %v332
    %1202 = vmatmul.mubr.f32.gmra.mxu0 %v331
    %v1203 = vpop.f32.mrf.mxu0
    %v1204 = vadd.f32 %v596, %v1203
    %v1205 = vpop.f32.mrf.mxu0
    %1206 = vmatprep.mubr.f32.mxu0 %v334
    %1207 = vmatmul.mubr.f32.gmra.mxu0 %v333
    %v1208 = vpop.f32.mrf.mxu0
    %v1209 = vadd.f32 %v596, %v1208
    %v1210 = vpop.f32.mrf.mxu0
    %1211 = vmatprep.mubr.f32.mxu0 %v336
    %1212 = vmatmul.mubr.f32.gmra.mxu0 %v335
    %v1213 = vpop.f32.mrf.mxu0
    %v1214 = vadd.f32 %v596, %v1213
    %v1215 = vpop.f32.mrf.mxu0
    %1216 = vmatprep.mubr.f32.mxu0 %v338
    %1217 = vmatmul.mubr.f32.gmra.mxu0 %v337
    %v1218 = vpop.f32.mrf.mxu0
    %v1219 = vadd.f32 %v596, %v1218
    %v1220 = vpop.f32.mrf.mxu0
    %1221 = vmatprep.mubr.f32.mxu0 %v340
    %1222 = vmatmul.mubr.f32.gmra.mxu0 %v339
    %v1223 = vpop.f32.mrf.mxu0
    %v1224 = vadd.f32 %v596, %v1223
    %v1225 = vpop.f32.mrf.mxu0
    %1226 = vmatprep.mubr.f32.mxu0 %v342
    %1227 = vmatmul.mubr.f32.gmra.mxu0 %v341
    %v1228 = vpop.f32.mrf.mxu0
    %v1229 = vadd.f32 %v596, %v1228
    %v1230 = vpop.f32.mrf.mxu0
    %1231 = vdwg.mxu0
    %v1232 = vmax.f32 %v671, 0.0
    %v1233 = vmax.f32 %v673, 0.0
    %v1234 = vmax.f32 %v832, 0.0
    %v1235 = vmax.f32 %v834, 0.0
    %v1236 = vmax.f32 %v993, 0.0
    %v1237 = vmax.f32 %v995, 0.0
    %v1238 = vmax.f32 %v1154, 0.0
    %v1239 = vmax.f32 %v677, 0.0
    %v1240 = vmax.f32 %v679, 0.0
    %v1241 = vmax.f32 %v838, 0.0
    %v1242 = vmax.f32 %v840, 0.0
    %v1243 = vmax.f32 %v999, 0.0
    %v1244 = vmax.f32 %v1001, 0.0
    %v1245 = vmax.f32 %v1159, 0.0
    %v1246 = vmax.f32 %v683, 0.0
    %v1247 = vmax.f32 %v685, 0.0
    %v1248 = vmax.f32 %v844, 0.0
    %v1249 = vmax.f32 %v846, 0.0
    %v1250 = vmax.f32 %v1005, 0.0
    %v1251 = vmax.f32 %v1007, 0.0
    %v1252 = vmax.f32 %v1164, 0.0
    %v1253 = vmax.f32 %v689, 0.0
    %v1254 = vmax.f32 %v691, 0.0
    %v1255 = vmax.f32 %v850, 0.0
    %v1256 = vmax.f32 %v852, 0.0
    %v1257 = vmax.f32 %v1011, 0.0
    %v1258 = vmax.f32 %v1013, 0.0
    %v1259 = vmax.f32 %v1169, 0.0
    %v1260 = vmax.f32 %v695, 0.0
    %v1261 = vmax.f32 %v697, 0.0
    %v1262 = vmax.f32 %v856, 0.0
    %v1263 = vmax.f32 %v858, 0.0
    %v1264 = vmax.f32 %v1017, 0.0
    %v1265 = vmax.f32 %v1019, 0.0
    %v1266 = vmax.f32 %v1174, 0.0
    %v1267 = vmax.f32 %v701, 0.0
    %v1268 = vmax.f32 %v703, 0.0
    %v1269 = vmax.f32 %v862, 0.0
    %v1270 = vmax.f32 %v864, 0.0
    %v1271 = vmax.f32 %v1023, 0.0
    %v1272 = vmax.f32 %v1025, 0.0
    %v1273 = vmax.f32 %v1179, 0.0
    %v1274 = vmax.f32 %v707, 0.0
    %v1275 = vmax.f32 %v709, 0.0
    %v1276 = vmax.f32 %v868, 0.0
    %v1277 = vmax.f32 %v870, 0.0
    %v1278 = vmax.f32 %v1029, 0.0
    %v1279 = vmax.f32 %v1031, 0.0
    %v1280 = vmax.f32 %v1184, 0.0
    %v1281 = vmax.f32 %v713, 0.0
    %v1282 = vmax.f32 %v715, 0.0
    %v1283 = vmax.f32 %v874, 0.0
    %v1284 = vmax.f32 %v876, 0.0
    %v1285 = vmax.f32 %v1035, 0.0
    %v1286 = vmax.f32 %v1037, 0.0
    %v1287 = vmax.f32 %v1189, 0.0
    %v1288 = vmax.f32 %v719, 0.0
    %v1289 = vmax.f32 %v721, 0.0
    %v1290 = vmax.f32 %v880, 0.0
    %v1291 = vmax.f32 %v882, 0.0
    %v1292 = vmax.f32 %v1041, 0.0
    %v1293 = vmax.f32 %v1043, 0.0
    %v1294 = vmax.f32 %v1194, 0.0
    %v1295 = vmax.f32 %v725, 0.0
    %v1296 = vmax.f32 %v727, 0.0
    %v1297 = vmax.f32 %v886, 0.0
    %v1298 = vmax.f32 %v888, 0.0
    %v1299 = vmax.f32 %v1047, 0.0
    %v1300 = vmax.f32 %v1049, 0.0
    %v1301 = vmax.f32 %v1199, 0.0
    %v1302 = vmax.f32 %v731, 0.0
    %v1303 = vmax.f32 %v733, 0.0
    %v1304 = vmax.f32 %v892, 0.0
    %v1305 = vmax.f32 %v894, 0.0
    %v1306 = vmax.f32 %v1053, 0.0
    %v1307 = vmax.f32 %v1055, 0.0
    %v1308 = vmax.f32 %v1204, 0.0
    %v1309 = vmax.f32 %v737, 0.0
    %v1310 = vmax.f32 %v739, 0.0
    %v1311 = vmax.f32 %v898, 0.0
    %v1312 = vmax.f32 %v900, 0.0
    %v1313 = vmax.f32 %v1059, 0.0
    %v1314 = vmax.f32 %v1061, 0.0
    %v1315 = vmax.f32 %v1209, 0.0
    %v1316 = vmax.f32 %v743, 0.0
    %v1317 = vmax.f32 %v745, 0.0
    %v1318 = vmax.f32 %v904, 0.0
    %v1319 = vmax.f32 %v906, 0.0
    %v1320 = vmax.f32 %v1065, 0.0
    %v1321 = vmax.f32 %v1067, 0.0
    %v1322 = vmax.f32 %v1214, 0.0
    %v1323 = vmax.f32 %v749, 0.0
    %v1324 = vmax.f32 %v751, 0.0
    %v1325 = vmax.f32 %v910, 0.0
    %v1326 = vmax.f32 %v912, 0.0
    %v1327 = vmax.f32 %v1071, 0.0
    %v1328 = vmax.f32 %v1073, 0.0
    %v1329 = vmax.f32 %v1219, 0.0
    %v1330 = vmax.f32 %v755, 0.0
    %v1331 = vmax.f32 %v757, 0.0
    %v1332 = vmax.f32 %v916, 0.0
    %v1333 = vmax.f32 %v918, 0.0
    %v1334 = vmax.f32 %v1077, 0.0
    %v1335 = vmax.f32 %v1079, 0.0
    %v1336 = vmax.f32 %v1224, 0.0
    %v1337 = vmax.f32 %v761, 0.0
    %v1338 = vmax.f32 %v763, 0.0
    %v1339 = vmax.f32 %v922, 0.0
    %v1340 = vmax.f32 %v924, 0.0
    %v1341 = vmax.f32 %v1083, 0.0
    %v1342 = vmax.f32 %v1085, 0.0
    %v1343 = vmax.f32 %v1229, 0.0
    %v1344 = vld [vmem:[#allocation6] sm:$0xff]
    %v1345 = vld [vmem:[#allocation6 + $0x8] sm:$0xff]
    %v1346 = vld [vmem:[#allocation6 + $0x10] sm:$0xff]
    %v1347 = vld [vmem:[#allocation6 + $0x18] sm:$0xff]
    %v1348 = vld [vmem:[#allocation6 + $0x20] sm:$0xff]
    %v1349 = vld [vmem:[#allocation6 + $0x28] sm:$0xff]
    %v1350 = vld [vmem:[#allocation6 + $0x30] sm:$0xff]
    %v1351 = vld [vmem:[#allocation6 + $0x38] sm:$0xff]
    %v1352 = vld [vmem:[#allocation6 + $0x40] sm:$0xff]
    %v1353 = vld [vmem:[#allocation6 + $0x48] sm:$0xff]
    %v1354 = vld [vmem:[#allocation6 + $0x50] sm:$0xff]
    %v1355 = vld [vmem:[#allocation6 + $0x58] sm:$0xff]
    %v1356 = vld [vmem:[#allocation6 + $0x60] sm:$0xff]
    %v1357 = vld [vmem:[#allocation6 + $0x68] sm:$0xff]
    %v1358 = vld [vmem:[#allocation6 + $0x70] sm:$0xff]
    %v1359 = vld [vmem:[#allocation6 + $0x78] sm:$0xff]
    %v1360 = vld [vmem:[#allocation6 + $0x80] sm:$0xff]
    %v1361 = vld [vmem:[#allocation6 + $0x88] sm:$0xff]
    %v1362 = vld [vmem:[#allocation6 + $0x90] sm:$0xff]
    %v1363 = vld [vmem:[#allocation6 + $0x98] sm:$0xff]
    %v1364 = vld [vmem:[#allocation6 + $0xa0] sm:$0xff]
    %v1365 = vld [vmem:[#allocation6 + $0xa8] sm:$0xff]
    %v1366 = vld [vmem:[#allocation6 + $0xb0] sm:$0xff]
    %v1367 = vld [vmem:[#allocation6 + $0xb8] sm:$0xff]
    %v1368 = vld [vmem:[#allocation6 + $0xc0] sm:$0xff]
    %v1369 = vld [vmem:[#allocation6 + $0xc8] sm:$0xff]
    %v1370 = vld [vmem:[#allocation6 + $0xd0] sm:$0xff]
    %v1371 = vld [vmem:[#allocation6 + $0xd8] sm:$0xff]
    %v1372 = vld [vmem:[#allocation6 + $0xe0] sm:$0xff]
    %v1373 = vld [vmem:[#allocation6 + $0xe8] sm:$0xff]
    %v1374 = vld [vmem:[#allocation6 + $0xf0] sm:$0xff]
    %v1375 = vld [vmem:[#allocation6 + $0xf8] sm:$0xff]
    %v1376 = vld [vmem:[#allocation6 + $0x100] sm:$0xff]
    %v1377 = vld [vmem:[#allocation6 + $0x108] sm:$0xff]
    %v1378 = vld [vmem:[#allocation6 + $0x110] sm:$0xff]
    %v1379 = vld [vmem:[#allocation6 + $0x118] sm:$0xff]
    %v1380 = vld [vmem:[#allocation6 + $0x120] sm:$0xff]
    %v1381 = vld [vmem:[#allocation6 + $0x128] sm:$0xff]
    %v1382 = vld [vmem:[#allocation6 + $0x130] sm:$0xff]
    %v1383 = vld [vmem:[#allocation6 + $0x138] sm:$0xff]
    %v1384 = vld [vmem:[#allocation6 + $0x140] sm:$0xff]
    %v1385 = vld [vmem:[#allocation6 + $0x148] sm:$0xff]
    %v1386 = vld [vmem:[#allocation6 + $0x150] sm:$0xff]
    %v1387 = vld [vmem:[#allocation6 + $0x158] sm:$0xff]
    %v1388 = vld [vmem:[#allocation6 + $0x160] sm:$0xff]
    %v1389 = vld [vmem:[#allocation6 + $0x168] sm:$0xff]
    %v1390 = vld [vmem:[#allocation6 + $0x170] sm:$0xff]
    %v1391 = vld [vmem:[#allocation6 + $0x178] sm:$0xff]
    %v1392 = vld [vmem:[#allocation6 + $0x180] sm:$0xff]
    %v1393 = vld [vmem:[#allocation6 + $0x188] sm:$0xff]
    %v1394 = vld [vmem:[#allocation6 + $0x190] sm:$0xff]
    %v1395 = vld [vmem:[#allocation6 + $0x198] sm:$0xff]
    %v1396 = vld [vmem:[#allocation6 + $0x1a0] sm:$0xff]
    %v1397 = vld [vmem:[#allocation6 + $0x1a8] sm:$0xff]
    %v1398 = vld [vmem:[#allocation6 + $0x1b0] sm:$0xff]
    %v1399 = vld [vmem:[#allocation6 + $0x1b8] sm:$0xff]
    %v1400 = vld [vmem:[#allocation6 + $0x1c0] sm:$0xff]
    %v1401 = vld [vmem:[#allocation6 + $0x1c8] sm:$0xff]
    %v1402 = vld [vmem:[#allocation6 + $0x1d0] sm:$0xff]
    %v1403 = vld [vmem:[#allocation6 + $0x1d8] sm:$0xff]
    %v1404 = vld [vmem:[#allocation6 + $0x1e0] sm:$0xff]
    %v1405 = vld [vmem:[#allocation6 + $0x1e8] sm:$0xff]
    %v1406 = vld [vmem:[#allocation6 + $0x1f0] sm:$0xff]
    %v1407 = vld [vmem:[#allocation6 + $0x1f8] sm:$0xff]
    %v1408 = vld [vmem:[#allocation6 + $0x200] sm:$0xff]
    %v1409 = vld [vmem:[#allocation6 + $0x208] sm:$0xff]
    %v1410 = vld [vmem:[#allocation6 + $0x210] sm:$0xff]
    %v1411 = vld [vmem:[#allocation6 + $0x218] sm:$0xff]
    %v1412 = vld [vmem:[#allocation6 + $0x220] sm:$0xff]
    %v1413 = vld [vmem:[#allocation6 + $0x228] sm:$0xff]
    %v1414 = vld [vmem:[#allocation6 + $0x230] sm:$0xff]
    %v1415 = vld [vmem:[#allocation6 + $0x238] sm:$0xff]
    %v1416 = vld [vmem:[#allocation6 + $0x240] sm:$0xff]
    %v1417 = vld [vmem:[#allocation6 + $0x248] sm:$0xff]
    %v1418 = vld [vmem:[#allocation6 + $0x250] sm:$0xff]
    %v1419 = vld [vmem:[#allocation6 + $0x258] sm:$0xff]
    %v1420 = vld [vmem:[#allocation6 + $0x260] sm:$0xff]
    %v1421 = vld [vmem:[#allocation6 + $0x268] sm:$0xff]
    %v1422 = vld [vmem:[#allocation6 + $0x270] sm:$0xff]
    %v1423 = vld [vmem:[#allocation6 + $0x278] sm:$0xff]
    %v1424 = vld [vmem:[#allocation6 + $0x280] sm:$0xff]
    %v1425 = vld [vmem:[#allocation6 + $0x288] sm:$0xff]
    %v1426 = vld [vmem:[#allocation6 + $0x290] sm:$0xff]
    %v1427 = vld [vmem:[#allocation6 + $0x298] sm:$0xff]
    %v1428 = vld [vmem:[#allocation6 + $0x2a0] sm:$0xff]
    %v1429 = vld [vmem:[#allocation6 + $0x2a8] sm:$0xff]
    %v1430 = vld [vmem:[#allocation6 + $0x2b0] sm:$0xff]
    %v1431 = vld [vmem:[#allocation6 + $0x2b8] sm:$0xff]
    %v1432 = vld [vmem:[#allocation6 + $0x2c0] sm:$0xff]
    %v1433 = vld [vmem:[#allocation6 + $0x2c8] sm:$0xff]
    %v1434 = vld [vmem:[#allocation6 + $0x2d0] sm:$0xff]
    %v1435 = vld [vmem:[#allocation6 + $0x2d8] sm:$0xff]
    %v1436 = vld [vmem:[#allocation6 + $0x2e0] sm:$0xff]
    %v1437 = vld [vmem:[#allocation6 + $0x2e8] sm:$0xff]
    %v1438 = vld [vmem:[#allocation6 + $0x2f0] sm:$0xff]
    %v1439 = vld [vmem:[#allocation6 + $0x2f8] sm:$0xff]
    %v1440 = vld [vmem:[#allocation6 + $0x300] sm:$0xff]
    %v1441 = vld [vmem:[#allocation6 + $0x308] sm:$0xff]
    %v1442 = vld [vmem:[#allocation6 + $0x310] sm:$0xff]
    %v1443 = vld [vmem:[#allocation6 + $0x318] sm:$0xff]
    %v1444 = vld [vmem:[#allocation6 + $0x320] sm:$0xff]
    %v1445 = vld [vmem:[#allocation6 + $0x328] sm:$0xff]
    %v1446 = vld [vmem:[#allocation6 + $0x330] sm:$0xff]
    %v1447 = vld [vmem:[#allocation6 + $0x338] sm:$0xff]
    %v1448 = vld [vmem:[#allocation6 + $0x340] sm:$0xff]
    %v1449 = vld [vmem:[#allocation6 + $0x348] sm:$0xff]
    %v1450 = vld [vmem:[#allocation6 + $0x350] sm:$0xff]
    %v1451 = vld [vmem:[#allocation6 + $0x358] sm:$0xff]
    %v1452 = vld [vmem:[#allocation6 + $0x360] sm:$0xff]
    %v1453 = vld [vmem:[#allocation6 + $0x368] sm:$0xff]
    %v1454 = vld [vmem:[#allocation6 + $0x370] sm:$0xff]
    %v1455 = vld [vmem:[#allocation6 + $0x378] sm:$0xff]
    %v1456 = vld [vmem:[%s6] sm:$0x1]
    %v1458 = vlaneseq
    %v1459 = vshrl.u32 %v1458, 7
    %v1460 = vsub.s32 0, %v1459
    %v1461 = vrot.slane %v1456, %v1460
    %1463 = vmatprep.subr.mxu0 0.0
    %1464 = vmatpush1.msra.mxu0 %v1359
    %1465 = vmatprep.subr.mxu0 0.0
    %1466 = vmatpush1.msra.mxu0 %v1358
    %1467 = vmatprep.subr.mxu0 0.0
    %1468 = vmatpush1.msra.mxu0 %v1357
    %1469 = vmatprep.subr.mxu0 0.0
    %1470 = vmatpush1.msra.mxu0 %v1356
    %1471 = vmatprep.subr.mxu0 0.0
    %1472 = vmatpush1.msra.mxu0 %v1355
    %1473 = vmatprep.subr.mxu0 0.0
    %1474 = vmatpush1.msra.mxu0 %v1354
    %1475 = vmatprep.subr.mxu0 0.0
    %1476 = vmatpush1.msra.mxu0 %v1353
    %1477 = vmatprep.subr.mxu0 0.0
    %1478 = vmatpush1.msra.mxu0 %v1352
    %1479 = vmatprep.subr.mxu0 0.0
    %1480 = vmatpush1.msra.mxu0 %v1351
    %1481 = vmatprep.subr.mxu0 0.0
    %1482 = vmatpush1.msra.mxu0 %v1350
    %1483 = vmatprep.subr.mxu0 0.0
    %1484 = vmatpush1.msra.mxu0 %v1349
    %1485 = vmatprep.subr.mxu0 0.0
    %1486 = vmatpush1.msra.mxu0 %v1348
    %1487 = vmatprep.subr.mxu0 0.0
    %1488 = vmatpush1.msra.mxu0 %v1347
    %1489 = vmatprep.subr.mxu0 0.0
    %1490 = vmatpush1.msra.mxu0 %v1346
    %1491 = vmatprep.subr.mxu0 0.0
    %1492 = vmatpush1.msra.mxu0 %v1345
    %1493 = vmatprep.subr.mxu0 0.0
    %1494 = vmatpush1.msra.mxu0 %v1344
    %1495 = vmatprep.subr.mxu0 0.0
    %1496 = vmatpush2.msra.mxu0 %v1375
    %1497 = vmatprep.subr.mxu0 0.0
    %1498 = vmatpush2.msra.mxu0 %v1374
    %1499 = vmatprep.subr.mxu0 0.0
    %1500 = vmatpush2.msra.mxu0 %v1373
    %1501 = vmatprep.subr.mxu0 0.0
    %1502 = vmatpush2.msra.mxu0 %v1372
    %1503 = vmatprep.subr.mxu0 0.0
    %1504 = vmatpush2.msra.mxu0 %v1371
    %1505 = vmatprep.subr.mxu0 0.0
    %1506 = vmatpush2.msra.mxu0 %v1370
    %1507 = vmatprep.subr.mxu0 0.0
    %1508 = vmatpush2.msra.mxu0 %v1369
    %1509 = vmatprep.subr.mxu0 0.0
    %1510 = vmatpush2.msra.mxu0 %v1368
    %1511 = vmatprep.subr.mxu0 0.0
    %1512 = vmatpush2.msra.mxu0 %v1367
    %1513 = vmatprep.subr.mxu0 0.0
    %1514 = vmatpush2.msra.mxu0 %v1366
    %1515 = vmatprep.subr.mxu0 0.0
    %1516 = vmatpush2.msra.mxu0 %v1365
    %1517 = vmatprep.subr.mxu0 0.0
    %1518 = vmatpush2.msra.mxu0 %v1364
    %1519 = vmatprep.subr.mxu0 0.0
    %1520 = vmatpush2.msra.mxu0 %v1363
    %1521 = vmatprep.subr.mxu0 0.0
    %1522 = vmatpush2.msra.mxu0 %v1362
    %1523 = vmatprep.subr.mxu0 0.0
    %1524 = vmatpush2.msra.mxu0 %v1361
    %1525 = vmatprep.subr.mxu0 0.0
    %1526 = vmatpush2.msra.mxu0 %v1360
    %1527 = vmatprep.mubr.f32.mxu0 %v1233
    %1528 = vmatmul.mubr.f32.gmra.mxu0 %v1232
    %v1529 = vpop.f32.mrf.mxu0
    %v1530 = vadd.f32 %v1461, %v1529
    %v1531 = vpop.f32.mrf.mxu0
    %1532 = vmatprep.mubr.f32.mxu0 %v1240
    %1533 = vmatmul.mubr.f32.gmra.mxu0 %v1239
    %v1534 = vpop.f32.mrf.mxu0
    %v1535 = vadd.f32 %v1461, %v1534
    %v1536 = vpop.f32.mrf.mxu0
    %1537 = vmatprep.mubr.f32.mxu0 %v1247
    %1538 = vmatmul.mubr.f32.gmra.mxu0 %v1246
    %v1539 = vpop.f32.mrf.mxu0
    %v1540 = vadd.f32 %v1461, %v1539
    %v1541 = vpop.f32.mrf.mxu0
    %1542 = vmatprep.mubr.f32.mxu0 %v1254
    %1543 = vmatmul.mubr.f32.gmra.mxu0 %v1253
    %v1544 = vpop.f32.mrf.mxu0
    %v1545 = vadd.f32 %v1461, %v1544
    %v1546 = vpop.f32.mrf.mxu0
    %1547 = vmatprep.mubr.f32.mxu0 %v1261
    %1548 = vmatmul.mubr.f32.gmra.mxu0 %v1260
    %v1549 = vpop.f32.mrf.mxu0
    %v1550 = vadd.f32 %v1461, %v1549
    %v1551 = vpop.f32.mrf.mxu0
    %1552 = vmatprep.mubr.f32.mxu0 %v1268
    %1553 = vmatmul.mubr.f32.gmra.mxu0 %v1267
    %v1554 = vpop.f32.mrf.mxu0
    %v1555 = vadd.f32 %v1461, %v1554
    %v1556 = vpop.f32.mrf.mxu0
    %1557 = vmatprep.mubr.f32.mxu0 %v1275
    %1558 = vmatmul.mubr.f32.gmra.mxu0 %v1274
    %v1559 = vpop.f32.mrf.mxu0
    %v1560 = vadd.f32 %v1461, %v1559
    %v1561 = vpop.f32.mrf.mxu0
    %1562 = vmatprep.mubr.f32.mxu0 %v1282
    %1563 = vmatmul.mubr.f32.gmra.mxu0 %v1281
    %v1564 = vpop.f32.mrf.mxu0
    %v1565 = vadd.f32 %v1461, %v1564
    %v1566 = vpop.f32.mrf.mxu0
    %1567 = vmatprep.mubr.f32.mxu0 %v1289
    %1568 = vmatmul.mubr.f32.gmra.mxu0 %v1288
    %v1569 = vpop.f32.mrf.mxu0
    %v1570 = vadd.f32 %v1461, %v1569
    %v1571 = vpop.f32.mrf.mxu0
    %1572 = vmatprep.mubr.f32.mxu0 %v1296
    %1573 = vmatmul.mubr.f32.gmra.mxu0 %v1295
    %v1574 = vpop.f32.mrf.mxu0
    %v1575 = vadd.f32 %v1461, %v1574
    %v1576 = vpop.f32.mrf.mxu0
    %1577 = vmatprep.mubr.f32.mxu0 %v1303
    %1578 = vmatmul.mubr.f32.gmra.mxu0 %v1302
    %v1579 = vpop.f32.mrf.mxu0
    %v1580 = vadd.f32 %v1461, %v1579
    %v1581 = vpop.f32.mrf.mxu0
    %1582 = vmatprep.mubr.f32.mxu0 %v1310
    %1583 = vmatmul.mubr.f32.gmra.mxu0 %v1309
    %v1584 = vpop.f32.mrf.mxu0
    %v1585 = vadd.f32 %v1461, %v1584
    %v1586 = vpop.f32.mrf.mxu0
    %1587 = vmatprep.mubr.f32.mxu0 %v1317
    %1588 = vmatmul.mubr.f32.gmra.mxu0 %v1316
    %v1589 = vpop.f32.mrf.mxu0
    %v1590 = vadd.f32 %v1461, %v1589
    %v1591 = vpop.f32.mrf.mxu0
    %1592 = vmatprep.mubr.f32.mxu0 %v1324
    %1593 = vmatmul.mubr.f32.gmra.mxu0 %v1323
    %v1594 = vpop.f32.mrf.mxu0
    %v1595 = vadd.f32 %v1461, %v1594
    %v1596 = vpop.f32.mrf.mxu0
    %1597 = vmatprep.mubr.f32.mxu0 %v1331
    %1598 = vmatmul.mubr.f32.gmra.mxu0 %v1330
    %v1599 = vpop.f32.mrf.mxu0
    %v1600 = vadd.f32 %v1461, %v1599
    %v1601 = vpop.f32.mrf.mxu0
    %1602 = vmatprep.mubr.f32.mxu0 %v1338
    %1603 = vmatmul.mubr.f32.gmra.mxu0 %v1337
    %v1604 = vpop.f32.mrf.mxu0
    %v1605 = vadd.f32 %v1461, %v1604
    %v1606 = vpop.f32.mrf.mxu0
    %1607 = vdwg.mxu0
    %1608 = vmatprep.subr.mxu0 0.0
    %1609 = vmatpush1.msra.mxu0 %v1391
    %1610 = vmatprep.subr.mxu0 0.0
    %1611 = vmatpush1.msra.mxu0 %v1390
    %1612 = vmatprep.subr.mxu0 0.0
    %1613 = vmatpush1.msra.mxu0 %v1389
    %1614 = vmatprep.subr.mxu0 0.0
    %1615 = vmatpush1.msra.mxu0 %v1388
    %1616 = vmatprep.subr.mxu0 0.0
    %1617 = vmatpush1.msra.mxu0 %v1387
    %1618 = vmatprep.subr.mxu0 0.0
    %1619 = vmatpush1.msra.mxu0 %v1386
    %1620 = vmatprep.subr.mxu0 0.0
    %1621 = vmatpush1.msra.mxu0 %v1385
    %1622 = vmatprep.subr.mxu0 0.0
    %1623 = vmatpush1.msra.mxu0 %v1384
    %1624 = vmatprep.subr.mxu0 0.0
    %1625 = vmatpush1.msra.mxu0 %v1383
    %1626 = vmatprep.subr.mxu0 0.0
    %1627 = vmatpush1.msra.mxu0 %v1382
    %1628 = vmatprep.subr.mxu0 0.0
    %1629 = vmatpush1.msra.mxu0 %v1381
    %1630 = vmatprep.subr.mxu0 0.0
    %1631 = vmatpush1.msra.mxu0 %v1380
    %1632 = vmatprep.subr.mxu0 0.0
    %1633 = vmatpush1.msra.mxu0 %v1379
    %1634 = vmatprep.subr.mxu0 0.0
    %1635 = vmatpush1.msra.mxu0 %v1378
    %1636 = vmatprep.subr.mxu0 0.0
    %1637 = vmatpush1.msra.mxu0 %v1377
    %1638 = vmatprep.subr.mxu0 0.0
    %1639 = vmatpush1.msra.mxu0 %v1376
    %1640 = vmatprep.subr.mxu0 0.0
    %1641 = vmatpush2.msra.mxu0 %v1407
    %1642 = vmatprep.subr.mxu0 0.0
    %1643 = vmatpush2.msra.mxu0 %v1406
    %1644 = vmatprep.subr.mxu0 0.0
    %1645 = vmatpush2.msra.mxu0 %v1405
    %1646 = vmatprep.subr.mxu0 0.0
    %1647 = vmatpush2.msra.mxu0 %v1404
    %1648 = vmatprep.subr.mxu0 0.0
    %1649 = vmatpush2.msra.mxu0 %v1403
    %1650 = vmatprep.subr.mxu0 0.0
    %1651 = vmatpush2.msra.mxu0 %v1402
    %1652 = vmatprep.subr.mxu0 0.0
    %1653 = vmatpush2.msra.mxu0 %v1401
    %1654 = vmatprep.subr.mxu0 0.0
    %1655 = vmatpush2.msra.mxu0 %v1400
    %1656 = vmatprep.subr.mxu0 0.0
    %1657 = vmatpush2.msra.mxu0 %v1399
    %1658 = vmatprep.subr.mxu0 0.0
    %1659 = vmatpush2.msra.mxu0 %v1398
    %1660 = vmatprep.subr.mxu0 0.0
    %1661 = vmatpush2.msra.mxu0 %v1397
    %1662 = vmatprep.subr.mxu0 0.0
    %1663 = vmatpush2.msra.mxu0 %v1396
    %1664 = vmatprep.subr.mxu0 0.0
    %1665 = vmatpush2.msra.mxu0 %v1395
    %1666 = vmatprep.subr.mxu0 0.0
    %1667 = vmatpush2.msra.mxu0 %v1394
    %1668 = vmatprep.subr.mxu0 0.0
    %1669 = vmatpush2.msra.mxu0 %v1393
    %1670 = vmatprep.subr.mxu0 0.0
    %1671 = vmatpush2.msra.mxu0 %v1392
    %1672 = vmatprep.mubr.f32.mxu0 %v1235
    %1673 = vmatmul.mubr.f32.gmra.mxu0 %v1234
    %v1674 = vpop.f32.mrf.mxu0
    %v1675 = vadd.f32 %v1530, %v1674
    %v1676 = vpop.f32.mrf.mxu0
    %1677 = vmatprep.mubr.f32.mxu0 %v1242
    %1678 = vmatmul.mubr.f32.gmra.mxu0 %v1241
    %v1679 = vpop.f32.mrf.mxu0
    %v1680 = vadd.f32 %v1535, %v1679
    %v1681 = vpop.f32.mrf.mxu0
    %1682 = vmatprep.mubr.f32.mxu0 %v1249
    %1683 = vmatmul.mubr.f32.gmra.mxu0 %v1248
    %v1684 = vpop.f32.mrf.mxu0
    %v1685 = vadd.f32 %v1540, %v1684
    %v1686 = vpop.f32.mrf.mxu0
    %1687 = vmatprep.mubr.f32.mxu0 %v1256
    %1688 = vmatmul.mubr.f32.gmra.mxu0 %v1255
    %v1689 = vpop.f32.mrf.mxu0
    %v1690 = vadd.f32 %v1545, %v1689
    %v1691 = vpop.f32.mrf.mxu0
    %1692 = vmatprep.mubr.f32.mxu0 %v1263
    %1693 = vmatmul.mubr.f32.gmra.mxu0 %v1262
    %v1694 = vpop.f32.mrf.mxu0
    %v1695 = vadd.f32 %v1550, %v1694
    %v1696 = vpop.f32.mrf.mxu0
    %1697 = vmatprep.mubr.f32.mxu0 %v1270
    %1698 = vmatmul.mubr.f32.gmra.mxu0 %v1269
    %v1699 = vpop.f32.mrf.mxu0
    %v1700 = vadd.f32 %v1555, %v1699
    %v1701 = vpop.f32.mrf.mxu0
    %1702 = vmatprep.mubr.f32.mxu0 %v1277
    %1703 = vmatmul.mubr.f32.gmra.mxu0 %v1276
    %v1704 = vpop.f32.mrf.mxu0
    %v1705 = vadd.f32 %v1560, %v1704
    %v1706 = vpop.f32.mrf.mxu0
    %1707 = vmatprep.mubr.f32.mxu0 %v1284
    %1708 = vmatmul.mubr.f32.gmra.mxu0 %v1283
    %v1709 = vpop.f32.mrf.mxu0
    %v1710 = vadd.f32 %v1565, %v1709
    %v1711 = vpop.f32.mrf.mxu0
    %1712 = vmatprep.mubr.f32.mxu0 %v1291
    %1713 = vmatmul.mubr.f32.gmra.mxu0 %v1290
    %v1714 = vpop.f32.mrf.mxu0
    %v1715 = vadd.f32 %v1570, %v1714
    %v1716 = vpop.f32.mrf.mxu0
    %1717 = vmatprep.mubr.f32.mxu0 %v1298
    %1718 = vmatmul.mubr.f32.gmra.mxu0 %v1297
    %v1719 = vpop.f32.mrf.mxu0
    %v1720 = vadd.f32 %v1575, %v1719
    %v1721 = vpop.f32.mrf.mxu0
    %1722 = vmatprep.mubr.f32.mxu0 %v1305
    %1723 = vmatmul.mubr.f32.gmra.mxu0 %v1304
    %v1724 = vpop.f32.mrf.mxu0
    %v1725 = vadd.f32 %v1580, %v1724
    %v1726 = vpop.f32.mrf.mxu0
    %1727 = vmatprep.mubr.f32.mxu0 %v1312
    %1728 = vmatmul.mubr.f32.gmra.mxu0 %v1311
    %v1729 = vpop.f32.mrf.mxu0
    %v1730 = vadd.f32 %v1585, %v1729
    %v1731 = vpop.f32.mrf.mxu0
    %1732 = vmatprep.mubr.f32.mxu0 %v1319
    %1733 = vmatmul.mubr.f32.gmra.mxu0 %v1318
    %v1734 = vpop.f32.mrf.mxu0
    %v1735 = vadd.f32 %v1590, %v1734
    %v1736 = vpop.f32.mrf.mxu0
    %1737 = vmatprep.mubr.f32.mxu0 %v1326
    %1738 = vmatmul.mubr.f32.gmra.mxu0 %v1325
    %v1739 = vpop.f32.mrf.mxu0
    %v1740 = vadd.f32 %v1595, %v1739
    %v1741 = vpop.f32.mrf.mxu0
    %1742 = vmatprep.mubr.f32.mxu0 %v1333
    %1743 = vmatmul.mubr.f32.gmra.mxu0 %v1332
    %v1744 = vpop.f32.mrf.mxu0
    %v1745 = vadd.f32 %v1600, %v1744
    %v1746 = vpop.f32.mrf.mxu0
    %1747 = vmatprep.mubr.f32.mxu0 %v1340
    %1748 = vmatmul.mubr.f32.gmra.mxu0 %v1339
    %v1749 = vpop.f32.mrf.mxu0
    %v1750 = vadd.f32 %v1605, %v1749
    %v1751 = vpop.f32.mrf.mxu0
    %1752 = vdwg.mxu0
    %1753 = vmatprep.subr.mxu0 0.0
    %1754 = vmatpush1.msra.mxu0 %v1423
    %1755 = vmatprep.subr.mxu0 0.0
    %1756 = vmatpush1.msra.mxu0 %v1422
    %1757 = vmatprep.subr.mxu0 0.0
    %1758 = vmatpush1.msra.mxu0 %v1421
    %1759 = vmatprep.subr.mxu0 0.0
    %1760 = vmatpush1.msra.mxu0 %v1420
    %1761 = vmatprep.subr.mxu0 0.0
    %1762 = vmatpush1.msra.mxu0 %v1419
    %1763 = vmatprep.subr.mxu0 0.0
    %1764 = vmatpush1.msra.mxu0 %v1418
    %1765 = vmatprep.subr.mxu0 0.0
    %1766 = vmatpush1.msra.mxu0 %v1417
    %1767 = vmatprep.subr.mxu0 0.0
    %1768 = vmatpush1.msra.mxu0 %v1416
    %1769 = vmatprep.subr.mxu0 0.0
    %1770 = vmatpush1.msra.mxu0 %v1415
    %1771 = vmatprep.subr.mxu0 0.0
    %1772 = vmatpush1.msra.mxu0 %v1414
    %1773 = vmatprep.subr.mxu0 0.0
    %1774 = vmatpush1.msra.mxu0 %v1413
    %1775 = vmatprep.subr.mxu0 0.0
    %1776 = vmatpush1.msra.mxu0 %v1412
    %1777 = vmatprep.subr.mxu0 0.0
    %1778 = vmatpush1.msra.mxu0 %v1411
    %1779 = vmatprep.subr.mxu0 0.0
    %1780 = vmatpush1.msra.mxu0 %v1410
    %1781 = vmatprep.subr.mxu0 0.0
    %1782 = vmatpush1.msra.mxu0 %v1409
    %1783 = vmatprep.subr.mxu0 0.0
    %1784 = vmatpush1.msra.mxu0 %v1408
    %1785 = vmatprep.subr.mxu0 0.0
    %1786 = vmatpush2.msra.mxu0 %v1439
    %1787 = vmatprep.subr.mxu0 0.0
    %1788 = vmatpush2.msra.mxu0 %v1438
    %1789 = vmatprep.subr.mxu0 0.0
    %1790 = vmatpush2.msra.mxu0 %v1437
    %1791 = vmatprep.subr.mxu0 0.0
    %1792 = vmatpush2.msra.mxu0 %v1436
    %1793 = vmatprep.subr.mxu0 0.0
    %1794 = vmatpush2.msra.mxu0 %v1435
    %1795 = vmatprep.subr.mxu0 0.0
    %1796 = vmatpush2.msra.mxu0 %v1434
    %1797 = vmatprep.subr.mxu0 0.0
    %1798 = vmatpush2.msra.mxu0 %v1433
    %1799 = vmatprep.subr.mxu0 0.0
    %1800 = vmatpush2.msra.mxu0 %v1432
    %1801 = vmatprep.subr.mxu0 0.0
    %1802 = vmatpush2.msra.mxu0 %v1431
    %1803 = vmatprep.subr.mxu0 0.0
    %1804 = vmatpush2.msra.mxu0 %v1430
    %1805 = vmatprep.subr.mxu0 0.0
    %1806 = vmatpush2.msra.mxu0 %v1429
    %1807 = vmatprep.subr.mxu0 0.0
    %1808 = vmatpush2.msra.mxu0 %v1428
    %1809 = vmatprep.subr.mxu0 0.0
    %1810 = vmatpush2.msra.mxu0 %v1427
    %1811 = vmatprep.subr.mxu0 0.0
    %1812 = vmatpush2.msra.mxu0 %v1426
    %1813 = vmatprep.subr.mxu0 0.0
    %1814 = vmatpush2.msra.mxu0 %v1425
    %1815 = vmatprep.subr.mxu0 0.0
    %1816 = vmatpush2.msra.mxu0 %v1424
    %1817 = vmatprep.mubr.f32.mxu0 %v1237
    %1818 = vmatmul.mubr.f32.gmra.mxu0 %v1236
    %v1819 = vpop.f32.mrf.mxu0
    %v1820 = vadd.f32 %v1675, %v1819
    %v1821 = vpop.f32.mrf.mxu0
    %1822 = vmatprep.mubr.f32.mxu0 %v1244
    %1823 = vmatmul.mubr.f32.gmra.mxu0 %v1243
    %v1824 = vpop.f32.mrf.mxu0
    %v1825 = vadd.f32 %v1680, %v1824
    %v1826 = vpop.f32.mrf.mxu0
    %1827 = vmatprep.mubr.f32.mxu0 %v1251
    %1828 = vmatmul.mubr.f32.gmra.mxu0 %v1250
    %v1829 = vpop.f32.mrf.mxu0
    %v1830 = vadd.f32 %v1685, %v1829
    %v1831 = vpop.f32.mrf.mxu0
    %1832 = vmatprep.mubr.f32.mxu0 %v1258
    %1833 = vmatmul.mubr.f32.gmra.mxu0 %v1257
    %v1834 = vpop.f32.mrf.mxu0
    %v1835 = vadd.f32 %v1690, %v1834
    %v1836 = vpop.f32.mrf.mxu0
    %1837 = vmatprep.mubr.f32.mxu0 %v1265
    %1838 = vmatmul.mubr.f32.gmra.mxu0 %v1264
    %v1839 = vpop.f32.mrf.mxu0
    %v1840 = vadd.f32 %v1695, %v1839
    %v1841 = vpop.f32.mrf.mxu0
    %1842 = vmatprep.mubr.f32.mxu0 %v1272
    %1843 = vmatmul.mubr.f32.gmra.mxu0 %v1271
    %v1844 = vpop.f32.mrf.mxu0
    %v1845 = vadd.f32 %v1700, %v1844
    %v1846 = vpop.f32.mrf.mxu0
    %1847 = vmatprep.mubr.f32.mxu0 %v1279
    %1848 = vmatmul.mubr.f32.gmra.mxu0 %v1278
    %v1849 = vpop.f32.mrf.mxu0
    %v1850 = vadd.f32 %v1705, %v1849
    %v1851 = vpop.f32.mrf.mxu0
    %1852 = vmatprep.mubr.f32.mxu0 %v1286
    %1853 = vmatmul.mubr.f32.gmra.mxu0 %v1285
    %v1854 = vpop.f32.mrf.mxu0
    %v1855 = vadd.f32 %v1710, %v1854
    %v1856 = vpop.f32.mrf.mxu0
    %1857 = vmatprep.mubr.f32.mxu0 %v1293
    %1858 = vmatmul.mubr.f32.gmra.mxu0 %v1292
    %v1859 = vpop.f32.mrf.mxu0
    %v1860 = vadd.f32 %v1715, %v1859
    %v1861 = vpop.f32.mrf.mxu0
    %1862 = vmatprep.mubr.f32.mxu0 %v1300
    %1863 = vmatmul.mubr.f32.gmra.mxu0 %v1299
    %v1864 = vpop.f32.mrf.mxu0
    %v1865 = vadd.f32 %v1720, %v1864
    %v1866 = vpop.f32.mrf.mxu0
    %1867 = vmatprep.mubr.f32.mxu0 %v1307
    %1868 = vmatmul.mubr.f32.gmra.mxu0 %v1306
    %v1869 = vpop.f32.mrf.mxu0
    %v1870 = vadd.f32 %v1725, %v1869
    %v1871 = vpop.f32.mrf.mxu0
    %1872 = vmatprep.mubr.f32.mxu0 %v1314
    %1873 = vmatmul.mubr.f32.gmra.mxu0 %v1313
    %v1874 = vpop.f32.mrf.mxu0
    %v1875 = vadd.f32 %v1730, %v1874
    %v1876 = vpop.f32.mrf.mxu0
    %1877 = vmatprep.mubr.f32.mxu0 %v1321
    %1878 = vmatmul.mubr.f32.gmra.mxu0 %v1320
    %v1879 = vpop.f32.mrf.mxu0
    %v1880 = vadd.f32 %v1735, %v1879
    %v1881 = vpop.f32.mrf.mxu0
    %1882 = vmatprep.mubr.f32.mxu0 %v1328
    %1883 = vmatmul.mubr.f32.gmra.mxu0 %v1327
    %v1884 = vpop.f32.mrf.mxu0
    %v1885 = vadd.f32 %v1740, %v1884
    %v1886 = vpop.f32.mrf.mxu0
    %1887 = vmatprep.mubr.f32.mxu0 %v1335
    %1888 = vmatmul.mubr.f32.gmra.mxu0 %v1334
    %v1889 = vpop.f32.mrf.mxu0
    %v1890 = vadd.f32 %v1745, %v1889
    %v1891 = vpop.f32.mrf.mxu0
    %1892 = vmatprep.mubr.f32.mxu0 %v1342
    %1893 = vmatmul.mubr.f32.gmra.mxu0 %v1341
    %v1894 = vpop.f32.mrf.mxu0
    %v1895 = vadd.f32 %v1750, %v1894
    %v1896 = vpop.f32.mrf.mxu0
    %1897 = vdwg.mxu0
    %1898 = vmatprep.subr.mxu0 0.0
    %1899 = vmatpush1.msra.mxu0 %v1455
    %1900 = vmatprep.subr.mxu0 0.0
    %1901 = vmatpush1.msra.mxu0 %v1454
    %1902 = vmatprep.subr.mxu0 0.0
    %1903 = vmatpush1.msra.mxu0 %v1453
    %1904 = vmatprep.subr.mxu0 0.0
    %1905 = vmatpush1.msra.mxu0 %v1452
    %1906 = vmatprep.subr.mxu0 0.0
    %1907 = vmatpush1.msra.mxu0 %v1451
    %1908 = vmatprep.subr.mxu0 0.0
    %1909 = vmatpush1.msra.mxu0 %v1450
    %1910 = vmatprep.subr.mxu0 0.0
    %1911 = vmatpush1.msra.mxu0 %v1449
    %1912 = vmatprep.subr.mxu0 0.0
    %1913 = vmatpush1.msra.mxu0 %v1448
    %1914 = vmatprep.subr.mxu0 0.0
    %1915 = vmatpush1.msra.mxu0 %v1447
    %1916 = vmatprep.subr.mxu0 0.0
    %1917 = vmatpush1.msra.mxu0 %v1446
    %1918 = vmatprep.subr.mxu0 0.0
    %1919 = vmatpush1.msra.mxu0 %v1445
    %1920 = vmatprep.subr.mxu0 0.0
    %1921 = vmatpush1.msra.mxu0 %v1444
    %1922 = vmatprep.subr.mxu0 0.0
    %1923 = vmatpush1.msra.mxu0 %v1443
    %1924 = vmatprep.subr.mxu0 0.0
    %1925 = vmatpush1.msra.mxu0 %v1442
    %1926 = vmatprep.subr.mxu0 0.0
    %1927 = vmatpush1.msra.mxu0 %v1441
    %1928 = vmatprep.subr.mxu0 0.0
    %1929 = vmatpush1.msra.mxu0 %v1440
    %1930 = vmatprep.subr.mxu0 0.0
    %1931 = vmatpush2.msra.mxu0 0.0
    %1932 = vmatprep.subr.mxu0 0.0
    %1933 = vmatpush2.msra.mxu0 0.0
    %1934 = vmatprep.subr.mxu0 0.0
    %1935 = vmatpush2.msra.mxu0 0.0
    %1936 = vmatprep.subr.mxu0 0.0
    %1937 = vmatpush2.msra.mxu0 0.0
    %1938 = vmatprep.subr.mxu0 0.0
    %1939 = vmatpush2.msra.mxu0 0.0
    %1940 = vmatprep.subr.mxu0 0.0
    %1941 = vmatpush2.msra.mxu0 0.0
    %1942 = vmatprep.subr.mxu0 0.0
    %1943 = vmatpush2.msra.mxu0 0.0
    %1944 = vmatprep.subr.mxu0 0.0
    %1945 = vmatpush2.msra.mxu0 0.0
    %1946 = vmatprep.subr.mxu0 0.0
    %1947 = vmatpush2.msra.mxu0 0.0
    %1948 = vmatprep.subr.mxu0 0.0
    %1949 = vmatpush2.msra.mxu0 0.0
    %1950 = vmatprep.subr.mxu0 0.0
    %1951 = vmatpush2.msra.mxu0 0.0
    %1952 = vmatprep.subr.mxu0 0.0
    %1953 = vmatpush2.msra.mxu0 0.0
    %1954 = vmatprep.subr.mxu0 0.0
    %1955 = vmatpush2.msra.mxu0 0.0
    %1956 = vmatprep.subr.mxu0 0.0
    %1957 = vmatpush2.msra.mxu0 0.0
    %1958 = vmatprep.subr.mxu0 0.0
    %1959 = vmatpush2.msra.mxu0 0.0
    %1960 = vmatprep.subr.mxu0 0.0
    %1961 = vmatpush2.msra.mxu0 0.0
    %1962 = vmatprep.mubr.f32.mxu0 0.0
    %1963 = vmatmul.mubr.f32.gmra.mxu0 %v1238
    %v1964 = vpop.f32.mrf.mxu0
    %v1965 = vadd.f32 %v1820, %v1964
    %v1966 = vpop.f32.mrf.mxu0
    %1967 = vmatprep.mubr.f32.mxu0 0.0
    %1968 = vmatmul.mubr.f32.gmra.mxu0 %v1245
    %v1969 = vpop.f32.mrf.mxu0
    %v1970 = vadd.f32 %v1825, %v1969
    %v1971 = vpop.f32.mrf.mxu0
    %1972 = vmatprep.mubr.f32.mxu0 0.0
    %1973 = vmatmul.mubr.f32.gmra.mxu0 %v1252
    %v1974 = vpop.f32.mrf.mxu0
    %v1975 = vadd.f32 %v1830, %v1974
    %v1976 = vpop.f32.mrf.mxu0
    %1977 = vmatprep.mubr.f32.mxu0 0.0
    %1978 = vmatmul.mubr.f32.gmra.mxu0 %v1259
    %v1979 = vpop.f32.mrf.mxu0
    %v1980 = vadd.f32 %v1835, %v1979
    %v1981 = vpop.f32.mrf.mxu0
    %1982 = vmatprep.mubr.f32.mxu0 0.0
    %1983 = vmatmul.mubr.f32.gmra.mxu0 %v1266
    %v1984 = vpop.f32.mrf.mxu0
    %v1985 = vadd.f32 %v1840, %v1984
    %v1986 = vpop.f32.mrf.mxu0
    %1987 = vmatprep.mubr.f32.mxu0 0.0
    %1988 = vmatmul.mubr.f32.gmra.mxu0 %v1273
    %v1989 = vpop.f32.mrf.mxu0
    %v1990 = vadd.f32 %v1845, %v1989
    %v1991 = vpop.f32.mrf.mxu0
    %1992 = vmatprep.mubr.f32.mxu0 0.0
    %1993 = vmatmul.mubr.f32.gmra.mxu0 %v1280
    %v1994 = vpop.f32.mrf.mxu0
    %v1995 = vadd.f32 %v1850, %v1994
    %v1996 = vpop.f32.mrf.mxu0
    %1997 = vmatprep.mubr.f32.mxu0 0.0
    %1998 = vmatmul.mubr.f32.gmra.mxu0 %v1287
    %v1999 = vpop.f32.mrf.mxu0
    %v2000 = vadd.f32 %v1855, %v1999
    %v2001 = vpop.f32.mrf.mxu0
    %2002 = vmatprep.mubr.f32.mxu0 0.0
    %2003 = vmatmul.mubr.f32.gmra.mxu0 %v1294
    %v2004 = vpop.f32.mrf.mxu0
    %v2005 = vadd.f32 %v1860, %v2004
    %v2006 = vpop.f32.mrf.mxu0
    %2007 = vmatprep.mubr.f32.mxu0 0.0
    %2008 = vmatmul.mubr.f32.gmra.mxu0 %v1301
    %v2009 = vpop.f32.mrf.mxu0
    %v2010 = vadd.f32 %v1865, %v2009
    %v2011 = vpop.f32.mrf.mxu0
    %2012 = vmatprep.mubr.f32.mxu0 0.0
    %2013 = vmatmul.mubr.f32.gmra.mxu0 %v1308
    %v2014 = vpop.f32.mrf.mxu0
    %v2015 = vadd.f32 %v1870, %v2014
    %v2016 = vpop.f32.mrf.mxu0
    %2017 = vmatprep.mubr.f32.mxu0 0.0
    %2018 = vmatmul.mubr.f32.gmra.mxu0 %v1315
    %v2019 = vpop.f32.mrf.mxu0
    %v2020 = vadd.f32 %v1875, %v2019
    %v2021 = vpop.f32.mrf.mxu0
    %2022 = vmatprep.mubr.f32.mxu0 0.0
    %2023 = vmatmul.mubr.f32.gmra.mxu0 %v1322
    %v2024 = vpop.f32.mrf.mxu0
    %v2025 = vadd.f32 %v1880, %v2024
    %v2026 = vpop.f32.mrf.mxu0
    %2027 = vmatprep.mubr.f32.mxu0 0.0
    %2028 = vmatmul.mubr.f32.gmra.mxu0 %v1329
    %v2029 = vpop.f32.mrf.mxu0
    %v2030 = vadd.f32 %v1885, %v2029
    %v2031 = vpop.f32.mrf.mxu0
    %2032 = vmatprep.mubr.f32.mxu0 0.0
    %2033 = vmatmul.mubr.f32.gmra.mxu0 %v1336
    %v2034 = vpop.f32.mrf.mxu0
    %v2035 = vadd.f32 %v1890, %v2034
    %v2036 = vpop.f32.mrf.mxu0
    %2037 = vmatprep.mubr.f32.mxu0 0.0
    %2038 = vmatmul.mubr.f32.gmra.mxu0 %v1343
    %v2039 = vpop.f32.mrf.mxu0
    %v2040 = vadd.f32 %v1895, %v2039
    %v2041 = vpop.f32.mrf.mxu0
    %2042 = vdwg.mxu0
    %v2043 = vmax.f32 %v1965, 0.0
    %v2044 = vmax.f32 %v1970, 0.0
    %v2045 = vmax.f32 %v1975, 0.0
    %v2046 = vmax.f32 %v1980, 0.0
    %v2047 = vmax.f32 %v1985, 0.0
    %v2048 = vmax.f32 %v1990, 0.0
    %v2049 = vmax.f32 %v1995, 0.0
    %v2050 = vmax.f32 %v2000, 0.0
    %v2051 = vmax.f32 %v2005, 0.0
    %v2052 = vmax.f32 %v2010, 0.0
    %v2053 = vmax.f32 %v2015, 0.0
    %v2054 = vmax.f32 %v2020, 0.0
    %v2055 = vmax.f32 %v2025, 0.0
    %v2056 = vmax.f32 %v2030, 0.0
    %v2057 = vmax.f32 %v2035, 0.0
    %v2058 = vmax.f32 %v2040, 0.0
    %v2059 = vld [vmem:[%s7] sm:$0xff]
    %2060 = vmatprep.subr.mxu0 0.0
    %2061 = vmatpush1.xpose.msra.mxu0 %v2058
    %2062 = vmatprep.subr.mxu0 0.0
    %2063 = vmatpush1.xpose.msra.mxu0 %v2057
    %2064 = vmatprep.subr.mxu0 0.0
    %2065 = vmatpush1.xpose.msra.mxu0 %v2056
    %2066 = vmatprep.subr.mxu0 0.0
    %2067 = vmatpush1.xpose.msra.mxu0 %v2055
    %2068 = vmatprep.subr.mxu0 0.0
    %2069 = vmatpush1.xpose.msra.mxu0 %v2054
    %2070 = vmatprep.subr.mxu0 0.0
    %2071 = vmatpush1.xpose.msra.mxu0 %v2053
    %2072 = vmatprep.subr.mxu0 0.0
    %2073 = vmatpush1.xpose.msra.mxu0 %v2052
    %2074 = vmatprep.subr.mxu0 0.0
    %2075 = vmatpush1.xpose.msra.mxu0 %v2051
    %2076 = vmatprep.subr.mxu0 0.0
    %2077 = vmatpush1.xpose.msra.mxu0 %v2050
    %2078 = vmatprep.subr.mxu0 0.0
    %2079 = vmatpush1.xpose.msra.mxu0 %v2049
    %2080 = vmatprep.subr.mxu0 0.0
    %2081 = vmatpush1.xpose.msra.mxu0 %v2048
    %2082 = vmatprep.subr.mxu0 0.0
    %2083 = vmatpush1.xpose.msra.mxu0 %v2047
    %2084 = vmatprep.subr.mxu0 0.0
    %2085 = vmatpush1.xpose.msra.mxu0 %v2046
    %2086 = vmatprep.subr.mxu0 0.0
    %2087 = vmatpush1.xpose.msra.mxu0 %v2045
    %2088 = vmatprep.subr.mxu0 0.0
    %2089 = vmatpush1.xpose.msra.mxu0 %v2044
    %2090 = vmatprep.subr.mxu0 0.0
    %2091 = vmatpush1.xpose.msra.mxu0 %v2043
    %2092 = vmatprep.subr.mxu0 0.0
    %2093 = vmatpush2.xpose.msra.mxu0 0.0
    %2094 = vmatprep.subr.mxu0 0.0
    %2095 = vmatpush2.xpose.msra.mxu0 0.0
    %2096 = vmatprep.subr.mxu0 0.0
    %2097 = vmatpush2.xpose.msra.mxu0 0.0
    %2098 = vmatprep.subr.mxu0 0.0
    %2099 = vmatpush2.xpose.msra.mxu0 0.0
    %2100 = vmatprep.subr.mxu0 0.0
    %2101 = vmatpush2.xpose.msra.mxu0 0.0
    %2102 = vmatprep.subr.mxu0 0.0
    %2103 = vmatpush2.xpose.msra.mxu0 0.0
    %2104 = vmatprep.subr.mxu0 0.0
    %2105 = vmatpush2.xpose.msra.mxu0 0.0
    %2106 = vmatprep.subr.mxu0 0.0
    %2107 = vmatpush2.xpose.msra.mxu0 0.0
    %2108 = vmatprep.subr.mxu0 0.0
    %2109 = vmatpush2.xpose.msra.mxu0 0.0
    %2110 = vmatprep.subr.mxu0 0.0
    %2111 = vmatpush2.xpose.msra.mxu0 0.0
    %2112 = vmatprep.subr.mxu0 0.0
    %2113 = vmatpush2.xpose.msra.mxu0 0.0
    %2114 = vmatprep.subr.mxu0 0.0
    %2115 = vmatpush2.xpose.msra.mxu0 0.0
    %2116 = vmatprep.subr.mxu0 0.0
    %2117 = vmatpush2.xpose.msra.mxu0 0.0
    %2118 = vmatprep.subr.mxu0 0.0
    %2119 = vmatpush2.xpose.msra.mxu0 0.0
    %2120 = vmatprep.subr.mxu0 0.0
    %2121 = vmatpush2.xpose.msra.mxu0 0.0
    %2122 = vmatprep.subr.mxu0 0.0
    %2123 = vmatpush2.xpose.msra.mxu0 0.0
    %2124 = vmatprep.mubr.f32.mxu0 0.0
    %2125 = vmatmul.mubr.f32.gmra.mxu0 %v2059
    %v2126 = vpop.f32.mrf.mxu0
    %v2127 = vadd.f32 0.0, %v2126
    %v2128 = vpop.f32.mrf.mxu0
    %2129 = vdwg.mxu0
    %s2130 = sld [smem:[#allocation2]]
    %v2131 = vstv %s2130
    %v2132 = vadd.f32 %v2127, %v2131
    %2133 = vst [vmem:[#allocation8] sm:$0x1] %v2132
    // Predicated region
    $region46: #{tpu_custom_call.1} parent=1 // pred_check
      _
    $region47: #{tpu_custom_call.1} parent=1 // pred_check_branch
      %2135 = sbr.rel (0) target = $region49
    $region48: #{tpu_custom_call.1} parent=1 // pred_region
      %s2137 = ssub.s32 16, 16
      %2138 = vsyncadd [#allocation5], %s2137
      %s2140 = sshll.u32 [#allocation8], 4
      %s2141 = int_to_ptr.vmem [resolvable:$true] %s2140
      %2143 = dma.vmem_to_hbm [thread:$0]  %s2141, 16, %s9, [#allocation5]
    $region49: #{tpu_custom_call.1} parent=1 // pred_fallthru
      _
    // Predicated region
    $region50: #{tpu_custom_call.1} parent=1 // pred_check
      _
    $region51: #{tpu_custom_call.1} parent=1 // pred_check_branch
      %2145 = sbr.rel (0) target = $region53
    $region52: #{tpu_custom_call.1} parent=1 // pred_region
      %2146 = dma.done [#allocation5], 16
    $region53: #{tpu_custom_call.1} parent=1 // pred_fallthru
      _
    %2147 = vsyncpa [#allocation4], 1
    %2148 = vsyncpa [#allocation7], 1
    %2149 = vsyncpa [#allocation5], 1

</llo_original>
